<compile_context>
chip_gen: v7x
topology: tpu7x:2x2x1
jax: 0.10.0
libtpu: 0.0.40
codegen_flags: <defaults>
</compile_context>

<pallas_src>
import math
import functools

import jax
import jax.numpy as jnp
from jax import lax
from jax.experimental import pallas as pl
from jax.experimental.pallas import tpu as pltpu


_INV_SQRT2 = 1.0 / math.sqrt(2.0)
_LN_EPS = 1e-5


def _derive_config():
    """Generation-aware VMEM budget + tile caps (v5e/v6e: 128 MiB, v7x: 64 MiB)."""
    vmem_bytes = 64 * 1024 * 1024
    try:
        vmem_bytes = int(pltpu.get_tpu_info().vmem_capacity_bytes)
    except Exception:
        pass  # conservative fallback below
    if vmem_bytes >= 100 * 1024 * 1024:            # v5e / v6e
        return {"vmem_limit": 96 * 1024 * 1024,
                "tm": 512, "tn": 1024, "tk": 1024, "tq": 256, "tkv": 512}
    # v7x: 64 MiB physical; leave headroom for double buffers / scratch.
    return {"vmem_limit": 40 * 1024 * 1024,
            "tm": 256, "tn": 512, "tk": 512, "tq": 128, "tkv": 256}


_CFG = _derive_config()


def _pick_tile(dim, cap, aligns=(256, 128, 8)):
    """Largest aligned tile <= cap that divides dim (full dim if it fits)."""
    if dim <= cap:
        return dim
    for align in aligns:
        t = (cap // align) * align
        while t >= align:
            if dim % t == 0:
                return t
            t -= align
    # TODO(synk): pad awkward model dims instead of a full-dim fallback block.
    return dim


def _pad_rows(a, pad):
    if pad == 0:
        return a
    return jnp.pad(a, ((0, pad),) + ((0, 0),) * (a.ndim - 1))


def _gelu(x):
    # exact erf-based GELU (torch.nn.functional.gelu default)
    return 0.5 * x * (1.0 + lax.erf(x * _INV_SQRT2))


# ----------------------------- Pallas kernels ------------------------------

def _linear_kernel(x_ref, w_ref, b_ref, o_ref, acc_ref, *, activation):
    """K-tiled matmul (bf16 MXU, f32 acc); bias (+ optional GELU) fused."""
    @pl.when(pl.program_id(2) == 0)
    def _init():
        acc_ref[...] = jnp.zeros_like(acc_ref)

    acc_ref[...] += jnp.dot(x_ref[...].astype(jnp.bfloat16),
                            w_ref[...].astype(jnp.bfloat16),
                            preferred_element_type=jnp.float32)

    @pl.when(pl.program_id(2) == pl.num_programs(2) - 1)
    def _finalize():
        y = acc_ref[...] + b_ref[...].astype(jnp.float32)
        if activation == "gelu":
            y = _gelu(y)
        o_ref[...] = y.astype(o_ref.dtype)


def _linear_residual_kernel(x_ref, w_ref, b_ref, r_ref, o_ref, acc_ref):
    """K-tiled matmul with bias + residual add fused into the epilogue."""
    @pl.when(pl.program_id(2) == 0)
    def _init():
        acc_ref[...] = jnp.zeros_like(acc_ref)

    acc_ref[...] += jnp.dot(x_ref[...].astype(jnp.bfloat16),
                            w_ref[...].astype(jnp.bfloat16),
                            preferred_element_type=jnp.float32)

    @pl.when(pl.program_id(2) == pl.num_programs(2) - 1)
    def _finalize():
        y = (acc_ref[...] + b_ref[...].astype(jnp.float32)
             + r_ref[...].astype(jnp.float32))
        o_ref[...] = y.astype(o_ref.dtype)


def _ln_stats_kernel(x_ref, mu_ref, rstd_ref):
    """Per-row LayerNorm statistics (mean, rstd) prepass."""
    x = x_ref[...].astype(jnp.float32)
    mu = jnp.mean(x, axis=-1, keepdims=True)
    xc = x - mu
    var = jnp.mean(xc * xc, axis=-1, keepdims=True)
    mu_ref[...] = mu
    rstd_ref[...] = lax.rsqrt(var + _LN_EPS)


def _ln_linear_kernel(x_ref, mu_ref, rstd_ref, g_ref, bln_ref, w_ref, b_ref,
                      o_ref, acc_ref, *, activation):
    """K-tiled matmul with the LayerNorm affine applied as a per-K-tile prologue."""
    @pl.when(pl.program_id(2) == 0)
    def _init():
        acc_ref[...] = jnp.zeros_like(acc_ref)

    x = x_ref[...].astype(jnp.float32)
    h = (x - mu_ref[...]) * rstd_ref[...]
    h = h * g_ref[...].astype(jnp.float32) + bln_ref[...].astype(jnp.float32)
    acc_ref[...] += jnp.dot(h.astype(jnp.bfloat16),
                            w_ref[...].astype(jnp.bfloat16),
                            preferred_element_type=jnp.float32)

    @pl.when(pl.program_id(2) == pl.num_programs(2) - 1)
    def _finalize():
        y = acc_ref[...] + b_ref[...].astype(jnp.float32)
        if activation == "gelu":
            y = _gelu(y)
        o_ref[...] = y.astype(o_ref.dtype)


def _layernorm_kernel(x_ref, g_ref, b_ref, o_ref):
    x = x_ref[...].astype(jnp.float32)
    mu = jnp.mean(x, axis=-1, keepdims=True)
    xc = x - mu
    var = jnp.mean(xc * xc, axis=-1, keepdims=True)
    y = xc * lax.rsqrt(var + _LN_EPS)
    o_ref[...] = (y * g_ref[...].astype(jnp.float32)
                  + b_ref[...].astype(jnp.float32)).astype(o_ref.dtype)


def _mha_kernel(q_ref, k_ref, v_ref, o_ref, acc_ref, m_ref, l_ref,
                *, n_heads, d_model, scale):
    """Flash-style multi-head attention: Sq x Sk tiled, online softmax.

    q_ref: (1, tq, D); k_ref/v_ref: (1, tkv, D); o_ref: (1, tq, D)
    acc_ref: (tq, D) f32; m_ref/l_ref: (H, tq, 1) f32  (persist across Sk axis)
    """
    dh = d_model // n_heads
    ki = pl.program_id(2)

    @pl.when(ki == 0)
    def _init():
        m_ref[...] = jnp.full(m_ref.shape, -jnp.inf, dtype=jnp.float32)
        l_ref[...] = jnp.zeros_like(l_ref)
        acc_ref[...] = jnp.zeros_like(acc_ref)

    # 1/sqrt(dh) folded into q once (one VPU pass over (tq, D), not the scores)
    q = (q_ref[0].astype(jnp.float32) * scale).astype(jnp.bfloat16)
    k = k_ref[0].astype(jnp.bfloat16)
    v = v_ref[0].astype(jnp.bfloat16)

    for h in range(n_heads):                       # static unroll over heads
        sl = slice(h * dh, (h + 1) * dh)
        # contract last dims directly (no k.T materialization)
        s = lax.dot_general(q[:, sl], k[:, sl], (((1,), (1,)), ((), ())),
                            preferred_element_type=jnp.float32)   # (tq, tkv)
        m_prev = m_ref[h]                                          # (tq, 1)
        m_new = jnp.maximum(m_prev, jnp.max(s, axis=-1, keepdims=True))
        alpha = jnp.exp(m_prev - m_new)
        p = jnp.exp(s - m_new)
        l_ref[h] = alpha * l_ref[h] + jnp.sum(p, axis=-1, keepdims=True)
        acc_ref[:, sl] = alpha * acc_ref[:, sl] + jnp.dot(
            p.astype(jnp.bfloat16), v[:, sl], preferred_element_type=jnp.float32)
        m_ref[h] = m_new

    @pl.when(ki == pl.num_programs(2) - 1)
    def _finalize():
        for h in range(n_heads):
            sl = slice(h * dh, (h + 1) * dh)
            inv = pl.reciprocal(l_ref[h], approx=True)             # EUP slot
            o_ref[0, :, sl] = (acc_ref[:, sl] * inv).astype(o_ref.dtype)


# ------------------------------ kernel wrappers -----------------------------

def linear(x, w, b, residual=None, activation=None):
    """x: (M, K) @ w: (K, N) + b (+ residual, + GELU) -> (M, N). K-tiled."""
    M0, K = x.shape
    N = w.shape[1]
    pad = (-M0) % 8
    x = _pad_rows(x, pad)
    if residual is not None:
        residual = _pad_rows(residual, pad)
    M = M0 + pad

    tm = _pick_tile(M, _CFG["tm"])
    tn = _pick_tile(N, _CFG["tn"], aligns=(256, 128))
    tk = _pick_tile(K, _CFG["tk"], aligns=(256, 128))
    grid = (M // tm, N // tn, K // tk)
    b2 = b.reshape(1, N)

    in_specs = [
        pl.BlockSpec((tm, tk), lambda i, j, k: (i, k)),
        pl.BlockSpec((tk, tn), lambda i, j, k: (k, j)),
        pl.BlockSpec((1, tn), lambda i, j, k: (0, j)),
    ]
    args = [x, w, b2]
    if residual is not None:
        in_specs.append(pl.BlockSpec((tm, tn), lambda i, j, k: (i, j)))
        args.append(residual)
        kernel = _linear_residual_kernel
    else:
        kernel = functools.partial(_linear_kernel, activation=activation)

    out = pl.pallas_call(
        kernel,
        out_shape=jax.ShapeDtypeStruct((M, N), x.dtype),
        grid=grid,
        in_specs=in_specs,
        out_specs=pl.BlockSpec((tm, tn), lambda i, j, k: (i, j)),
        scratch_shapes=[pltpu.VMEM((tm, tn), jnp.float32)],
        compiler_params=pltpu.CompilerParams(
            dimension_semantics=("parallel", "parallel", "arbitrary"),
            vmem_limit_bytes=_CFG["vmem_limit"]),
    )(*args)
    return out[:M0] if pad else out


def ln_stats(x):
    """Per-row LayerNorm mean / rstd: (M, D) -> ((M, 1), (M, 1)) f32."""
    M0, D = x.shape
    pad = (-M0) % 8
    x = _pad_rows(x, pad)
    M = M0 + pad
    tm = _pick_tile(M, _CFG["tm"])

    mu, rstd = pl.pallas_call(
        _ln_stats_kernel,
        out_shape=(jax.ShapeDtypeStruct((M, 1), jnp.float32),
                   jax.ShapeDtypeStruct((M, 1), jnp.float32)),
        grid=(M // tm,),
        in_specs=[pl.BlockSpec((tm, D), lambda i: (i, 0))],
        out_specs=(pl.BlockSpec((tm, 1), lambda i: (i, 0)),
                   pl.BlockSpec((tm, 1), lambda i: (i, 0))),
        compiler_params=pltpu.CompilerParams(
            dimension_semantics=("parallel",),
            vmem_limit_bytes=_CFG["vmem_limit"]),
    )(x)
    if pad:
        mu, rstd = mu[:M0], rstd[:M0]
    return mu, rstd


def ln_linear(x, mu, rstd, gamma, beta, w, b, activation=None):
    """LayerNorm(x) @ w + b (+ GELU) with the LN folded into a K-tiled matmul."""
    M0, K = x.shape
    N = w.shape[1]
    pad = (-M0) % 8
    x, mu, rstd = _pad_rows(x, pad), _pad_rows(mu, pad), _pad_rows(rstd, pad)
    M = M0 + pad

    tm = _pick_tile(M, _CFG["tm"])
    tn = _pick_tile(N, _CFG["tn"], aligns=(256, 128))
    tk = _pick_tile(K, _CFG["tk"], aligns=(256, 128))
    grid = (M // tm, N // tn, K // tk)

    out = pl.pallas_call(
        functools.partial(_ln_linear_kernel, activation=activation),
        out_shape=jax.ShapeDtypeStruct((M, N), x.dtype),
        grid=grid,
        in_specs=[
            pl.BlockSpec((tm, tk), lambda i, j, k: (i, k)),
            pl.BlockSpec((tm, 1), lambda i, j, k: (i, 0)),
            pl.BlockSpec((tm, 1), lambda i, j, k: (i, 0)),
            pl.BlockSpec((1, tk), lambda i, j, k: (0, k)),
            pl.BlockSpec((1, tk), lambda i, j, k: (0, k)),
            pl.BlockSpec((tk, tn), lambda i, j, k: (k, j)),
            pl.BlockSpec((1, tn), lambda i, j, k: (0, j)),
        ],
        out_specs=pl.BlockSpec((tm, tn), lambda i, j, k: (i, j)),
        scratch_shapes=[pltpu.VMEM((tm, tn), jnp.float32)],
        compiler_params=pltpu.CompilerParams(
            dimension_semantics=("parallel", "parallel", "arbitrary"),
            vmem_limit_bytes=_CFG["vmem_limit"]),
    )(x, mu, rstd, gamma.reshape(1, K), beta.reshape(1, K), w, b.reshape(1, N))
    return out[:M0] if pad else out


def layernorm(x, gamma, beta):
    """x: (M, D), gamma/beta: (D,) -> (M, D), row-tiled."""
    M0, D = x.shape
    pad = (-M0) % 8
    x = _pad_rows(x, pad)
    M = M0 + pad
    tm = _pick_tile(M, _CFG["tm"])

    out = pl.pallas_call(
        _layernorm_kernel,
        out_shape=jax.ShapeDtypeStruct((M, D), x.dtype),
        grid=(M // tm,),
        in_specs=[pl.BlockSpec((tm, D), lambda i: (i, 0)),
                  pl.BlockSpec((1, D), lambda i: (0, 0)),
                  pl.BlockSpec((1, D), lambda i: (0, 0))],
        out_specs=pl.BlockSpec((tm, D), lambda i: (i, 0)),
        compiler_params=pltpu.CompilerParams(
            dimension_semantics=("parallel",),
            vmem_limit_bytes=_CFG["vmem_limit"]),
    )(x, gamma.reshape(1, D), beta.reshape(1, D))
    return out[:M0] if pad else out


def attention(q, k, v, n_heads):
    """q: (B, Sq, D), k/v: (B, Sk, D) -> (B, Sq, D); Sq/Sk tiled, online softmax."""
    B, Sq, D = q.shape
    Sk = k.shape[1]
    scale = 1.0 / math.sqrt(D // n_heads)
    tq = _pick_tile(Sq, _CFG["tq"], aligns=(128, 8))
    tkv = _pick_tile(Sk, _CFG["tkv"], aligns=(128, 8))
    grid = (B, Sq // tq, Sk // tkv)
    kernel = functools.partial(_mha_kernel, n_heads=n_heads, d_model=D,
                               scale=scale)
    return pl.pallas_call(
        kernel,
        out_shape=jax.ShapeDtypeStruct((B, Sq, D), q.dtype),
        grid=grid,
        in_specs=[pl.BlockSpec((1, tq, D), lambda b, qi, ki: (b, qi, 0)),
                  pl.BlockSpec((1, tkv, D), lambda b, qi, ki: (b, ki, 0)),
                  pl.BlockSpec((1, tkv, D), lambda b, qi, ki: (b, ki, 0))],
        out_specs=pl.BlockSpec((1, tq, D), lambda b, qi, ki: (b, qi, 0)),
        scratch_shapes=[pltpu.VMEM((tq, D), jnp.float32),
                        pltpu.VMEM((n_heads, tq, 1), jnp.float32),
                        pltpu.VMEM((n_heads, tq, 1), jnp.float32)],
        compiler_params=pltpu.CompilerParams(
            dimension_semantics=("parallel", "parallel", "arbitrary"),
            vmem_limit_bytes=_CFG["vmem_limit"]),
    )(q, k, v)


# ------------------------- transformer decoder glue -------------------------

def decoder_layer(x2d, mem2d, B, S, Sm, p, n_heads):
    """norm_first TransformerDecoderLayer (eval mode). x2d: (B*S, D)."""
    D = x2d.shape[-1]
    sa, ca = p["self_attn"], p["cross_attn"]

    # --- self-attention block: x = x + Wo @ MHA(LN1(x)) ---
    mu, rstd = ln_stats(x2d)
    qkv = ln_linear(x2d, mu, rstd, p["ln1_g"], p["ln1_b"],
                    sa["w_qkv"], sa["b_qkv"])
    qkv3 = qkv.reshape(B, S, 3 * D)
    attn = attention(qkv3[..., :D], qkv3[..., D:2 * D], qkv3[..., 2 * D:],
                     n_heads)
    x2d = linear(attn.reshape(B * S, D), sa["wo"], sa["bo"], residual=x2d)

    # --- cross-attention block: x = x + Wo @ MHA(LN2(x), memory) ---
    mu, rstd = ln_stats(x2d)
    q = ln_linear(x2d, mu, rstd, p["ln2_g"], p["ln2_b"], ca["wq"], ca["bq"])
    kv = linear(mem2d, ca["w_kv"], ca["b_kv"]).reshape(B, Sm, 2 * D)
    attn = attention(q.reshape(B, S, D), kv[..., :D], kv[..., D:], n_heads)
    x2d = linear(attn.reshape(B * S, D), ca["wo"], ca["bo"], residual=x2d)

    # --- feed-forward block: x = x + W2 @ gelu(W1 @ LN3(x)) ---
    mu, rstd = ln_stats(x2d)
    h = ln_linear(x2d, mu, rstd, p["ln3_g"], p["ln3_b"], p["w1"], p["b1"],
                  activation="gelu")
    x2d = linear(h, p["w2"], p["b2"], residual=x2d)
    return x2d


def wrapped_transformer_decoder(tgt, memory, params, n_heads):
    # TODO(synk): dropout is inference-mode identity; no tgt/memory masks.
    B, S, D = tgt.shape
    Sm = memory.shape[1]
    x2d = tgt.reshape(B * S, D)
    mem2d = memory.reshape(B * Sm, D)
    for p in params["layers"]:
        x2d = decoder_layer(x2d, mem2d, B, S, Sm, p, n_heads)
    x2d = layernorm(x2d, params["ln_g"], params["ln_b"])
    return x2d.reshape(B, S, D)


# ------------------------------ parameter init ------------------------------

def init_params(key, hidden, n_heads, n_layers, w_dtype=jnp.bfloat16):
    """Weights in bf16 (MXU-native), biases / LN params in f32."""
    ff = hidden * 4
    keys = iter(jax.random.split(key, 7 * n_layers + 8))

    def w(shape, scale=0.02):
        return (scale * jax.random.normal(next(keys), shape)).astype(w_dtype)

    def zeros(n):
        return jnp.zeros((n,), jnp.float32)

    def ones(n):
        return jnp.ones((n,), jnp.float32)

    layers = []
    for _ in range(n_layers):
        layers.append({
            "self_attn": {
                "w_qkv": w((hidden, 3 * hidden)), "b_qkv": zeros(3 * hidden),
                "wo": w((hidden, hidden)), "bo": zeros(hidden),
            },
            "cross_attn": {
                "wq": w((hidden, hidden)), "bq": zeros(hidden),
                "w_kv": w((hidden, 2 * hidden)), "b_kv": zeros(2 * hidden),
                "wo": w((hidden, hidden)), "bo": zeros(hidden),
            },
            "w1": w((hidden, ff)), "b1": zeros(ff),
            "w2": w((ff, hidden)), "b2": zeros(hidden),
            "ln1_g": ones(hidden), "ln1_b": zeros(hidden),
            "ln2_g": ones(hidden), "ln2_b": zeros(hidden),
            "ln3_g": ones(hidden), "ln3_b": zeros(hidden),
        })
    return {"layers": layers, "ln_g": ones(hidden), "ln_b": zeros(hidden)}


# ------------------------------ pure-JAX reference ---------------------------

def _reference(tgt, memory, params, n_heads):
    f32 = lambda a: a.astype(jnp.float32)

    def ln(x, g, b):
        mu = x.mean(-1, keepdims=True)
        var = ((x - mu) ** 2).mean(-1, keepdims=True)
        return (x - mu) / jnp.sqrt(var + _LN_EPS) * f32(g) + f32(b)

    def mha(q, k, v):
        B, Sq, D = q.shape
        Sk = k.shape[1]
        Dh = D // n_heads
        qh = q.reshape(B, Sq, n_heads, Dh).transpose(0, 2, 1, 3)
        kh = k.reshape(B, Sk, n_heads, Dh).transpose(0, 2, 1, 3)
        vh = v.reshape(B, Sk, n_heads, Dh).transpose(0, 2, 1, 3)
        s = jnp.einsum("bhqd,bhkd->bhqk", qh, kh) / math.sqrt(Dh)
        p = jax.nn.softmax(s, axis=-1)
        o = jnp.einsum("bhqk,bhkd->bhqd", p, vh)
        return o.transpose(0, 2, 1, 3).reshape(B, Sq, D)

    x = tgt
    D = x.shape[-1]
    for p in params["layers"]:
        sa, ca = p["self_attn"], p["cross_attn"]
        h = ln(x, p["ln1_g"], p["ln1_b"])
        qkv = h @ f32(sa["w_qkv"]) + f32(sa["b_qkv"])
        a = mha(qkv[..., :D], qkv[..., D:2 * D], qkv[..., 2 * D:])
        x = x + a @ f32(sa["wo"]) + f32(sa["bo"])

        h = ln(x, p["ln2_g"], p["ln2_b"])
        q = h @ f32(ca["wq"]) + f32(ca["bq"])
        kv = memory @ f32(ca["w_kv"]) + f32(ca["b_kv"])
        a = mha(q, kv[..., :D], kv[..., D:])
        x = x + a @ f32(ca["wo"]) + f32(ca["bo"])

        h = ln(x, p["ln3_g"], p["ln3_b"])
        h = _gelu(h @ f32(p["w1"]) + f32(p["b1"]))
        x = x + h @ f32(p["w2"]) + f32(p["b2"])
    return ln(x, params["ln_g"], params["ln_b"])


# ----------------------------------- main -----------------------------------

if __name__ == "__main__":
    HIDDEN = 32
    N_HEADS = 4
    N_LAYERS = 2
    B = 2
    S_TGT = 8
    S_MEM = 12

    key = jax.random.PRNGKey(0)
    k_tgt, k_mem, k_par, k_x, k_w = jax.random.split(key, 5)

    tgt = jax.random.normal(k_tgt, (B, S_TGT, HIDDEN), dtype=jnp.float32)
    memory = jax.random.normal(k_mem, (B, S_MEM, HIDDEN), dtype=jnp.float32)
    params = init_params(k_par, HIDDEN, N_HEADS, N_LAYERS)

    fwd = jax.jit(functools.partial(wrapped_transformer_decoder, n_heads=N_HEADS))
    out = fwd(tgt, memory, params)
    jax.block_until_ready(out)

    assert out.shape == (B, S_TGT, HIDDEN), out.shape
    assert bool(jnp.all(jnp.isfinite(out)))

    ref = _reference(tgt, memory, params, N_HEADS)
    max_err = float(jnp.max(jnp.abs(out - ref)))
    assert max_err < 2e-2, f"decoder mismatch vs reference: {max_err}"

    # Extra check: exercise the K-tiled accumulator path (grid K > 1 on all gens).
    xk = jax.random.normal(k_x, (256, 2048), dtype=jnp.float32)
    wk = (0.02 * jax.random.normal(k_w, (2048, 256))).astype(jnp.bfloat16)
    bk = jnp.zeros((256,), jnp.float32)
    yk = jax.block_until_ready(jax.jit(linear)(xk, wk, bk))
    yk_ref = xk @ wk.astype(jnp.float32) + bk
    k_err = float(jnp.max(jnp.abs(yk - yk_ref)))
    assert k_err < 5e-2, f"K-tiled linear mismatch vs reference: {k_err}"

    print("KERNEL_OK")
</pallas_src>

<mosaic_0001>
module attributes {stable_mosaic.version = 11 : i64} {
  func.func @_ln_stats_kernel(%arg0: i32, %arg1: memref<16x32xf32, #tpu.memory_space<vmem>>, %arg2: memref<16x1xf32, #tpu.memory_space<vmem>>, %arg3: memref<16x1xf32, #tpu.memory_space<vmem>>) attributes {dimension_semantics = [#tpu.dimension_semantics<parallel>], iteration_bounds = array<i64: 1>, scalar_prefetch = 0 : i64, scratch_operands = 0 : i64, tpu.core_type = #tpu.core_type<tc>, window_params = [{transform_indices = @transform_0, window_bounds = array<i64: 16, 32>}, {transform_indices = @transform_1, window_bounds = array<i64: 16, 1>}, {transform_indices = @transform_2, window_bounds = array<i64: 16, 1>}]} {
    %c0 = arith.constant 0 : index
    %c0_0 = arith.constant 0 : index
    %0 = vector.load %arg1[%c0, %c0_0] : memref<16x32xf32, #tpu.memory_space<vmem>>, vector<16x32xf32>
    %cst = arith.constant dense<0.000000e+00> : vector<16xf32>
    %1 = vector.multi_reduction <add>, %0, %cst [1] : vector<16x32xf32> to vector<16xf32>
    %2 = vector.shape_cast %1 : vector<16xf32> to vector<16x1xf32>
    %cst_1 = arith.constant 3.200000e+01 : f32
    %3 = vector.broadcast %cst_1 : f32 to vector<16x1xf32>
    %4 = arith.divf %2, %3 : vector<16x1xf32>
    %5 = vector.broadcast %4 : vector<16x1xf32> to vector<16x32xf32>
    %6 = arith.subf %0, %5 : vector<16x32xf32>
    %7 = arith.mulf %6, %6 : vector<16x32xf32>
    %cst_2 = arith.constant dense<0.000000e+00> : vector<16xf32>
    %8 = vector.multi_reduction <add>, %7, %cst_2 [1] : vector<16x32xf32> to vector<16xf32>
    %9 = vector.shape_cast %8 : vector<16xf32> to vector<16x1xf32>
    %cst_3 = arith.constant 3.200000e+01 : f32
    %10 = vector.broadcast %cst_3 : f32 to vector<16x1xf32>
    %11 = arith.divf %9, %10 : vector<16x1xf32>
    %c0_4 = arith.constant 0 : index
    %c0_5 = arith.constant 0 : index
    %12 = vector.load %arg2[%c0_4, %c0_5] : memref<16x1xf32, #tpu.memory_space<vmem>>, vector<16x1xf32>
    tpu.vector_store %arg2[%c0_4, %c0_5], %4 {strides = array<i32>} : memref<16x1xf32, #tpu.memory_space<vmem>>, vector<16x1xf32>,
    %cst_6 = arith.constant 9.99999974E-6 : f32
    %13 = vector.broadcast %cst_6 : f32 to vector<16x1xf32>
    %14 = arith.addf %11, %13 : vector<16x1xf32>
    %15 = math.rsqrt %14 : vector<16x1xf32>
    %c0_7 = arith.constant 0 : index
    %c0_8 = arith.constant 0 : index
    %16 = vector.load %arg3[%c0_7, %c0_8] : memref<16x1xf32, #tpu.memory_space<vmem>>, vector<16x1xf32>
    tpu.vector_store %arg3[%c0_7, %c0_8], %15 {strides = array<i32>} : memref<16x1xf32, #tpu.memory_space<vmem>>, vector<16x1xf32>,
    return
  }
  func.func @transform_0(%arg0: i32) -> (i32, i32) {
    %c0_i32 = arith.constant 0 : i32
    %c0_i32_0 = arith.constant 0 : i32
    return %arg0, %c0_i32 : i32, i32
  }
  func.func @transform_1(%arg0: i32) -> (i32, i32) {
    %c0_i32 = arith.constant 0 : i32
    %c0_i32_0 = arith.constant 0 : i32
    return %arg0, %c0_i32 : i32, i32
  }
  func.func @transform_2(%arg0: i32) -> (i32, i32) {
    %c0_i32 = arith.constant 0 : i32
    %c0_i32_0 = arith.constant 0 : i32
    return %arg0, %c0_i32 : i32, i32
  }
}

module attributes {stable_mosaic.version = 11 : i64} {
  func.func @_mha_kernel(%arg0: i32, %arg1: i32, %arg2: i32, %arg3: memref<1x8x32xf32, #tpu.memory_space<vmem>>, %arg4: memref<1x8x32xf32, #tpu.memory_space<vmem>>, %arg5: memref<1x8x32xf32, #tpu.memory_space<vmem>>, %arg6: memref<1x8x32xf32, #tpu.memory_space<vmem>>, %arg7: memref<8x32xf32, #tpu.memory_space<vmem>>, %arg8: memref<4x8x1xf32, #tpu.memory_space<vmem>>, %arg9: memref<4x8x1xf32, #tpu.memory_space<vmem>>) attributes {dimension_semantics = [#tpu.dimension_semantics<parallel>, #tpu.dimension_semantics<parallel>, #tpu.dimension_semantics<arbitrary>], iteration_bounds = array<i64: 2, 1, 1>, scalar_prefetch = 0 : i64, scratch_operands = 3 : i64, tpu.core_type = #tpu.core_type<tc>, window_params = [{transform_indices = @transform_0, window_bounds = array<i64: 1, 8, 32>}, {transform_indices = @transform_1, window_bounds = array<i64: 1, 8, 32>}, {transform_indices = @transform_2, window_bounds = array<i64: 1, 8, 32>}, {transform_indices = @transform_3, window_bounds = array<i64: 1, 8, 32>}]} {
    %c0_i32 = arith.constant 0 : i32
    %0 = arith.cmpi eq, %arg2, %c0_i32 : i32
    %1 = arith.extui %0 : i1 to i32
    %c0_i32_0 = arith.constant 0 : i32
    %2 = arith.cmpi ne, %1, %c0_i32_0 : i32
    scf.if %2 {
      %cst_85 = arith.constant 0xFF800000 : f32
      %149 = vector.broadcast %cst_85 : f32 to vector<4x8x1xf32>
      %c0_86 = arith.constant 0 : index
      %c0_87 = arith.constant 0 : index
      %c0_88 = arith.constant 0 : index
      %150 = vector.load %arg8[%c0_86, %c0_87, %c0_88] : memref<4x8x1xf32, #tpu.memory_space<vmem>>, vector<4x8x1xf32>
      tpu.vector_store %arg8[%c0_86, %c0_87, %c0_88], %149 {strides = array<i32>} : memref<4x8x1xf32, #tpu.memory_space<vmem>>, vector<4x8x1xf32>,
      %cst_89 = arith.constant 0.000000e+00 : f32
      %151 = vector.broadcast %cst_89 : f32 to vector<4x8x1xf32>
      %c0_90 = arith.constant 0 : index
      %c0_91 = arith.constant 0 : index
      %c0_92 = arith.constant 0 : index
      %152 = vector.load %arg9[%c0_90, %c0_91, %c0_92] : memref<4x8x1xf32, #tpu.memory_space<vmem>>, vector<4x8x1xf32>
      tpu.vector_store %arg9[%c0_90, %c0_91, %c0_92], %151 {strides = array<i32>} : memref<4x8x1xf32, #tpu.memory_space<vmem>>, vector<4x8x1xf32>,
      %cst_93 = arith.constant 0.000000e+00 : f32
      %153 = vector.broadcast %cst_93 : f32 to vector<8x32xf32>
      %c0_94 = arith.constant 0 : index
      %c0_95 = arith.constant 0 : index
      %154 = vector.load %arg7[%c0_94, %c0_95] : memref<8x32xf32, #tpu.memory_space<vmem>>, vector<8x32xf32>
      tpu.vector_store %arg7[%c0_94, %c0_95], %153 {strides = array<i32>} : memref<8x32xf32, #tpu.memory_space<vmem>>, vector<8x32xf32>,
    } else {
    }
    %c0 = arith.constant 0 : index
    %c0_1 = arith.constant 0 : index
    %c0_2 = arith.constant 0 : index
    %3 = vector.load %arg3[%c0, %c0_1, %c0_2] : memref<1x8x32xf32, #tpu.memory_space<vmem>>, vector<1x8x32xf32>
    %4 = vector.shape_cast %3 : vector<1x8x32xf32> to vector<8x32xf32>
    %cst = arith.constant 0.353553385 : f32
    %5 = vector.broadcast %cst : f32 to vector<8x32xf32>
    %6 = arith.mulf %4, %5 : vector<8x32xf32>
    %7 = arith.truncf %6 : vector<8x32xf32> to vector<8x32xbf16>
    %c0_3 = arith.constant 0 : index
    %c0_4 = arith.constant 0 : index
    %c0_5 = arith.constant 0 : index
    %8 = vector.load %arg4[%c0_3, %c0_4, %c0_5] : memref<1x8x32xf32, #tpu.memory_space<vmem>>, vector<1x8x32xf32>
    %9 = vector.shape_cast %8 : vector<1x8x32xf32> to vector<8x32xf32>
    %10 = arith.truncf %9 : vector<8x32xf32> to vector<8x32xbf16>
    %c0_6 = arith.constant 0 : index
    %c0_7 = arith.constant 0 : index
    %c0_8 = arith.constant 0 : index
    %11 = vector.load %arg5[%c0_6, %c0_7, %c0_8] : memref<1x8x32xf32, #tpu.memory_space<vmem>>, vector<1x8x32xf32>
    %12 = vector.shape_cast %11 : vector<1x8x32xf32> to vector<8x32xf32>
    %13 = arith.truncf %12 : vector<8x32xf32> to vector<8x32xbf16>
    %14 = vector.extract_strided_slice %7 {offsets = [0, 0], sizes = [8, 8], strides = [1, 1]} : vector<8x32xbf16> to vector<8x8xbf16>
    %15 = vector.extract_strided_slice %10 {offsets = [0, 0], sizes = [8, 8], strides = [1, 1]} : vector<8x32xbf16> to vector<8x8xbf16>
    %cst_9 = arith.constant dense<0.000000e+00> : vector<8x8xf32>
    %16 = tpu.matmul %14, %15, %cst_9 {dimension_numbers = #tpu.dot_dimension_numbers<[1], [1], [0], [0], [0, 0, 1, 0], [], []>} : vector<8x8xbf16>, vector<8x8xbf16>, vector<8x8xf32> -> vector<8x8xf32>
    %c0_10 = arith.constant 0 : index
    %c0_11 = arith.constant 0 : index
    %c0_12 = arith.constant 0 : index
    %17 = vector.load %arg8[%c0_10, %c0_11, %c0_12] : memref<4x8x1xf32, #tpu.memory_space<vmem>>, vector<1x8x1xf32>
    %18 = vector.shape_cast %17 : vector<1x8x1xf32> to vector<8x1xf32>
    %cst_13 = arith.constant dense<0xFF800000> : vector<8xf32>
    %19 = vector.multi_reduction <maximumf>, %16, %cst_13 [1] : vector<8x8xf32> to vector<8xf32>
    %20 = vector.shape_cast %19 : vector<8xf32> to vector<8x1xf32>
    %21 = arith.maximumf %18, %20 : vector<8x1xf32>
    %22 = arith.subf %18, %21 : vector<8x1xf32>
    %23 = math.exp %22 : vector<8x1xf32>
    %24 = vector.broadcast %21 : vector<8x1xf32> to vector<8x8xf32>
    %25 = arith.subf %16, %24 : vector<8x8xf32>
    %26 = math.exp %25 : vector<8x8xf32>
    %c0_14 = arith.constant 0 : index
    %c0_15 = arith.constant 0 : index
    %c0_16 = arith.constant 0 : index
    %27 = vector.load %arg9[%c0_14, %c0_15, %c0_16] : memref<4x8x1xf32, #tpu.memory_space<vmem>>, vector<1x8x1xf32>
    %28 = vector.shape_cast %27 : vector<1x8x1xf32> to vector<8x1xf32>
    %29 = arith.mulf %23, %28 : vector<8x1xf32>
    %cst_17 = arith.constant dense<0.000000e+00> : vector<8xf32>
    %30 = vector.multi_reduction <add>, %26, %cst_17 [1] : vector<8x8xf32> to vector<8xf32>
    %31 = vector.shape_cast %30 : vector<8xf32> to vector<8x1xf32>
    %32 = arith.addf %29, %31 : vector<8x1xf32>
    %c0_18 = arith.constant 0 : index
    %c0_19 = arith.constant 0 : index
    %c0_20 = arith.constant 0 : index
    %33 = vector.load %arg9[%c0_18, %c0_19, %c0_20] : memref<4x8x1xf32, #tpu.memory_space<vmem>>, vector<1x8x1xf32>
    %34 = vector.shape_cast %33 : vector<1x8x1xf32> to vector<8x1xf32>
    %35 = vector.shape_cast %32 : vector<8x1xf32> to vector<1x8x1xf32>
    tpu.vector_store %arg9[%c0_18, %c0_19, %c0_20], %35 {strides = array<i32>} : memref<4x8x1xf32, #tpu.memory_space<vmem>>, vector<1x8x1xf32>,
    %c0_21 = arith.constant 0 : index
    %c0_22 = arith.constant 0 : index
    %36 = vector.load %arg7[%c0_21, %c0_22] : memref<8x32xf32, #tpu.memory_space<vmem>>, vector<8x8xf32>
    %37 = vector.broadcast %23 : vector<8x1xf32> to vector<8x8xf32>
    %38 = arith.mulf %37, %36 : vector<8x8xf32>
    %39 = arith.truncf %26 : vector<8x8xf32> to vector<8x8xbf16>
    %40 = vector.extract_strided_slice %13 {offsets = [0, 0], sizes = [8, 8], strides = [1, 1]} : vector<8x32xbf16> to vector<8x8xbf16>
    %cst_23 = arith.constant dense<0.000000e+00> : vector<8x8xf32>
    %41 = tpu.matmul %39, %40, %cst_23 {dimension_numbers = #tpu.dot_dimension_numbers<[1], [0], [0], [1], [0, 0, 1, 1], [], []>} : vector<8x8xbf16>, vector<8x8xbf16>, vector<8x8xf32> -> vector<8x8xf32>
    %42 = arith.addf %38, %41 : vector<8x8xf32>
    %c0_24 = arith.constant 0 : index
    %c0_25 = arith.constant 0 : index
    %43 = vector.load %arg7[%c0_24, %c0_25] : memref<8x32xf32, #tpu.memory_space<vmem>>, vector<8x8xf32>
    tpu.vector_store %arg7[%c0_24, %c0_25], %42 {strides = array<i32>} : memref<8x32xf32, #tpu.memory_space<vmem>>, vector<8x8xf32>,
    %c0_26 = arith.constant 0 : index
    %c0_27 = arith.constant 0 : index
    %c0_28 = arith.constant 0 : index
    %44 = vector.load %arg8[%c0_26, %c0_27, %c0_28] : memref<4x8x1xf32, #tpu.memory_space<vmem>>, vector<1x8x1xf32>
    %45 = vector.shape_cast %44 : vector<1x8x1xf32> to vector<8x1xf32>
    %46 = vector.shape_cast %21 : vector<8x1xf32> to vector<1x8x1xf32>
    tpu.vector_store %arg8[%c0_26, %c0_27, %c0_28], %46 {strides = array<i32>} : memref<4x8x1xf32, #tpu.memory_space<vmem>>, vector<1x8x1xf32>,
    %47 = vector.extract_strided_slice %7 {offsets = [0, 8], sizes = [8, 8], strides = [1, 1]} : vector<8x32xbf16> to vector<8x8xbf16>
    %48 = vector.extract_strided_slice %10 {offsets = [0, 8], sizes = [8, 8], strides = [1, 1]} : vector<8x32xbf16> to vector<8x8xbf16>
    %cst_29 = arith.constant dense<0.000000e+00> : vector<8x8xf32>
    %49 = tpu.matmul %47, %48, %cst_29 {dimension_numbers = #tpu.dot_dimension_numbers<[1], [1], [0], [0], [0, 0, 1, 0], [], []>} : vector<8x8xbf16>, vector<8x8xbf16>, vector<8x8xf32> -> vector<8x8xf32>
    %c1 = arith.constant 1 : index
    %c0_30 = arith.constant 0 : index
    %c0_31 = arith.constant 0 : index
    %50 = vector.load %arg8[%c1, %c0_30, %c0_31] : memref<4x8x1xf32, #tpu.memory_space<vmem>>, vector<1x8x1xf32>
    %51 = vector.shape_cast %50 : vector<1x8x1xf32> to vector<8x1xf32>
    %cst_32 = arith.constant dense<0xFF800000> : vector<8xf32>
    %52 = vector.multi_reduction <maximumf>, %49, %cst_32 [1] : vector<8x8xf32> to vector<8xf32>
    %53 = vector.shape_cast %52 : vector<8xf32> to vector<8x1xf32>
    %54 = arith.maximumf %51, %53 : vector<8x1xf32>
    %55 = arith.subf %51, %54 : vector<8x1xf32>
    %56 = math.exp %55 : vector<8x1xf32>
    %57 = vector.broadcast %54 : vector<8x1xf32> to vector<8x8xf32>
    %58 = arith.subf %49, %57 : vector<8x8xf32>
    %59 = math.exp %58 : vector<8x8xf32>
    %c1_33 = arith.constant 1 : index
    %c0_34 = arith.constant 0 : index
    %c0_35 = arith.constant 0 : index
    %60 = vector.load %arg9[%c1_33, %c0_34, %c0_35] : memref<4x8x1xf32, #tpu.memory_space<vmem>>, vector<1x8x1xf32>
    %61 = vector.shape_cast %60 : vector<1x8x1xf32> to vector<8x1xf32>
    %62 = arith.mulf %56, %61 : vector<8x1xf32>
    %cst_36 = arith.constant dense<0.000000e+00> : vector<8xf32>
    %63 = vector.multi_reduction <add>, %59, %cst_36 [1] : vector<8x8xf32> to vector<8xf32>
    %64 = vector.shape_cast %63 : vector<8xf32> to vector<8x1xf32>
    %65 = arith.addf %62, %64 : vector<8x1xf32>
    %c1_37 = arith.constant 1 : index
    %c0_38 = arith.constant 0 : index
    %c0_39 = arith.constant 0 : index
    %66 = vector.load %arg9[%c1_37, %c0_38, %c0_39] : memref<4x8x1xf32, #tpu.memory_space<vmem>>, vector<1x8x1xf32>
    %67 = vector.shape_cast %66 : vector<1x8x1xf32> to vector<8x1xf32>
    %68 = vector.shape_cast %65 : vector<8x1xf32> to vector<1x8x1xf32>
    tpu.vector_store %arg9[%c1_37, %c0_38, %c0_39], %68 {strides = array<i32>} : memref<4x8x1xf32, #tpu.memory_space<vmem>>, vector<1x8x1xf32>,
    %c0_40 = arith.constant 0 : index
    %c8 = arith.constant 8 : index
    %69 = vector.load %arg7[%c0_40, %c8] : memref<8x32xf32, #tpu.memory_space<vmem>>, vector<8x8xf32>
    %70 = vector.broadcast %56 : vector<8x1xf32> to vector<8x8xf32>
    %71 = arith.mulf %70, %69 : vector<8x8xf32>
    %72 = arith.truncf %59 : vector<8x8xf32> to vector<8x8xbf16>
    %73 = vector.extract_strided_slice %13 {offsets = [0, 8], sizes = [8, 8], strides = [1, 1]} : vector<8x32xbf16> to vector<8x8xbf16>
    %cst_41 = arith.constant dense<0.000000e+00> : vector<8x8xf32>
    %74 = tpu.matmul %72, %73, %cst_41 {dimension_numbers = #tpu.dot_dimension_numbers<[1], [0], [0], [1], [0, 0, 1, 1], [], []>} : vector<8x8xbf16>, vector<8x8xbf16>, vector<8x8xf32> -> vector<8x8xf32>
    %75 = arith.addf %71, %74 : vector<8x8xf32>
    %c0_42 = arith.constant 0 : index
    %c8_43 = arith.constant 8 : index
    %76 = vector.load %arg7[%c0_42, %c8_43] : memref<8x32xf32, #tpu.memory_space<vmem>>, vector<8x8xf32>
    tpu.vector_store %arg7[%c0_42, %c8_43], %75 {strides = array<i32>} : memref<8x32xf32, #tpu.memory_space<vmem>>, vector<8x8xf32>,
    %c1_44 = arith.constant 1 : index
    %c0_45 = arith.constant 0 : index
    %c0_46 = arith.constant 0 : index
    %77 = vector.load %arg8[%c1_44, %c0_45, %c0_46] : memref<4x8x1xf32, #tpu.memory_space<vmem>>, vector<1x8x1xf32>
    %78 = vector.shape_cast %77 : vector<1x8x1xf32> to vector<8x1xf32>
    %79 = vector.shape_cast %54 : vector<8x1xf32> to vector<1x8x1xf32>
    tpu.vector_store %arg8[%c1_44, %c0_45, %c0_46], %79 {strides = array<i32>} : memref<4x8x1xf32, #tpu.memory_space<vmem>>, vector<1x8x1xf32>,
    %80 = vector.extract_strided_slice %7 {offsets = [0, 16], sizes = [8, 8], strides = [1, 1]} : vector<8x32xbf16> to vector<8x8xbf16>
    %81 = vector.extract_strided_slice %10 {offsets = [0, 16], sizes = [8, 8], strides = [1, 1]} : vector<8x32xbf16> to vector<8x8xbf16>
    %cst_47 = arith.constant dense<0.000000e+00> : vector<8x8xf32>
    %82 = tpu.matmul %80, %81, %cst_47 {dimension_numbers = #tpu.dot_dimension_numbers<[1], [1], [0], [0], [0, 0, 1, 0], [], []>} : vector<8x8xbf16>, vector<8x8xbf16>, vector<8x8xf32> -> vector<8x8xf32>
    %c2 = arith.constant 2 : index
    %c0_48 = arith.constant 0 : index
    %c0_49 = arith.constant 0 : index
    %83 = vector.load %arg8[%c2, %c0_48, %c0_49] : memref<4x8x1xf32, #tpu.memory_space<vmem>>, vector<1x8x1xf32>
    %84 = vector.shape_cast %83 : vector<1x8x1xf32> to vector<8x1xf32>
    %cst_50 = arith.constant dense<0xFF800000> : vector<8xf32>
    %85 = vector.multi_reduction <maximumf>, %82, %cst_50 [1] : vector<8x8xf32> to vector<8xf32>
    %86 = vector.shape_cast %85 : vector<8xf32> to vector<8x1xf32>
    %87 = arith.maximumf %84, %86 : vector<8x1xf32>
    %88 = arith.subf %84, %87 : vector<8x1xf32>
    %89 = math.exp %88 : vector<8x1xf32>
    %90 = vector.broadcast %87 : vector<8x1xf32> to vector<8x8xf32>
    %91 = arith.subf %82, %90 : vector<8x8xf32>
    %92 = math.exp %91 : vector<8x8xf32>
    %c2_51 = arith.constant 2 : index
    %c0_52 = arith.constant 0 : index
    %c0_53 = arith.constant 0 : index
    %93 = vector.load %arg9[%c2_51, %c0_52, %c0_53] : memref<4x8x1xf32, #tpu.memory_space<vmem>>, vector<1x8x1xf32>
    %94 = vector.shape_cast %93 : vector<1x8x1xf32> to vector<8x1xf32>
    %95 = arith.mulf %89, %94 : vector<8x1xf32>
    %cst_54 = arith.constant dense<0.000000e+00> : vector<8xf32>
    %96 = vector.multi_reduction <add>, %92, %cst_54 [1] : vector<8x8xf32> to vector<8xf32>
    %97 = vector.shape_cast %96 : vector<8xf32> to vector<8x1xf32>
    %98 = arith.addf %95, %97 : vector<8x1xf32>
    %c2_55 = arith.constant 2 : index
    %c0_56 = arith.constant 0 : index
    %c0_57 = arith.constant 0 : index
    %99 = vector.load %arg9[%c2_55, %c0_56, %c0_57] : memref<4x8x1xf32, #tpu.memory_space<vmem>>, vector<1x8x1xf32>
    %100 = vector.shape_cast %99 : vector<1x8x1xf32> to vector<8x1xf32>
    %101 = vector.shape_cast %98 : vector<8x1xf32> to vector<1x8x1xf32>
    tpu.vector_store %arg9[%c2_55, %c0_56, %c0_57], %101 {strides = array<i32>} : memref<4x8x1xf32, #tpu.memory_space<vmem>>, vector<1x8x1xf32>,
    %c0_58 = arith.constant 0 : index
    %c16 = arith.constant 16 : index
    %102 = vector.load %arg7[%c0_58, %c16] : memref<8x32xf32, #tpu.memory_space<vmem>>, vector<8x8xf32>
    %103 = vector.broadcast %89 : vector<8x1xf32> to vector<8x8xf32>
    %104 = arith.mulf %103, %102 : vector<8x8xf32>
    %105 = arith.truncf %92 : vector<8x8xf32> to vector<8x8xbf16>
    %106 = vector.extract_strided_slice %13 {offsets = [0, 16], sizes = [8, 8], strides = [1, 1]} : vector<8x32xbf16> to vector<8x8xbf16>
    %cst_59 = arith.constant dense<0.000000e+00> : vector<8x8xf32>
    %107 = tpu.matmul %105, %106, %cst_59 {dimension_numbers = #tpu.dot_dimension_numbers<[1], [0], [0], [1], [0, 0, 1, 1], [], []>} : vector<8x8xbf16>, vector<8x8xbf16>, vector<8x8xf32> -> vector<8x8xf32>
    %108 = arith.addf %104, %107 : vector<8x8xf32>
    %c0_60 = arith.constant 0 : index
    %c16_61 = arith.constant 16 : index
    %109 = vector.load %arg7[%c0_60, %c16_61] : memref<8x32xf32, #tpu.memory_space<vmem>>, vector<8x8xf32>
    tpu.vector_store %arg7[%c0_60, %c16_61], %108 {strides = array<i32>} : memref<8x32xf32, #tpu.memory_space<vmem>>, vector<8x8xf32>,
    %c2_62 = arith.constant 2 : index
    %c0_63 = arith.constant 0 : index
    %c0_64 = arith.constant 0 : index
    %110 = vector.load %arg8[%c2_62, %c0_63, %c0_64] : memref<4x8x1xf32, #tpu.memory_space<vmem>>, vector<1x8x1xf32>
    %111 = vector.shape_cast %110 : vector<1x8x1xf32> to vector<8x1xf32>
    %112 = vector.shape_cast %87 : vector<8x1xf32> to vector<1x8x1xf32>
    tpu.vector_store %arg8[%c2_62, %c0_63, %c0_64], %112 {strides = array<i32>} : memref<4x8x1xf32, #tpu.memory_space<vmem>>, vector<1x8x1xf32>,
    %113 = vector.extract_strided_slice %7 {offsets = [0, 24], sizes = [8, 8], strides = [1, 1]} : vector<8x32xbf16> to vector<8x8xbf16>
    %114 = vector.extract_strided_slice %10 {offsets = [0, 24], sizes = [8, 8], strides = [1, 1]} : vector<8x32xbf16> to vector<8x8xbf16>
    %cst_65 = arith.constant dense<0.000000e+00> : vector<8x8xf32>
    %115 = tpu.matmul %113, %114, %cst_65 {dimension_numbers = #tpu.dot_dimension_numbers<[1], [1], [0], [0], [0, 0, 1, 0], [], []>} : vector<8x8xbf16>, vector<8x8xbf16>, vector<8x8xf32> -> vector<8x8xf32>
    %c3 = arith.constant 3 : index
    %c0_66 = arith.constant 0 : index
    %c0_67 = arith.constant 0 : index
    %116 = vector.load %arg8[%c3, %c0_66, %c0_67] : memref<4x8x1xf32, #tpu.memory_space<vmem>>, vector<1x8x1xf32>
    %117 = vector.shape_cast %116 : vector<1x8x1xf32> to vector<8x1xf32>
    %cst_68 = arith.constant dense<0xFF800000> : vector<8xf32>
    %118 = vector.multi_reduction <maximumf>, %115, %cst_68 [1] : vector<8x8xf32> to vector<8xf32>
    %119 = vector.shape_cast %118 : vector<8xf32> to vector<8x1xf32>
    %120 = arith.maximumf %117, %119 : vector<8x1xf32>
    %121 = arith.subf %117, %120 : vector<8x1xf32>
    %122 = math.exp %121 : vector<8x1xf32>
    %123 = vector.broadcast %120 : vector<8x1xf32> to vector<8x8xf32>
    %124 = arith.subf %115, %123 : vector<8x8xf32>
    %125 = math.exp %124 : vector<8x8xf32>
    %c3_69 = arith.constant 3 : index
    %c0_70 = arith.constant 0 : index
    %c0_71 = arith.constant 0 : index
    %126 = vector.load %arg9[%c3_69, %c0_70, %c0_71] : memref<4x8x1xf32, #tpu.memory_space<vmem>>, vector<1x8x1xf32>
    %127 = vector.shape_cast %126 : vector<1x8x1xf32> to vector<8x1xf32>
    %128 = arith.mulf %122, %127 : vector<8x1xf32>
    %cst_72 = arith.constant dense<0.000000e+00> : vector<8xf32>
    %129 = vector.multi_reduction <add>, %125, %cst_72 [1] : vector<8x8xf32> to vector<8xf32>
    %130 = vector.shape_cast %129 : vector<8xf32> to vector<8x1xf32>
    %131 = arith.addf %128, %130 : vector<8x1xf32>
    %c3_73 = arith.constant 3 : index
    %c0_74 = arith.constant 0 : index
    %c0_75 = arith.constant 0 : index
    %132 = vector.load %arg9[%c3_73, %c0_74, %c0_75] : memref<4x8x1xf32, #tpu.memory_space<vmem>>, vector<1x8x1xf32>
    %133 = vector.shape_cast %132 : vector<1x8x1xf32> to vector<8x1xf32>
    %134 = vector.shape_cast %131 : vector<8x1xf32> to vector<1x8x1xf32>
    tpu.vector_store %arg9[%c3_73, %c0_74, %c0_75], %134 {strides = array<i32>} : memref<4x8x1xf32, #tpu.memory_space<vmem>>, vector<1x8x1xf32>,
    %c0_76 = arith.constant 0 : index
    %c24 = arith.constant 24 : index
    %135 = vector.load %arg7[%c0_76, %c24] : memref<8x32xf32, #tpu.memory_space<vmem>>, vector<8x8xf32>
    %136 = vector.broadcast %122 : vector<8x1xf32> to vector<8x8xf32>
    %137 = arith.mulf %136, %135 : vector<8x8xf32>
    %138 = arith.truncf %125 : vector<8x8xf32> to vector<8x8xbf16>
    %139 = vector.extract_strided_slice %13 {offsets = [0, 24], sizes = [8, 8], strides = [1, 1]} : vector<8x32xbf16> to vector<8x8xbf16>
    %cst_77 = arith.constant dense<0.000000e+00> : vector<8x8xf32>
    %140 = tpu.matmul %138, %139, %cst_77 {dimension_numbers = #tpu.dot_dimension_numbers<[1], [0], [0], [1], [0, 0, 1, 1], [], []>} : vector<8x8xbf16>, vector<8x8xbf16>, vector<8x8xf32> -> vector<8x8xf32>
    %141 = arith.addf %137, %140 : vector<8x8xf32>
    %c0_78 = arith.constant 0 : index
    %c24_79 = arith.constant 24 : index
    %142 = vector.load %arg7[%c0_78, %c24_79] : memref<8x32xf32, #tpu.memory_space<vmem>>, vector<8x8xf32>
    tpu.vector_store %arg7[%c0_78, %c24_79], %141 {strides = array<i32>} : memref<8x32xf32, #tpu.memory_space<vmem>>, vector<8x8xf32>,
    %c3_80 = arith.constant 3 : index
    %c0_81 = arith.constant 0 : index
    %c0_82 = arith.constant 0 : index
    %143 = vector.load %arg8[%c3_80, %c0_81, %c0_82] : memref<4x8x1xf32, #tpu.memory_space<vmem>>, vector<1x8x1xf32>
    %144 = vector.shape_cast %143 : vector<1x8x1xf32> to vector<8x1xf32>
    %145 = vector.shape_cast %120 : vector<8x1xf32> to vector<1x8x1xf32>
    tpu.vector_store %arg8[%c3_80, %c0_81, %c0_82], %145 {strides = array<i32>} : memref<4x8x1xf32, #tpu.memory_space<vmem>>, vector<1x8x1xf32>,
    %c0_i32_83 = arith.constant 0 : i32
    %146 = arith.cmpi eq, %arg2, %c0_i32_83 : i32
    %147 = arith.extui %146 : i1 to i32
    %c0_i32_84 = arith.constant 0 : i32
    %148 = arith.cmpi ne, %147, %c0_i32_84 : i32
    scf.if %148 {
      %c0_85 = arith.constant 0 : index
      %c0_86 = arith.constant 0 : index
      %c0_87 = arith.constant 0 : index
      %149 = vector.load %arg9[%c0_85, %c0_86, %c0_87] : memref<4x8x1xf32, #tpu.memory_space<vmem>>, vector<1x8x1xf32>
      %150 = vector.shape_cast %149 : vector<1x8x1xf32> to vector<8x1xf32>
      %151 = tpu.reciprocal %150 {approx = true} : vector<8x1xf32> -> vector<8x1xf32>
      %c0_88 = arith.constant 0 : index
      %c0_89 = arith.constant 0 : index
      %152 = vector.load %arg7[%c0_88, %c0_89] : memref<8x32xf32, #tpu.memory_space<vmem>>, vector<8x8xf32>
      %153 = vector.broadcast %151 : vector<8x1xf32> to vector<8x8xf32>
      %154 = arith.mulf %152, %153 : vector<8x8xf32>
      %c0_90 = arith.constant 0 : index
      %c0_91 = arith.constant 0 : index
      %c0_92 = arith.constant 0 : index
      %155 = vector.load %arg6[%c0_90, %c0_91, %c0_92] : memref<1x8x32xf32, #tpu.memory_space<vmem>>, vector<1x8x8xf32>
      %156 = vector.shape_cast %155 : vector<1x8x8xf32> to vector<8x8xf32>
      %157 = vector.shape_cast %154 : vector<8x8xf32> to vector<1x8x8xf32>
      tpu.vector_store %arg6[%c0_90, %c0_91, %c0_92], %157 {strides = array<i32>} : memref<1x8x32xf32, #tpu.memory_space<vmem>>, vector<1x8x8xf32>,
      %c1_93 = arith.constant 1 : index
      %c0_94 = arith.constant 0 : index
      %c0_95 = arith.constant 0 : index
      %158 = vector.load %arg9[%c1_93, %c0_94, %c0_95] : memref<4x8x1xf32, #tpu.memory_space<vmem>>, vector<1x8x1xf32>
      %159 = vector.shape_cast %158 : vector<1x8x1xf32> to vector<8x1xf32>
      %160 = tpu.reciprocal %159 {approx = true} : vector<8x1xf32> -> vector<8x1xf32>
      %c0_96 = arith.constant 0 : index
      %c8_97 = arith.constant 8 : index
      %161 = vector.load %arg7[%c0_96, %c8_97] : memref<8x32xf32, #tpu.memory_space<vmem>>, vector<8x8xf32>
      %162 = vector.broadcast %160 : vector<8x1xf32> to vector<8x8xf32>
      %163 = arith.mulf %161, %162 : vector<8x8xf32>
      %c0_98 = arith.constant 0 : index
      %c0_99 = arith.constant 0 : index
      %c8_100 = arith.constant 8 : index
      %164 = vector.load %arg6[%c0_98, %c0_99, %c8_100] : memref<1x8x32xf32, #tpu.memory_space<vmem>>, vector<1x8x8xf32>
      %165 = vector.shape_cast %164 : vector<1x8x8xf32> to vector<8x8xf32>
      %166 = vector.shape_cast %163 : vector<8x8xf32> to vector<1x8x8xf32>
      tpu.vector_store %arg6[%c0_98, %c0_99, %c8_100], %166 {strides = array<i32>} : memref<1x8x32xf32, #tpu.memory_space<vmem>>, vector<1x8x8xf32>,
      %c2_101 = arith.constant 2 : index
      %c0_102 = arith.constant 0 : index
      %c0_103 = arith.constant 0 : index
      %167 = vector.load %arg9[%c2_101, %c0_102, %c0_103] : memref<4x8x1xf32, #tpu.memory_space<vmem>>, vector<1x8x1xf32>
      %168 = vector.shape_cast %167 : vector<1x8x1xf32> to vector<8x1xf32>
      %169 = tpu.reciprocal %168 {approx = true} : vector<8x1xf32> -> vector<8x1xf32>
      %c0_104 = arith.constant 0 : index
      %c16_105 = arith.constant 16 : index
      %170 = vector.load %arg7[%c0_104, %c16_105] : memref<8x32xf32, #tpu.memory_space<vmem>>, vector<8x8xf32>
      %171 = vector.broadcast %169 : vector<8x1xf32> to vector<8x8xf32>
      %172 = arith.mulf %170, %171 : vector<8x8xf32>
      %c0_106 = arith.constant 0 : index
      %c0_107 = arith.constant 0 : index
      %c16_108 = arith.constant 16 : index
      %173 = vector.load %arg6[%c0_106, %c0_107, %c16_108] : memref<1x8x32xf32, #tpu.memory_space<vmem>>, vector<1x8x8xf32>
      %174 = vector.shape_cast %173 : vector<1x8x8xf32> to vector<8x8xf32>
      %175 = vector.shape_cast %172 : vector<8x8xf32> to vector<1x8x8xf32>
      tpu.vector_store %arg6[%c0_106, %c0_107, %c16_108], %175 {strides = array<i32>} : memref<1x8x32xf32, #tpu.memory_space<vmem>>, vector<1x8x8xf32>,
      %c3_109 = arith.constant 3 : index
      %c0_110 = arith.constant 0 : index
      %c0_111 = arith.constant 0 : index
      %176 = vector.load %arg9[%c3_109, %c0_110, %c0_111] : memref<4x8x1xf32, #tpu.memory_space<vmem>>, vector<1x8x1xf32>
      %177 = vector.shape_cast %176 : vector<1x8x1xf32> to vector<8x1xf32>
      %178 = tpu.reciprocal %177 {approx = true} : vector<8x1xf32> -> vector<8x1xf32>
      %c0_112 = arith.constant 0 : index
      %c24_113 = arith.constant 24 : index
      %179 = vector.load %arg7[%c0_112, %c24_113] : memref<8x32xf32, #tpu.memory_space<vmem>>, vector<8x8xf32>
      %180 = vector.broadcast %178 : vector<8x1xf32> to vector<8x8xf32>
      %181 = arith.mulf %179, %180 : vector<8x8xf32>
      %c0_114 = arith.constant 0 : index
      %c0_115 = arith.constant 0 : index
      %c24_116 = arith.constant 24 : index
      %182 = vector.load %arg6[%c0_114, %c0_115, %c24_116] : memref<1x8x32xf32, #tpu.memory_space<vmem>>, vector<1x8x8xf32>
      %183 = vector.shape_cast %182 : vector<1x8x8xf32> to vector<8x8xf32>
      %184 = vector.shape_cast %181 : vector<8x8xf32> to vector<1x8x8xf32>
      tpu.vector_store %arg6[%c0_114, %c0_115, %c24_116], %184 {strides = array<i32>} : memref<1x8x32xf32, #tpu.memory_space<vmem>>, vector<1x8x8xf32>,
    } else {
    }
    return
  }
  func.func @transform_0(%arg0: i32, %arg1: i32, %arg2: i32) -> (i32, i32, i32) {
    %c0_i32 = arith.constant 0 : i32
    %c0_i32_0 = arith.constant 0 : i32
    return %arg0, %arg1, %c0_i32 : i32, i32, i32
  }
  func.func @transform_1(%arg0: i32, %arg1: i32, %arg2: i32) -> (i32, i32, i32) {
    %c0_i32 = arith.constant 0 : i32
    %c0_i32_0 = arith.constant 0 : i32
    return %arg0, %arg2, %c0_i32 : i32, i32, i32
  }
  func.func @transform_2(%arg0: i32, %arg1: i32, %arg2: i32) -> (i32, i32, i32) {
    %c0_i32 = arith.constant 0 : i32
    %c0_i32_0 = arith.constant 0 : i32
    return %arg0, %arg2, %c0_i32 : i32, i32, i32
  }
  func.func @transform_3(%arg0: i32, %arg1: i32, %arg2: i32) -> (i32, i32, i32) {
    %c0_i32 = arith.constant 0 : i32
    %c0_i32_0 = arith.constant 0 : i32
    return %arg0, %arg1, %c0_i32 : i32, i32, i32
  }
}

module attributes {stable_mosaic.version = 11 : i64} {
  func.func @_ln_linear_kernel(%arg0: i32, %arg1: i32, %arg2: i32, %arg3: memref<16x32xf32, #tpu.memory_space<vmem>>, %arg4: memref<16x1xf32, #tpu.memory_space<vmem>>, %arg5: memref<16x1xf32, #tpu.memory_space<vmem>>, %arg6: memref<1x32xf32, #tpu.memory_space<vmem>>, %arg7: memref<1x32xf32, #tpu.memory_space<vmem>>, %arg8: memref<32x96xbf16, #tpu.memory_space<vmem>>, %arg9: memref<1x96xf32, #tpu.memory_space<vmem>>, %arg10: memref<16x96xf32, #tpu.memory_space<vmem>>, %arg11: memref<16x96xf32, #tpu.memory_space<vmem>>) attributes {dimension_semantics = [#tpu.dimension_semantics<parallel>, #tpu.dimension_semantics<parallel>, #tpu.dimension_semantics<arbitrary>], iteration_bounds = array<i64: 1, 1, 1>, scalar_prefetch = 0 : i64, scratch_operands = 1 : i64, tpu.core_type = #tpu.core_type<tc>, window_params = [{transform_indices = @transform_0, window_bounds = array<i64: 16, 32>}, {transform_indices = @transform_1, window_bounds = array<i64: 16, 1>}, {transform_indices = @transform_2, window_bounds = array<i64: 16, 1>}, {transform_indices = @transform_3, window_bounds = array<i64: 1, 32>}, {transform_indices = @transform_4, window_bounds = array<i64: 1, 32>}, {transform_indices = @transform_5, window_bounds = array<i64: 32, 96>}, {transform_indices = @transform_6, window_bounds = array<i64: 1, 96>}, {transform_indices = @transform_7, window_bounds = array<i64: 16, 96>}]} {
    %c0_i32 = arith.constant 0 : i32
    %0 = arith.cmpi eq, %arg2, %c0_i32 : i32
    %1 = arith.extui %0 : i1 to i32
    %c0_i32_0 = arith.constant 0 : i32
    %2 = arith.cmpi ne, %1, %c0_i32_0 : i32
    scf.if %2 {
      %cst_18 = arith.constant 0.000000e+00 : f32
      %25 = vector.broadcast %cst_18 : f32 to vector<16x96xf32>
      %c0_19 = arith.constant 0 : index
      %c0_20 = arith.constant 0 : index
      %26 = vector.load %arg11[%c0_19, %c0_20] : memref<16x96xf32, #tpu.memory_space<vmem>>, vector<16x96xf32>
      tpu.vector_store %arg11[%c0_19, %c0_20], %25 {strides = array<i32>} : memref<16x96xf32, #tpu.memory_space<vmem>>, vector<16x96xf32>,
    } else {
    }
    %c0 = arith.constant 0 : index
    %c0_1 = arith.constant 0 : index
    %3 = vector.load %arg3[%c0, %c0_1] : memref<16x32xf32, #tpu.memory_space<vmem>>, vector<16x32xf32>
    %c0_2 = arith.constant 0 : index
    %c0_3 = arith.constant 0 : index
    %4 = vector.load %arg4[%c0_2, %c0_3] : memref<16x1xf32, #tpu.memory_space<vmem>>, vector<16x1xf32>
    %5 = vector.broadcast %4 : vector<16x1xf32> to vector<16x32xf32>
    %6 = arith.subf %3, %5 : vector<16x32xf32>
    %c0_4 = arith.constant 0 : index
    %c0_5 = arith.constant 0 : index
    %7 = vector.load %arg5[%c0_4, %c0_5] : memref<16x1xf32, #tpu.memory_space<vmem>>, vector<16x1xf32>
    %8 = vector.broadcast %7 : vector<16x1xf32> to vector<16x32xf32>
    %9 = arith.mulf %6, %8 : vector<16x32xf32>
    %c0_6 = arith.constant 0 : index
    %c0_7 = arith.constant 0 : index
    %10 = vector.load %arg6[%c0_6, %c0_7] : memref<1x32xf32, #tpu.memory_space<vmem>>, vector<1x32xf32>
    %11 = vector.broadcast %10 : vector<1x32xf32> to vector<16x32xf32>
    %12 = arith.mulf %9, %11 : vector<16x32xf32>
    %c0_8 = arith.constant 0 : index
    %c0_9 = arith.constant 0 : index
    %13 = vector.load %arg7[%c0_8, %c0_9] : memref<1x32xf32, #tpu.memory_space<vmem>>, vector<1x32xf32>
    %14 = vector.broadcast %13 : vector<1x32xf32> to vector<16x32xf32>
    %15 = arith.addf %12, %14 : vector<16x32xf32>
    %c0_10 = arith.constant 0 : index
    %c0_11 = arith.constant 0 : index
    %16 = vector.load %arg11[%c0_10, %c0_11] : memref<16x96xf32, #tpu.memory_space<vmem>>, vector<16x96xf32>
    %17 = arith.truncf %15 : vector<16x32xf32> to vector<16x32xbf16>
    %c0_12 = arith.constant 0 : index
    %c0_13 = arith.constant 0 : index
    %18 = vector.load %arg8[%c0_12, %c0_13] : memref<32x96xbf16, #tpu.memory_space<vmem>>, vector<32x96xbf16>
    %cst = arith.constant dense<0.000000e+00> : vector<16x96xf32>
    %19 = tpu.matmul %17, %18, %cst {dimension_numbers = #tpu.dot_dimension_numbers<[1], [0], [0], [1], [0, 0, 1, 1], [], []>} : vector<16x32xbf16>, vector<32x96xbf16>, vector<16x96xf32> -> vector<16x96xf32>
    %20 = arith.addf %16, %19 : vector<16x96xf32>
    %c0_14 = arith.constant 0 : index
    %c0_15 = arith.constant 0 : index
    %21 = vector.load %arg11[%c0_14, %c0_15] : memref<16x96xf32, #tpu.memory_space<vmem>>, vector<16x96xf32>
    tpu.vector_store %arg11[%c0_14, %c0_15], %20 {strides = array<i32>} : memref<16x96xf32, #tpu.memory_space<vmem>>, vector<16x96xf32>,
    %c0_i32_16 = arith.constant 0 : i32
    %22 = arith.cmpi eq, %arg2, %c0_i32_16 : i32
    %23 = arith.extui %22 : i1 to i32
    %c0_i32_17 = arith.constant 0 : i32
    %24 = arith.cmpi ne, %23, %c0_i32_17 : i32
    scf.if %24 {
      %c0_18 = arith.constant 0 : index
      %c0_19 = arith.constant 0 : index
      %25 = vector.load %arg11[%c0_18, %c0_19] : memref<16x96xf32, #tpu.memory_space<vmem>>, vector<16x96xf32>
      %c0_20 = arith.constant 0 : index
      %c0_21 = arith.constant 0 : index
      %26 = vector.load %arg9[%c0_20, %c0_21] : memref<1x96xf32, #tpu.memory_space<vmem>>, vector<1x96xf32>
      %27 = vector.broadcast %26 : vector<1x96xf32> to vector<16x96xf32>
      %28 = arith.addf %25, %27 : vector<16x96xf32>
      %c0_22 = arith.constant 0 : index
      %c0_23 = arith.constant 0 : index
      %29 = vector.load %arg10[%c0_22, %c0_23] : memref<16x96xf32, #tpu.memory_space<vmem>>, vector<16x96xf32>
      tpu.vector_store %arg10[%c0_22, %c0_23], %28 {strides = array<i32>} : memref<16x96xf32, #tpu.memory_space<vmem>>, vector<16x96xf32>,
    } else {
    }
    return
  }
  func.func @transform_0(%arg0: i32, %arg1: i32, %arg2: i32) -> (i32, i32) {
    %c0_i32 = arith.constant 0 : i32
    return %arg0, %arg2 : i32, i32
  }
  func.func @transform_1(%arg0: i32, %arg1: i32, %arg2: i32) -> (i32, i32) {
    %c0_i32 = arith.constant 0 : i32
    %c0_i32_0 = arith.constant 0 : i32
    return %arg0, %c0_i32 : i32, i32
  }
  func.func @transform_2(%arg0: i32, %arg1: i32, %arg2: i32) -> (i32, i32) {
    %c0_i32 = arith.constant 0 : i32
    %c0_i32_0 = arith.constant 0 : i32
    return %arg0, %c0_i32 : i32, i32
  }
  func.func @transform_3(%arg0: i32, %arg1: i32, %arg2: i32) -> (i32, i32) {
    %c0_i32 = arith.constant 0 : i32
    %c0_i32_0 = arith.constant 0 : i32
    return %c0_i32, %arg2 : i32, i32
  }
  func.func @transform_4(%arg0: i32, %arg1: i32, %arg2: i32) -> (i32, i32) {
    %c0_i32 = arith.constant 0 : i32
    %c0_i32_0 = arith.constant 0 : i32
    return %c0_i32, %arg2 : i32, i32
  }
  func.func @transform_5(%arg0: i32, %arg1: i32, %arg2: i32) -> (i32, i32) {
    %c0_i32 = arith.constant 0 : i32
    return %arg2, %arg1 : i32, i32
  }
  func.func @transform_6(%arg0: i32, %arg1: i32, %arg2: i32) -> (i32, i32) {
    %c0_i32 = arith.constant 0 : i32
    %c0_i32_0 = arith.constant 0 : i32
    return %c0_i32, %arg1 : i32, i32
  }
  func.func @transform_7(%arg0: i32, %arg1: i32, %arg2: i32) -> (i32, i32) {
    %c0_i32 = arith.constant 0 : i32
    return %arg0, %arg1 : i32, i32
  }
}

module attributes {stable_mosaic.version = 11 : i64} {
  func.func @_linear_residual_kernel(%arg0: i32, %arg1: i32, %arg2: i32, %arg3: memref<16x32xf32, #tpu.memory_space<vmem>>, %arg4: memref<32x32xbf16, #tpu.memory_space<vmem>>, %arg5: memref<1x32xf32, #tpu.memory_space<vmem>>, %arg6: memref<16x32xf32, #tpu.memory_space<vmem>>, %arg7: memref<16x32xf32, #tpu.memory_space<vmem>>, %arg8: memref<16x32xf32, #tpu.memory_space<vmem>>) attributes {dimension_semantics = [#tpu.dimension_semantics<parallel>, #tpu.dimension_semantics<parallel>, #tpu.dimension_semantics<arbitrary>], iteration_bounds = array<i64: 1, 1, 1>, scalar_prefetch = 0 : i64, scratch_operands = 1 : i64, tpu.core_type = #tpu.core_type<tc>, window_params = [{transform_indices = @transform_0, window_bounds = array<i64: 16, 32>}, {transform_indices = @transform_1, window_bounds = array<i64: 32, 32>}, {transform_indices = @transform_2, window_bounds = array<i64: 1, 32>}, {transform_indices = @transform_3, window_bounds = array<i64: 16, 32>}, {transform_indices = @transform_4, window_bounds = array<i64: 16, 32>}]} {
    %c0_i32 = arith.constant 0 : i32
    %0 = arith.cmpi eq, %arg2, %c0_i32 : i32
    %1 = arith.extui %0 : i1 to i32
    %c0_i32_0 = arith.constant 0 : i32
    %2 = arith.cmpi ne, %1, %c0_i32_0 : i32
    scf.if %2 {
      %cst_10 = arith.constant 0.000000e+00 : f32
      %13 = vector.broadcast %cst_10 : f32 to vector<16x32xf32>
      %c0_11 = arith.constant 0 : index
      %c0_12 = arith.constant 0 : index
      %14 = vector.load %arg8[%c0_11, %c0_12] : memref<16x32xf32, #tpu.memory_space<vmem>>, vector<16x32xf32>
      tpu.vector_store %arg8[%c0_11, %c0_12], %13 {strides = array<i32>} : memref<16x32xf32, #tpu.memory_space<vmem>>, vector<16x32xf32>,
    } else {
    }
    %c0 = arith.constant 0 : index
    %c0_1 = arith.constant 0 : index
    %3 = vector.load %arg8[%c0, %c0_1] : memref<16x32xf32, #tpu.memory_space<vmem>>, vector<16x32xf32>
    %c0_2 = arith.constant 0 : index
    %c0_3 = arith.constant 0 : index
    %4 = vector.load %arg3[%c0_2, %c0_3] : memref<16x32xf32, #tpu.memory_space<vmem>>, vector<16x32xf32>
    %5 = arith.truncf %4 : vector<16x32xf32> to vector<16x32xbf16>
    %c0_4 = arith.constant 0 : index
    %c0_5 = arith.constant 0 : index
    %6 = vector.load %arg4[%c0_4, %c0_5] : memref<32x32xbf16, #tpu.memory_space<vmem>>, vector<32x32xbf16>
    %cst = arith.constant dense<0.000000e+00> : vector<16x32xf32>
    %7 = tpu.matmul %5, %6, %cst {dimension_numbers = #tpu.dot_dimension_numbers<[1], [0], [0], [1], [0, 0, 1, 1], [], []>} : vector<16x32xbf16>, vector<32x32xbf16>, vector<16x32xf32> -> vector<16x32xf32>
    %8 = arith.addf %3, %7 : vector<16x32xf32>
    %c0_6 = arith.constant 0 : index
    %c0_7 = arith.constant 0 : index
    %9 = vector.load %arg8[%c0_6, %c0_7] : memref<16x32xf32, #tpu.memory_space<vmem>>, vector<16x32xf32>
    tpu.vector_store %arg8[%c0_6, %c0_7], %8 {strides = array<i32>} : memref<16x32xf32, #tpu.memory_space<vmem>>, vector<16x32xf32>,
    %c0_i32_8 = arith.constant 0 : i32
    %10 = arith.cmpi eq, %arg2, %c0_i32_8 : i32
    %11 = arith.extui %10 : i1 to i32
    %c0_i32_9 = arith.constant 0 : i32
    %12 = arith.cmpi ne, %11, %c0_i32_9 : i32
    scf.if %12 {
      %c0_10 = arith.constant 0 : index
      %c0_11 = arith.constant 0 : index
      %13 = vector.load %arg8[%c0_10, %c0_11] : memref<16x32xf32, #tpu.memory_space<vmem>>, vector<16x32xf32>
      %c0_12 = arith.constant 0 : index
      %c0_13 = arith.constant 0 : index
      %14 = vector.load %arg5[%c0_12, %c0_13] : memref<1x32xf32, #tpu.memory_space<vmem>>, vector<1x32xf32>
      %15 = vector.broadcast %14 : vector<1x32xf32> to vector<16x32xf32>
      %16 = arith.addf %13, %15 : vector<16x32xf32>
      %c0_14 = arith.constant 0 : index
      %c0_15 = arith.constant 0 : index
      %17 = vector.load %arg6[%c0_14, %c0_15] : memref<16x32xf32, #tpu.memory_space<vmem>>, vector<16x32xf32>
      %18 = arith.addf %16, %17 : vector<16x32xf32>
      %c0_16 = arith.constant 0 : index
      %c0_17 = arith.constant 0 : index
      %19 = vector.load %arg7[%c0_16, %c0_17] : memref<16x32xf32, #tpu.memory_space<vmem>>, vector<16x32xf32>
      tpu.vector_store %arg7[%c0_16, %c0_17], %18 {strides = array<i32>} : memref<16x32xf32, #tpu.memory_space<vmem>>, vector<16x32xf32>,
    } else {
    }
    return
  }
  func.func @transform_0(%arg0: i32, %arg1: i32, %arg2: i32) -> (i32, i32) {
    %c0_i32 = arith.constant 0 : i32
    return %arg0, %arg2 : i32, i32
  }
  func.func @transform_1(%arg0: i32, %arg1: i32, %arg2: i32) -> (i32, i32) {
    %c0_i32 = arith.constant 0 : i32
    return %arg2, %arg1 : i32, i32
  }
  func.func @transform_2(%arg0: i32, %arg1: i32, %arg2: i32) -> (i32, i32) {
    %c0_i32 = arith.constant 0 : i32
    %c0_i32_0 = arith.constant 0 : i32
    return %c0_i32, %arg1 : i32, i32
  }
  func.func @transform_3(%arg0: i32, %arg1: i32, %arg2: i32) -> (i32, i32) {
    %c0_i32 = arith.constant 0 : i32
    return %arg0, %arg1 : i32, i32
  }
  func.func @transform_4(%arg0: i32, %arg1: i32, %arg2: i32) -> (i32, i32) {
    %c0_i32 = arith.constant 0 : i32
    return %arg0, %arg1 : i32, i32
  }
}

module attributes {stable_mosaic.version = 11 : i64} {
  func.func @_ln_linear_kernel(%arg0: i32, %arg1: i32, %arg2: i32, %arg3: memref<16x32xf32, #tpu.memory_space<vmem>>, %arg4: memref<16x1xf32, #tpu.memory_space<vmem>>, %arg5: memref<16x1xf32, #tpu.memory_space<vmem>>, %arg6: memref<1x32xf32, #tpu.memory_space<vmem>>, %arg7: memref<1x32xf32, #tpu.memory_space<vmem>>, %arg8: memref<32x32xbf16, #tpu.memory_space<vmem>>, %arg9: memref<1x32xf32, #tpu.memory_space<vmem>>, %arg10: memref<16x32xf32, #tpu.memory_space<vmem>>, %arg11: memref<16x32xf32, #tpu.memory_space<vmem>>) attributes {dimension_semantics = [#tpu.dimension_semantics<parallel>, #tpu.dimension_semantics<parallel>, #tpu.dimension_semantics<arbitrary>], iteration_bounds = array<i64: 1, 1, 1>, scalar_prefetch = 0 : i64, scratch_operands = 1 : i64, tpu.core_type = #tpu.core_type<tc>, window_params = [{transform_indices = @transform_0, window_bounds = array<i64: 16, 32>}, {transform_indices = @transform_1, window_bounds = array<i64: 16, 1>}, {transform_indices = @transform_2, window_bounds = array<i64: 16, 1>}, {transform_indices = @transform_3, window_bounds = array<i64: 1, 32>}, {transform_indices = @transform_4, window_bounds = array<i64: 1, 32>}, {transform_indices = @transform_5, window_bounds = array<i64: 32, 32>}, {transform_indices = @transform_6, window_bounds = array<i64: 1, 32>}, {transform_indices = @transform_7, window_bounds = array<i64: 16, 32>}]} {
    %c0_i32 = arith.constant 0 : i32
    %0 = arith.cmpi eq, %arg2, %c0_i32 : i32
    %1 = arith.extui %0 : i1 to i32
    %c0_i32_0 = arith.constant 0 : i32
    %2 = arith.cmpi ne, %1, %c0_i32_0 : i32
    scf.if %2 {
      %cst_18 = arith.constant 0.000000e+00 : f32
      %25 = vector.broadcast %cst_18 : f32 to vector<16x32xf32>
      %c0_19 = arith.constant 0 : index
      %c0_20 = arith.constant 0 : index
      %26 = vector.load %arg11[%c0_19, %c0_20] : memref<16x32xf32, #tpu.memory_space<vmem>>, vector<16x32xf32>
      tpu.vector_store %arg11[%c0_19, %c0_20], %25 {strides = array<i32>} : memref<16x32xf32, #tpu.memory_space<vmem>>, vector<16x32xf32>,
    } else {
    }
    %c0 = arith.constant 0 : index
    %c0_1 = arith.constant 0 : index
    %3 = vector.load %arg3[%c0, %c0_1] : memref<16x32xf32, #tpu.memory_space<vmem>>, vector<16x32xf32>
    %c0_2 = arith.constant 0 : index
    %c0_3 = arith.constant 0 : index
    %4 = vector.load %arg4[%c0_2, %c0_3] : memref<16x1xf32, #tpu.memory_space<vmem>>, vector<16x1xf32>
    %5 = vector.broadcast %4 : vector<16x1xf32> to vector<16x32xf32>
    %6 = arith.subf %3, %5 : vector<16x32xf32>
    %c0_4 = arith.constant 0 : index
    %c0_5 = arith.constant 0 : index
    %7 = vector.load %arg5[%c0_4, %c0_5] : memref<16x1xf32, #tpu.memory_space<vmem>>, vector<16x1xf32>
    %8 = vector.broadcast %7 : vector<16x1xf32> to vector<16x32xf32>
    %9 = arith.mulf %6, %8 : vector<16x32xf32>
    %c0_6 = arith.constant 0 : index
    %c0_7 = arith.constant 0 : index
    %10 = vector.load %arg6[%c0_6, %c0_7] : memref<1x32xf32, #tpu.memory_space<vmem>>, vector<1x32xf32>
    %11 = vector.broadcast %10 : vector<1x32xf32> to vector<16x32xf32>
    %12 = arith.mulf %9, %11 : vector<16x32xf32>
    %c0_8 = arith.constant 0 : index
    %c0_9 = arith.constant 0 : index
    %13 = vector.load %arg7[%c0_8, %c0_9] : memref<1x32xf32, #tpu.memory_space<vmem>>, vector<1x32xf32>
    %14 = vector.broadcast %13 : vector<1x32xf32> to vector<16x32xf32>
    %15 = arith.addf %12, %14 : vector<16x32xf32>
    %c0_10 = arith.constant 0 : index
    %c0_11 = arith.constant 0 : index
    %16 = vector.load %arg11[%c0_10, %c0_11] : memref<16x32xf32, #tpu.memory_space<vmem>>, vector<16x32xf32>
    %17 = arith.truncf %15 : vector<16x32xf32> to vector<16x32xbf16>
    %c0_12 = arith.constant 0 : index
    %c0_13 = arith.constant 0 : index
    %18 = vector.load %arg8[%c0_12, %c0_13] : memref<32x32xbf16, #tpu.memory_space<vmem>>, vector<32x32xbf16>
    %cst = arith.constant dense<0.000000e+00> : vector<16x32xf32>
    %19 = tpu.matmul %17, %18, %cst {dimension_numbers = #tpu.dot_dimension_numbers<[1], [0], [0], [1], [0, 0, 1, 1], [], []>} : vector<16x32xbf16>, vector<32x32xbf16>, vector<16x32xf32> -> vector<16x32xf32>
    %20 = arith.addf %16, %19 : vector<16x32xf32>
    %c0_14 = arith.constant 0 : index
    %c0_15 = arith.constant 0 : index
    %21 = vector.load %arg11[%c0_14, %c0_15] : memref<16x32xf32, #tpu.memory_space<vmem>>, vector<16x32xf32>
    tpu.vector_store %arg11[%c0_14, %c0_15], %20 {strides = array<i32>} : memref<16x32xf32, #tpu.memory_space<vmem>>, vector<16x32xf32>,
    %c0_i32_16 = arith.constant 0 : i32
    %22 = arith.cmpi eq, %arg2, %c0_i32_16 : i32
    %23 = arith.extui %22 : i1 to i32
    %c0_i32_17 = arith.constant 0 : i32
    %24 = arith.cmpi ne, %23, %c0_i32_17 : i32
    scf.if %24 {
      %c0_18 = arith.constant 0 : index
      %c0_19 = arith.constant 0 : index
      %25 = vector.load %arg11[%c0_18, %c0_19] : memref<16x32xf32, #tpu.memory_space<vmem>>, vector<16x32xf32>
      %c0_20 = arith.constant 0 : index
      %c0_21 = arith.constant 0 : index
      %26 = vector.load %arg9[%c0_20, %c0_21] : memref<1x32xf32, #tpu.memory_space<vmem>>, vector<1x32xf32>
      %27 = vector.broadcast %26 : vector<1x32xf32> to vector<16x32xf32>
      %28 = arith.addf %25, %27 : vector<16x32xf32>
      %c0_22 = arith.constant 0 : index
      %c0_23 = arith.constant 0 : index
      %29 = vector.load %arg10[%c0_22, %c0_23] : memref<16x32xf32, #tpu.memory_space<vmem>>, vector<16x32xf32>
      tpu.vector_store %arg10[%c0_22, %c0_23], %28 {strides = array<i32>} : memref<16x32xf32, #tpu.memory_space<vmem>>, vector<16x32xf32>,
    } else {
    }
    return
  }
  func.func @transform_0(%arg0: i32, %arg1: i32, %arg2: i32) -> (i32, i32) {
    %c0_i32 = arith.constant 0 : i32
    return %arg0, %arg2 : i32, i32
  }
  func.func @transform_1(%arg0: i32, %arg1: i32, %arg2: i32) -> (i32, i32) {
    %c0_i32 = arith.constant 0 : i32
    %c0_i32_0 = arith.constant 0 : i32
    return %arg0, %c0_i32 : i32, i32
  }
  func.func @transform_2(%arg0: i32, %arg1: i32, %arg2: i32) -> (i32, i32) {
    %c0_i32 = arith.constant 0 : i32
    %c0_i32_0 = arith.constant 0 : i32
    return %arg0, %c0_i32 : i32, i32
  }
  func.func @transform_3(%arg0: i32, %arg1: i32, %arg2: i32) -> (i32, i32) {
    %c0_i32 = arith.constant 0 : i32
    %c0_i32_0 = arith.constant 0 : i32
    return %c0_i32, %arg2 : i32, i32
  }
  func.func @transform_4(%arg0: i32, %arg1: i32, %arg2: i32) -> (i32, i32) {
    %c0_i32 = arith.constant 0 : i32
    %c0_i32_0 = arith.constant 0 : i32
    return %c0_i32, %arg2 : i32, i32
  }
  func.func @transform_5(%arg0: i32, %arg1: i32, %arg2: i32) -> (i32, i32) {
    %c0_i32 = arith.constant 0 : i32
    return %arg2, %arg1 : i32, i32
  }
  func.func @transform_6(%arg0: i32, %arg1: i32, %arg2: i32) -> (i32, i32) {
    %c0_i32 = arith.constant 0 : i32
    %c0_i32_0 = arith.constant 0 : i32
    return %c0_i32, %arg1 : i32, i32
  }
  func.func @transform_7(%arg0: i32, %arg1: i32, %arg2: i32) -> (i32, i32) {
    %c0_i32 = arith.constant 0 : i32
    return %arg0, %arg1 : i32, i32
  }
}

module attributes {stable_mosaic.version = 11 : i64} {
  func.func @_linear_kernel(%arg0: i32, %arg1: i32, %arg2: i32, %arg3: memref<24x32xf32, #tpu.memory_space<vmem>>, %arg4: memref<32x64xbf16, #tpu.memory_space<vmem>>, %arg5: memref<1x64xf32, #tpu.memory_space<vmem>>, %arg6: memref<24x64xf32, #tpu.memory_space<vmem>>, %arg7: memref<24x64xf32, #tpu.memory_space<vmem>>) attributes {dimension_semantics = [#tpu.dimension_semantics<parallel>, #tpu.dimension_semantics<parallel>, #tpu.dimension_semantics<arbitrary>], iteration_bounds = array<i64: 1, 1, 1>, scalar_prefetch = 0 : i64, scratch_operands = 1 : i64, tpu.core_type = #tpu.core_type<tc>, window_params = [{transform_indices = @transform_0, window_bounds = array<i64: 24, 32>}, {transform_indices = @transform_1, window_bounds = array<i64: 32, 64>}, {transform_indices = @transform_2, window_bounds = array<i64: 1, 64>}, {transform_indices = @transform_3, window_bounds = array<i64: 24, 64>}]} {
    %c0_i32 = arith.constant 0 : i32
    %0 = arith.cmpi eq, %arg2, %c0_i32 : i32
    %1 = arith.extui %0 : i1 to i32
    %c0_i32_0 = arith.constant 0 : i32
    %2 = arith.cmpi ne, %1, %c0_i32_0 : i32
    scf.if %2 {
      %cst_10 = arith.constant 0.000000e+00 : f32
      %13 = vector.broadcast %cst_10 : f32 to vector<24x64xf32>
      %c0_11 = arith.constant 0 : index
      %c0_12 = arith.constant 0 : index
      %14 = vector.load %arg7[%c0_11, %c0_12] : memref<24x64xf32, #tpu.memory_space<vmem>>, vector<24x64xf32>
      tpu.vector_store %arg7[%c0_11, %c0_12], %13 {strides = array<i32>} : memref<24x64xf32, #tpu.memory_space<vmem>>, vector<24x64xf32>,
    } else {
    }
    %c0 = arith.constant 0 : index
    %c0_1 = arith.constant 0 : index
    %3 = vector.load %arg7[%c0, %c0_1] : memref<24x64xf32, #tpu.memory_space<vmem>>, vector<24x64xf32>
    %c0_2 = arith.constant 0 : index
    %c0_3 = arith.constant 0 : index
    %4 = vector.load %arg3[%c0_2, %c0_3] : memref<24x32xf32, #tpu.memory_space<vmem>>, vector<24x32xf32>
    %5 = arith.truncf %4 : vector<24x32xf32> to vector<24x32xbf16>
    %c0_4 = arith.constant 0 : index
    %c0_5 = arith.constant 0 : index
    %6 = vector.load %arg4[%c0_4, %c0_5] : memref<32x64xbf16, #tpu.memory_space<vmem>>, vector<32x64xbf16>
    %cst = arith.constant dense<0.000000e+00> : vector<24x64xf32>
    %7 = tpu.matmul %5, %6, %cst {dimension_numbers = #tpu.dot_dimension_numbers<[1], [0], [0], [1], [0, 0, 1, 1], [], []>} : vector<24x32xbf16>, vector<32x64xbf16>, vector<24x64xf32> -> vector<24x64xf32>
    %8 = arith.addf %3, %7 : vector<24x64xf32>
    %c0_6 = arith.constant 0 : index
    %c0_7 = arith.constant 0 : index
    %9 = vector.load %arg7[%c0_6, %c0_7] : memref<24x64xf32, #tpu.memory_space<vmem>>, vector<24x64xf32>
    tpu.vector_store %arg7[%c0_6, %c0_7], %8 {strides = array<i32>} : memref<24x64xf32, #tpu.memory_space<vmem>>, vector<24x64xf32>,
    %c0_i32_8 = arith.constant 0 : i32
    %10 = arith.cmpi eq, %arg2, %c0_i32_8 : i32
    %11 = arith.extui %10 : i1 to i32
    %c0_i32_9 = arith.constant 0 : i32
    %12 = arith.cmpi ne, %11, %c0_i32_9 : i32
    scf.if %12 {
      %c0_10 = arith.constant 0 : index
      %c0_11 = arith.constant 0 : index
      %13 = vector.load %arg7[%c0_10, %c0_11] : memref<24x64xf32, #tpu.memory_space<vmem>>, vector<24x64xf32>
      %c0_12 = arith.constant 0 : index
      %c0_13 = arith.constant 0 : index
      %14 = vector.load %arg5[%c0_12, %c0_13] : memref<1x64xf32, #tpu.memory_space<vmem>>, vector<1x64xf32>
      %15 = vector.broadcast %14 : vector<1x64xf32> to vector<24x64xf32>
      %16 = arith.addf %13, %15 : vector<24x64xf32>
      %c0_14 = arith.constant 0 : index
      %c0_15 = arith.constant 0 : index
      %17 = vector.load %arg6[%c0_14, %c0_15] : memref<24x64xf32, #tpu.memory_space<vmem>>, vector<24x64xf32>
      tpu.vector_store %arg6[%c0_14, %c0_15], %16 {strides = array<i32>} : memref<24x64xf32, #tpu.memory_space<vmem>>, vector<24x64xf32>,
    } else {
    }
    return
  }
  func.func @transform_0(%arg0: i32, %arg1: i32, %arg2: i32) -> (i32, i32) {
    %c0_i32 = arith.constant 0 : i32
    return %arg0, %arg2 : i32, i32
  }
  func.func @transform_1(%arg0: i32, %arg1: i32, %arg2: i32) -> (i32, i32) {
    %c0_i32 = arith.constant 0 : i32
    return %arg2, %arg1 : i32, i32
  }
  func.func @transform_2(%arg0: i32, %arg1: i32, %arg2: i32) -> (i32, i32) {
    %c0_i32 = arith.constant 0 : i32
    %c0_i32_0 = arith.constant 0 : i32
    return %c0_i32, %arg1 : i32, i32
  }
  func.func @transform_3(%arg0: i32, %arg1: i32, %arg2: i32) -> (i32, i32) {
    %c0_i32 = arith.constant 0 : i32
    return %arg0, %arg1 : i32, i32
  }
}

module attributes {stable_mosaic.version = 11 : i64} {
  func.func @_ln_linear_kernel(%arg0: i32, %arg1: i32, %arg2: i32, %arg3: memref<16x32xf32, #tpu.memory_space<vmem>>, %arg4: memref<16x1xf32, #tpu.memory_space<vmem>>, %arg5: memref<16x1xf32, #tpu.memory_space<vmem>>, %arg6: memref<1x32xf32, #tpu.memory_space<vmem>>, %arg7: memref<1x32xf32, #tpu.memory_space<vmem>>, %arg8: memref<32x128xbf16, #tpu.memory_space<vmem>>, %arg9: memref<1x128xf32, #tpu.memory_space<vmem>>, %arg10: memref<16x128xf32, #tpu.memory_space<vmem>>, %arg11: memref<16x128xf32, #tpu.memory_space<vmem>>) attributes {dimension_semantics = [#tpu.dimension_semantics<parallel>, #tpu.dimension_semantics<parallel>, #tpu.dimension_semantics<arbitrary>], iteration_bounds = array<i64: 1, 1, 1>, scalar_prefetch = 0 : i64, scratch_operands = 1 : i64, tpu.core_type = #tpu.core_type<tc>, window_params = [{transform_indices = @transform_0, window_bounds = array<i64: 16, 32>}, {transform_indices = @transform_1, window_bounds = array<i64: 16, 1>}, {transform_indices = @transform_2, window_bounds = array<i64: 16, 1>}, {transform_indices = @transform_3, window_bounds = array<i64: 1, 32>}, {transform_indices = @transform_4, window_bounds = array<i64: 1, 32>}, {transform_indices = @transform_5, window_bounds = array<i64: 32, 128>}, {transform_indices = @transform_6, window_bounds = array<i64: 1, 128>}, {transform_indices = @transform_7, window_bounds = array<i64: 16, 128>}]} {
    %c0_i32 = arith.constant 0 : i32
    %0 = arith.cmpi eq, %arg2, %c0_i32 : i32
    %1 = arith.extui %0 : i1 to i32
    %c0_i32_0 = arith.constant 0 : i32
    %2 = arith.cmpi ne, %1, %c0_i32_0 : i32
    scf.if %2 {
      %cst_18 = arith.constant 0.000000e+00 : f32
      %25 = vector.broadcast %cst_18 : f32 to vector<16x128xf32>
      %c0_19 = arith.constant 0 : index
      %c0_20 = arith.constant 0 : index
      %26 = vector.load %arg11[%c0_19, %c0_20] : memref<16x128xf32, #tpu.memory_space<vmem>>, vector<16x128xf32>
      tpu.vector_store %arg11[%c0_19, %c0_20], %25 {strides = array<i32>} : memref<16x128xf32, #tpu.memory_space<vmem>>, vector<16x128xf32>,
    } else {
    }
    %c0 = arith.constant 0 : index
    %c0_1 = arith.constant 0 : index
    %3 = vector.load %arg3[%c0, %c0_1] : memref<16x32xf32, #tpu.memory_space<vmem>>, vector<16x32xf32>
    %c0_2 = arith.constant 0 : index
    %c0_3 = arith.constant 0 : index
    %4 = vector.load %arg4[%c0_2, %c0_3] : memref<16x1xf32, #tpu.memory_space<vmem>>, vector<16x1xf32>
    %5 = vector.broadcast %4 : vector<16x1xf32> to vector<16x32xf32>
    %6 = arith.subf %3, %5 : vector<16x32xf32>
    %c0_4 = arith.constant 0 : index
    %c0_5 = arith.constant 0 : index
    %7 = vector.load %arg5[%c0_4, %c0_5] : memref<16x1xf32, #tpu.memory_space<vmem>>, vector<16x1xf32>
    %8 = vector.broadcast %7 : vector<16x1xf32> to vector<16x32xf32>
    %9 = arith.mulf %6, %8 : vector<16x32xf32>
    %c0_6 = arith.constant 0 : index
    %c0_7 = arith.constant 0 : index
    %10 = vector.load %arg6[%c0_6, %c0_7] : memref<1x32xf32, #tpu.memory_space<vmem>>, vector<1x32xf32>
    %11 = vector.broadcast %10 : vector<1x32xf32> to vector<16x32xf32>
    %12 = arith.mulf %9, %11 : vector<16x32xf32>
    %c0_8 = arith.constant 0 : index
    %c0_9 = arith.constant 0 : index
    %13 = vector.load %arg7[%c0_8, %c0_9] : memref<1x32xf32, #tpu.memory_space<vmem>>, vector<1x32xf32>
    %14 = vector.broadcast %13 : vector<1x32xf32> to vector<16x32xf32>
    %15 = arith.addf %12, %14 : vector<16x32xf32>
    %c0_10 = arith.constant 0 : index
    %c0_11 = arith.constant 0 : index
    %16 = vector.load %arg11[%c0_10, %c0_11] : memref<16x128xf32, #tpu.memory_space<vmem>>, vector<16x128xf32>
    %17 = arith.truncf %15 : vector<16x32xf32> to vector<16x32xbf16>
    %c0_12 = arith.constant 0 : index
    %c0_13 = arith.constant 0 : index
    %18 = vector.load %arg8[%c0_12, %c0_13] : memref<32x128xbf16, #tpu.memory_space<vmem>>, vector<32x128xbf16>
    %cst = arith.constant dense<0.000000e+00> : vector<16x128xf32>
    %19 = tpu.matmul %17, %18, %cst {dimension_numbers = #tpu.dot_dimension_numbers<[1], [0], [0], [1], [0, 0, 1, 1], [], []>} : vector<16x32xbf16>, vector<32x128xbf16>, vector<16x128xf32> -> vector<16x128xf32>
    %20 = arith.addf %16, %19 : vector<16x128xf32>
    %c0_14 = arith.constant 0 : index
    %c0_15 = arith.constant 0 : index
    %21 = vector.load %arg11[%c0_14, %c0_15] : memref<16x128xf32, #tpu.memory_space<vmem>>, vector<16x128xf32>
    tpu.vector_store %arg11[%c0_14, %c0_15], %20 {strides = array<i32>} : memref<16x128xf32, #tpu.memory_space<vmem>>, vector<16x128xf32>,
    %c0_i32_16 = arith.constant 0 : i32
    %22 = arith.cmpi eq, %arg2, %c0_i32_16 : i32
    %23 = arith.extui %22 : i1 to i32
    %c0_i32_17 = arith.constant 0 : i32
    %24 = arith.cmpi ne, %23, %c0_i32_17 : i32
    scf.if %24 {
      %c0_18 = arith.constant 0 : index
      %c0_19 = arith.constant 0 : index
      %25 = vector.load %arg11[%c0_18, %c0_19] : memref<16x128xf32, #tpu.memory_space<vmem>>, vector<16x128xf32>
      %c0_20 = arith.constant 0 : index
      %c0_21 = arith.constant 0 : index
      %26 = vector.load %arg9[%c0_20, %c0_21] : memref<1x128xf32, #tpu.memory_space<vmem>>, vector<1x128xf32>
      %27 = vector.broadcast %26 : vector<1x128xf32> to vector<16x128xf32>
      %28 = arith.addf %25, %27 : vector<16x128xf32>
      %cst_22 = arith.constant 5.000000e-01 : f32
      %29 = vector.broadcast %cst_22 : f32 to vector<16x128xf32>
      %30 = arith.mulf %29, %28 : vector<16x128xf32>
      %cst_23 = arith.constant 0.707106769 : f32
      %31 = vector.broadcast %cst_23 : f32 to vector<16x128xf32>
      %32 = arith.mulf %28, %31 : vector<16x128xf32>
      %33 = math.erf %32 : vector<16x128xf32>
      %cst_24 = arith.constant 1.000000e+00 : f32
      %34 = vector.broadcast %cst_24 : f32 to vector<16x128xf32>
      %35 = arith.addf %34, %33 : vector<16x128xf32>
      %36 = arith.mulf %30, %35 : vector<16x128xf32>
      %c0_25 = arith.constant 0 : index
      %c0_26 = arith.constant 0 : index
      %37 = vector.load %arg10[%c0_25, %c0_26] : memref<16x128xf32, #tpu.memory_space<vmem>>, vector<16x128xf32>
      tpu.vector_store %arg10[%c0_25, %c0_26], %36 {strides = array<i32>} : memref<16x128xf32, #tpu.memory_space<vmem>>, vector<16x128xf32>,
    } else {
    }
    return
  }
  func.func @transform_0(%arg0: i32, %arg1: i32, %arg2: i32) -> (i32, i32) {
    %c0_i32 = arith.constant 0 : i32
    return %arg0, %arg2 : i32, i32
  }
  func.func @transform_1(%arg0: i32, %arg1: i32, %arg2: i32) -> (i32, i32) {
    %c0_i32 = arith.constant 0 : i32
    %c0_i32_0 = arith.constant 0 : i32
    return %arg0, %c0_i32 : i32, i32
  }
  func.func @transform_2(%arg0: i32, %arg1: i32, %arg2: i32) -> (i32, i32) {
    %c0_i32 = arith.constant 0 : i32
    %c0_i32_0 = arith.constant 0 : i32
    return %arg0, %c0_i32 : i32, i32
  }
  func.func @transform_3(%arg0: i32, %arg1: i32, %arg2: i32) -> (i32, i32) {
    %c0_i32 = arith.constant 0 : i32
    %c0_i32_0 = arith.constant 0 : i32
    return %c0_i32, %arg2 : i32, i32
  }
  func.func @transform_4(%arg0: i32, %arg1: i32, %arg2: i32) -> (i32, i32) {
    %c0_i32 = arith.constant 0 : i32
    %c0_i32_0 = arith.constant 0 : i32
    return %c0_i32, %arg2 : i32, i32
  }
  func.func @transform_5(%arg0: i32, %arg1: i32, %arg2: i32) -> (i32, i32) {
    %c0_i32 = arith.constant 0 : i32
    return %arg2, %arg1 : i32, i32
  }
  func.func @transform_6(%arg0: i32, %arg1: i32, %arg2: i32) -> (i32, i32) {
    %c0_i32 = arith.constant 0 : i32
    %c0_i32_0 = arith.constant 0 : i32
    return %c0_i32, %arg1 : i32, i32
  }
  func.func @transform_7(%arg0: i32, %arg1: i32, %arg2: i32) -> (i32, i32) {
    %c0_i32 = arith.constant 0 : i32
    return %arg0, %arg1 : i32, i32
  }
}

module attributes {stable_mosaic.version = 11 : i64} {
  func.func @_mha_kernel(%arg0: i32, %arg1: i32, %arg2: i32, %arg3: memref<1x8x32xf32, #tpu.memory_space<vmem>>, %arg4: memref<1x12x32xf32, #tpu.memory_space<vmem>>, %arg5: memref<1x12x32xf32, #tpu.memory_space<vmem>>, %arg6: memref<1x8x32xf32, #tpu.memory_space<vmem>>, %arg7: memref<8x32xf32, #tpu.memory_space<vmem>>, %arg8: memref<4x8x1xf32, #tpu.memory_space<vmem>>, %arg9: memref<4x8x1xf32, #tpu.memory_space<vmem>>) attributes {dimension_semantics = [#tpu.dimension_semantics<parallel>, #tpu.dimension_semantics<parallel>, #tpu.dimension_semantics<arbitrary>], iteration_bounds = array<i64: 2, 1, 1>, scalar_prefetch = 0 : i64, scratch_operands = 3 : i64, tpu.core_type = #tpu.core_type<tc>, window_params = [{transform_indices = @transform_0, window_bounds = array<i64: 1, 8, 32>}, {transform_indices = @transform_1, window_bounds = array<i64: 1, 12, 32>}, {transform_indices = @transform_2, window_bounds = array<i64: 1, 12, 32>}, {transform_indices = @transform_3, window_bounds = array<i64: 1, 8, 32>}]} {
    %c0_i32 = arith.constant 0 : i32
    %0 = arith.cmpi eq, %arg2, %c0_i32 : i32
    %1 = arith.extui %0 : i1 to i32
    %c0_i32_0 = arith.constant 0 : i32
    %2 = arith.cmpi ne, %1, %c0_i32_0 : i32
    scf.if %2 {
      %cst_85 = arith.constant 0xFF800000 : f32
      %149 = vector.broadcast %cst_85 : f32 to vector<4x8x1xf32>
      %c0_86 = arith.constant 0 : index
      %c0_87 = arith.constant 0 : index
      %c0_88 = arith.constant 0 : index
      %150 = vector.load %arg8[%c0_86, %c0_87, %c0_88] : memref<4x8x1xf32, #tpu.memory_space<vmem>>, vector<4x8x1xf32>
      tpu.vector_store %arg8[%c0_86, %c0_87, %c0_88], %149 {strides = array<i32>} : memref<4x8x1xf32, #tpu.memory_space<vmem>>, vector<4x8x1xf32>,
      %cst_89 = arith.constant 0.000000e+00 : f32
      %151 = vector.broadcast %cst_89 : f32 to vector<4x8x1xf32>
      %c0_90 = arith.constant 0 : index
      %c0_91 = arith.constant 0 : index
      %c0_92 = arith.constant 0 : index
      %152 = vector.load %arg9[%c0_90, %c0_91, %c0_92] : memref<4x8x1xf32, #tpu.memory_space<vmem>>, vector<4x8x1xf32>
      tpu.vector_store %arg9[%c0_90, %c0_91, %c0_92], %151 {strides = array<i32>} : memref<4x8x1xf32, #tpu.memory_space<vmem>>, vector<4x8x1xf32>,
      %cst_93 = arith.constant 0.000000e+00 : f32
      %153 = vector.broadcast %cst_93 : f32 to vector<8x32xf32>
      %c0_94 = arith.constant 0 : index
      %c0_95 = arith.constant 0 : index
      %154 = vector.load %arg7[%c0_94, %c0_95] : memref<8x32xf32, #tpu.memory_space<vmem>>, vector<8x32xf32>
      tpu.vector_store %arg7[%c0_94, %c0_95], %153 {strides = array<i32>} : memref<8x32xf32, #tpu.memory_space<vmem>>, vector<8x32xf32>,
    } else {
    }
    %c0 = arith.constant 0 : index
    %c0_1 = arith.constant 0 : index
    %c0_2 = arith.constant 0 : index
    %3 = vector.load %arg3[%c0, %c0_1, %c0_2] : memref<1x8x32xf32, #tpu.memory_space<vmem>>, vector<1x8x32xf32>
    %4 = vector.shape_cast %3 : vector<1x8x32xf32> to vector<8x32xf32>
    %cst = arith.constant 0.353553385 : f32
    %5 = vector.broadcast %cst : f32 to vector<8x32xf32>
    %6 = arith.mulf %4, %5 : vector<8x32xf32>
    %7 = arith.truncf %6 : vector<8x32xf32> to vector<8x32xbf16>
    %c0_3 = arith.constant 0 : index
    %c0_4 = arith.constant 0 : index
    %c0_5 = arith.constant 0 : index
    %8 = vector.load %arg4[%c0_3, %c0_4, %c0_5] : memref<1x12x32xf32, #tpu.memory_space<vmem>>, vector<1x12x32xf32>
    %9 = vector.shape_cast %8 : vector<1x12x32xf32> to vector<12x32xf32>
    %10 = arith.truncf %9 : vector<12x32xf32> to vector<12x32xbf16>
    %c0_6 = arith.constant 0 : index
    %c0_7 = arith.constant 0 : index
    %c0_8 = arith.constant 0 : index
    %11 = vector.load %arg5[%c0_6, %c0_7, %c0_8] : memref<1x12x32xf32, #tpu.memory_space<vmem>>, vector<1x12x32xf32>
    %12 = vector.shape_cast %11 : vector<1x12x32xf32> to vector<12x32xf32>
    %13 = arith.truncf %12 : vector<12x32xf32> to vector<12x32xbf16>
    %14 = vector.extract_strided_slice %7 {offsets = [0, 0], sizes = [8, 8], strides = [1, 1]} : vector<8x32xbf16> to vector<8x8xbf16>
    %15 = vector.extract_strided_slice %10 {offsets = [0, 0], sizes = [12, 8], strides = [1, 1]} : vector<12x32xbf16> to vector<12x8xbf16>
    %cst_9 = arith.constant dense<0.000000e+00> : vector<8x12xf32>
    %16 = tpu.matmul %14, %15, %cst_9 {dimension_numbers = #tpu.dot_dimension_numbers<[1], [1], [0], [0], [0, 0, 1, 0], [], []>} : vector<8x8xbf16>, vector<12x8xbf16>, vector<8x12xf32> -> vector<8x12xf32>
    %c0_10 = arith.constant 0 : index
    %c0_11 = arith.constant 0 : index
    %c0_12 = arith.constant 0 : index
    %17 = vector.load %arg8[%c0_10, %c0_11, %c0_12] : memref<4x8x1xf32, #tpu.memory_space<vmem>>, vector<1x8x1xf32>
    %18 = vector.shape_cast %17 : vector<1x8x1xf32> to vector<8x1xf32>
    %cst_13 = arith.constant dense<0xFF800000> : vector<8xf32>
    %19 = vector.multi_reduction <maximumf>, %16, %cst_13 [1] : vector<8x12xf32> to vector<8xf32>
    %20 = vector.shape_cast %19 : vector<8xf32> to vector<8x1xf32>
    %21 = arith.maximumf %18, %20 : vector<8x1xf32>
    %22 = arith.subf %18, %21 : vector<8x1xf32>
    %23 = math.exp %22 : vector<8x1xf32>
    %24 = vector.broadcast %21 : vector<8x1xf32> to vector<8x12xf32>
    %25 = arith.subf %16, %24 : vector<8x12xf32>
    %26 = math.exp %25 : vector<8x12xf32>
    %c0_14 = arith.constant 0 : index
    %c0_15 = arith.constant 0 : index
    %c0_16 = arith.constant 0 : index
    %27 = vector.load %arg9[%c0_14, %c0_15, %c0_16] : memref<4x8x1xf32, #tpu.memory_space<vmem>>, vector<1x8x1xf32>
    %28 = vector.shape_cast %27 : vector<1x8x1xf32> to vector<8x1xf32>
    %29 = arith.mulf %23, %28 : vector<8x1xf32>
    %cst_17 = arith.constant dense<0.000000e+00> : vector<8xf32>
    %30 = vector.multi_reduction <add>, %26, %cst_17 [1] : vector<8x12xf32> to vector<8xf32>
    %31 = vector.shape_cast %30 : vector<8xf32> to vector<8x1xf32>
    %32 = arith.addf %29, %31 : vector<8x1xf32>
    %c0_18 = arith.constant 0 : index
    %c0_19 = arith.constant 0 : index
    %c0_20 = arith.constant 0 : index
    %33 = vector.load %arg9[%c0_18, %c0_19, %c0_20] : memref<4x8x1xf32, #tpu.memory_space<vmem>>, vector<1x8x1xf32>
    %34 = vector.shape_cast %33 : vector<1x8x1xf32> to vector<8x1xf32>
    %35 = vector.shape_cast %32 : vector<8x1xf32> to vector<1x8x1xf32>
    tpu.vector_store %arg9[%c0_18, %c0_19, %c0_20], %35 {strides = array<i32>} : memref<4x8x1xf32, #tpu.memory_space<vmem>>, vector<1x8x1xf32>,
    %c0_21 = arith.constant 0 : index
    %c0_22 = arith.constant 0 : index
    %36 = vector.load %arg7[%c0_21, %c0_22] : memref<8x32xf32, #tpu.memory_space<vmem>>, vector<8x8xf32>
    %37 = vector.broadcast %23 : vector<8x1xf32> to vector<8x8xf32>
    %38 = arith.mulf %37, %36 : vector<8x8xf32>
    %39 = arith.truncf %26 : vector<8x12xf32> to vector<8x12xbf16>
    %40 = vector.extract_strided_slice %13 {offsets = [0, 0], sizes = [12, 8], strides = [1, 1]} : vector<12x32xbf16> to vector<12x8xbf16>
    %cst_23 = arith.constant dense<0.000000e+00> : vector<8x8xf32>
    %41 = tpu.matmul %39, %40, %cst_23 {dimension_numbers = #tpu.dot_dimension_numbers<[1], [0], [0], [1], [0, 0, 1, 1], [], []>} : vector<8x12xbf16>, vector<12x8xbf16>, vector<8x8xf32> -> vector<8x8xf32>
    %42 = arith.addf %38, %41 : vector<8x8xf32>
    %c0_24 = arith.constant 0 : index
    %c0_25 = arith.constant 0 : index
    %43 = vector.load %arg7[%c0_24, %c0_25] : memref<8x32xf32, #tpu.memory_space<vmem>>, vector<8x8xf32>
    tpu.vector_store %arg7[%c0_24, %c0_25], %42 {strides = array<i32>} : memref<8x32xf32, #tpu.memory_space<vmem>>, vector<8x8xf32>,
    %c0_26 = arith.constant 0 : index
    %c0_27 = arith.constant 0 : index
    %c0_28 = arith.constant 0 : index
    %44 = vector.load %arg8[%c0_26, %c0_27, %c0_28] : memref<4x8x1xf32, #tpu.memory_space<vmem>>, vector<1x8x1xf32>
    %45 = vector.shape_cast %44 : vector<1x8x1xf32> to vector<8x1xf32>
    %46 = vector.shape_cast %21 : vector<8x1xf32> to vector<1x8x1xf32>
    tpu.vector_store %arg8[%c0_26, %c0_27, %c0_28], %46 {strides = array<i32>} : memref<4x8x1xf32, #tpu.memory_space<vmem>>, vector<1x8x1xf32>,
    %47 = vector.extract_strided_slice %7 {offsets = [0, 8], sizes = [8, 8], strides = [1, 1]} : vector<8x32xbf16> to vector<8x8xbf16>
    %48 = vector.extract_strided_slice %10 {offsets = [0, 8], sizes = [12, 8], strides = [1, 1]} : vector<12x32xbf16> to vector<12x8xbf16>
    %cst_29 = arith.constant dense<0.000000e+00> : vector<8x12xf32>
    %49 = tpu.matmul %47, %48, %cst_29 {dimension_numbers = #tpu.dot_dimension_numbers<[1], [1], [0], [0], [0, 0, 1, 0], [], []>} : vector<8x8xbf16>, vector<12x8xbf16>, vector<8x12xf32> -> vector<8x12xf32>
    %c1 = arith.constant 1 : index
    %c0_30 = arith.constant 0 : index
    %c0_31 = arith.constant 0 : index
    %50 = vector.load %arg8[%c1, %c0_30, %c0_31] : memref<4x8x1xf32, #tpu.memory_space<vmem>>, vector<1x8x1xf32>
    %51 = vector.shape_cast %50 : vector<1x8x1xf32> to vector<8x1xf32>
    %cst_32 = arith.constant dense<0xFF800000> : vector<8xf32>
    %52 = vector.multi_reduction <maximumf>, %49, %cst_32 [1] : vector<8x12xf32> to vector<8xf32>
    %53 = vector.shape_cast %52 : vector<8xf32> to vector<8x1xf32>
    %54 = arith.maximumf %51, %53 : vector<8x1xf32>
    %55 = arith.subf %51, %54 : vector<8x1xf32>
    %56 = math.exp %55 : vector<8x1xf32>
    %57 = vector.broadcast %54 : vector<8x1xf32> to vector<8x12xf32>
    %58 = arith.subf %49, %57 : vector<8x12xf32>
    %59 = math.exp %58 : vector<8x12xf32>
    %c1_33 = arith.constant 1 : index
    %c0_34 = arith.constant 0 : index
    %c0_35 = arith.constant 0 : index
    %60 = vector.load %arg9[%c1_33, %c0_34, %c0_35] : memref<4x8x1xf32, #tpu.memory_space<vmem>>, vector<1x8x1xf32>
    %61 = vector.shape_cast %60 : vector<1x8x1xf32> to vector<8x1xf32>
    %62 = arith.mulf %56, %61 : vector<8x1xf32>
    %cst_36 = arith.constant dense<0.000000e+00> : vector<8xf32>
    %63 = vector.multi_reduction <add>, %59, %cst_36 [1] : vector<8x12xf32> to vector<8xf32>
    %64 = vector.shape_cast %63 : vector<8xf32> to vector<8x1xf32>
    %65 = arith.addf %62, %64 : vector<8x1xf32>
    %c1_37 = arith.constant 1 : index
    %c0_38 = arith.constant 0 : index
    %c0_39 = arith.constant 0 : index
    %66 = vector.load %arg9[%c1_37, %c0_38, %c0_39] : memref<4x8x1xf32, #tpu.memory_space<vmem>>, vector<1x8x1xf32>
    %67 = vector.shape_cast %66 : vector<1x8x1xf32> to vector<8x1xf32>
    %68 = vector.shape_cast %65 : vector<8x1xf32> to vector<1x8x1xf32>
    tpu.vector_store %arg9[%c1_37, %c0_38, %c0_39], %68 {strides = array<i32>} : memref<4x8x1xf32, #tpu.memory_space<vmem>>, vector<1x8x1xf32>,
    %c0_40 = arith.constant 0 : index
    %c8 = arith.constant 8 : index
    %69 = vector.load %arg7[%c0_40, %c8] : memref<8x32xf32, #tpu.memory_space<vmem>>, vector<8x8xf32>
    %70 = vector.broadcast %56 : vector<8x1xf32> to vector<8x8xf32>
    %71 = arith.mulf %70, %69 : vector<8x8xf32>
    %72 = arith.truncf %59 : vector<8x12xf32> to vector<8x12xbf16>
    %73 = vector.extract_strided_slice %13 {offsets = [0, 8], sizes = [12, 8], strides = [1, 1]} : vector<12x32xbf16> to vector<12x8xbf16>
    %cst_41 = arith.constant dense<0.000000e+00> : vector<8x8xf32>
    %74 = tpu.matmul %72, %73, %cst_41 {dimension_numbers = #tpu.dot_dimension_numbers<[1], [0], [0], [1], [0, 0, 1, 1], [], []>} : vector<8x12xbf16>, vector<12x8xbf16>, vector<8x8xf32> -> vector<8x8xf32>
    %75 = arith.addf %71, %74 : vector<8x8xf32>
    %c0_42 = arith.constant 0 : index
    %c8_43 = arith.constant 8 : index
    %76 = vector.load %arg7[%c0_42, %c8_43] : memref<8x32xf32, #tpu.memory_space<vmem>>, vector<8x8xf32>
    tpu.vector_store %arg7[%c0_42, %c8_43], %75 {strides = array<i32>} : memref<8x32xf32, #tpu.memory_space<vmem>>, vector<8x8xf32>,
    %c1_44 = arith.constant 1 : index
    %c0_45 = arith.constant 0 : index
    %c0_46 = arith.constant 0 : index
    %77 = vector.load %arg8[%c1_44, %c0_45, %c0_46] : memref<4x8x1xf32, #tpu.memory_space<vmem>>, vector<1x8x1xf32>
    %78 = vector.shape_cast %77 : vector<1x8x1xf32> to vector<8x1xf32>
    %79 = vector.shape_cast %54 : vector<8x1xf32> to vector<1x8x1xf32>
    tpu.vector_store %arg8[%c1_44, %c0_45, %c0_46], %79 {strides = array<i32>} : memref<4x8x1xf32, #tpu.memory_space<vmem>>, vector<1x8x1xf32>,
    %80 = vector.extract_strided_slice %7 {offsets = [0, 16], sizes = [8, 8], strides = [1, 1]} : vector<8x32xbf16> to vector<8x8xbf16>
    %81 = vector.extract_strided_slice %10 {offsets = [0, 16], sizes = [12, 8], strides = [1, 1]} : vector<12x32xbf16> to vector<12x8xbf16>
    %cst_47 = arith.constant dense<0.000000e+00> : vector<8x12xf32>
    %82 = tpu.matmul %80, %81, %cst_47 {dimension_numbers = #tpu.dot_dimension_numbers<[1], [1], [0], [0], [0, 0, 1, 0], [], []>} : vector<8x8xbf16>, vector<12x8xbf16>, vector<8x12xf32> -> vector<8x12xf32>
    %c2 = arith.constant 2 : index
    %c0_48 = arith.constant 0 : index
    %c0_49 = arith.constant 0 : index
    %83 = vector.load %arg8[%c2, %c0_48, %c0_49] : memref<4x8x1xf32, #tpu.memory_space<vmem>>, vector<1x8x1xf32>
    %84 = vector.shape_cast %83 : vector<1x8x1xf32> to vector<8x1xf32>
    %cst_50 = arith.constant dense<0xFF800000> : vector<8xf32>
    %85 = vector.multi_reduction <maximumf>, %82, %cst_50 [1] : vector<8x12xf32> to vector<8xf32>
    %86 = vector.shape_cast %85 : vector<8xf32> to vector<8x1xf32>
    %87 = arith.maximumf %84, %86 : vector<8x1xf32>
    %88 = arith.subf %84, %87 : vector<8x1xf32>
    %89 = math.exp %88 : vector<8x1xf32>
    %90 = vector.broadcast %87 : vector<8x1xf32> to vector<8x12xf32>
    %91 = arith.subf %82, %90 : vector<8x12xf32>
    %92 = math.exp %91 : vector<8x12xf32>
    %c2_51 = arith.constant 2 : index
    %c0_52 = arith.constant 0 : index
    %c0_53 = arith.constant 0 : index
    %93 = vector.load %arg9[%c2_51, %c0_52, %c0_53] : memref<4x8x1xf32, #tpu.memory_space<vmem>>, vector<1x8x1xf32>
    %94 = vector.shape_cast %93 : vector<1x8x1xf32> to vector<8x1xf32>
    %95 = arith.mulf %89, %94 : vector<8x1xf32>
    %cst_54 = arith.constant dense<0.000000e+00> : vector<8xf32>
    %96 = vector.multi_reduction <add>, %92, %cst_54 [1] : vector<8x12xf32> to vector<8xf32>
    %97 = vector.shape_cast %96 : vector<8xf32> to vector<8x1xf32>
    %98 = arith.addf %95, %97 : vector<8x1xf32>
    %c2_55 = arith.constant 2 : index
    %c0_56 = arith.constant 0 : index
    %c0_57 = arith.constant 0 : index
    %99 = vector.load %arg9[%c2_55, %c0_56, %c0_57] : memref<4x8x1xf32, #tpu.memory_space<vmem>>, vector<1x8x1xf32>
    %100 = vector.shape_cast %99 : vector<1x8x1xf32> to vector<8x1xf32>
    %101 = vector.shape_cast %98 : vector<8x1xf32> to vector<1x8x1xf32>
    tpu.vector_store %arg9[%c2_55, %c0_56, %c0_57], %101 {strides = array<i32>} : memref<4x8x1xf32, #tpu.memory_space<vmem>>, vector<1x8x1xf32>,
    %c0_58 = arith.constant 0 : index
    %c16 = arith.constant 16 : index
    %102 = vector.load %arg7[%c0_58, %c16] : memref<8x32xf32, #tpu.memory_space<vmem>>, vector<8x8xf32>
    %103 = vector.broadcast %89 : vector<8x1xf32> to vector<8x8xf32>
    %104 = arith.mulf %103, %102 : vector<8x8xf32>
    %105 = arith.truncf %92 : vector<8x12xf32> to vector<8x12xbf16>
    %106 = vector.extract_strided_slice %13 {offsets = [0, 16], sizes = [12, 8], strides = [1, 1]} : vector<12x32xbf16> to vector<12x8xbf16>
    %cst_59 = arith.constant dense<0.000000e+00> : vector<8x8xf32>
    %107 = tpu.matmul %105, %106, %cst_59 {dimension_numbers = #tpu.dot_dimension_numbers<[1], [0], [0], [1], [0, 0, 1, 1], [], []>} : vector<8x12xbf16>, vector<12x8xbf16>, vector<8x8xf32> -> vector<8x8xf32>
    %108 = arith.addf %104, %107 : vector<8x8xf32>
    %c0_60 = arith.constant 0 : index
    %c16_61 = arith.constant 16 : index
    %109 = vector.load %arg7[%c0_60, %c16_61] : memref<8x32xf32, #tpu.memory_space<vmem>>, vector<8x8xf32>
    tpu.vector_store %arg7[%c0_60, %c16_61], %108 {strides = array<i32>} : memref<8x32xf32, #tpu.memory_space<vmem>>, vector<8x8xf32>,
    %c2_62 = arith.constant 2 : index
    %c0_63 = arith.constant 0 : index
    %c0_64 = arith.constant 0 : index
    %110 = vector.load %arg8[%c2_62, %c0_63, %c0_64] : memref<4x8x1xf32, #tpu.memory_space<vmem>>, vector<1x8x1xf32>
    %111 = vector.shape_cast %110 : vector<1x8x1xf32> to vector<8x1xf32>
    %112 = vector.shape_cast %87 : vector<8x1xf32> to vector<1x8x1xf32>
    tpu.vector_store %arg8[%c2_62, %c0_63, %c0_64], %112 {strides = array<i32>} : memref<4x8x1xf32, #tpu.memory_space<vmem>>, vector<1x8x1xf32>,
    %113 = vector.extract_strided_slice %7 {offsets = [0, 24], sizes = [8, 8], strides = [1, 1]} : vector<8x32xbf16> to vector<8x8xbf16>
    %114 = vector.extract_strided_slice %10 {offsets = [0, 24], sizes = [12, 8], strides = [1, 1]} : vector<12x32xbf16> to vector<12x8xbf16>
    %cst_65 = arith.constant dense<0.000000e+00> : vector<8x12xf32>
    %115 = tpu.matmul %113, %114, %cst_65 {dimension_numbers = #tpu.dot_dimension_numbers<[1], [1], [0], [0], [0, 0, 1, 0], [], []>} : vector<8x8xbf16>, vector<12x8xbf16>, vector<8x12xf32> -> vector<8x12xf32>
    %c3 = arith.constant 3 : index
    %c0_66 = arith.constant 0 : index
    %c0_67 = arith.constant 0 : index
    %116 = vector.load %arg8[%c3, %c0_66, %c0_67] : memref<4x8x1xf32, #tpu.memory_space<vmem>>, vector<1x8x1xf32>
    %117 = vector.shape_cast %116 : vector<1x8x1xf32> to vector<8x1xf32>
    %cst_68 = arith.constant dense<0xFF800000> : vector<8xf32>
    %118 = vector.multi_reduction <maximumf>, %115, %cst_68 [1] : vector<8x12xf32> to vector<8xf32>
    %119 = vector.shape_cast %118 : vector<8xf32> to vector<8x1xf32>
    %120 = arith.maximumf %117, %119 : vector<8x1xf32>
    %121 = arith.subf %117, %120 : vector<8x1xf32>
    %122 = math.exp %121 : vector<8x1xf32>
    %123 = vector.broadcast %120 : vector<8x1xf32> to vector<8x12xf32>
    %124 = arith.subf %115, %123 : vector<8x12xf32>
    %125 = math.exp %124 : vector<8x12xf32>
    %c3_69 = arith.constant 3 : index
    %c0_70 = arith.constant 0 : index
    %c0_71 = arith.constant 0 : index
    %126 = vector.load %arg9[%c3_69, %c0_70, %c0_71] : memref<4x8x1xf32, #tpu.memory_space<vmem>>, vector<1x8x1xf32>
    %127 = vector.shape_cast %126 : vector<1x8x1xf32> to vector<8x1xf32>
    %128 = arith.mulf %122, %127 : vector<8x1xf32>
    %cst_72 = arith.constant dense<0.000000e+00> : vector<8xf32>
    %129 = vector.multi_reduction <add>, %125, %cst_72 [1] : vector<8x12xf32> to vector<8xf32>
    %130 = vector.shape_cast %129 : vector<8xf32> to vector<8x1xf32>
    %131 = arith.addf %128, %130 : vector<8x1xf32>
    %c3_73 = arith.constant 3 : index
    %c0_74 = arith.constant 0 : index
    %c0_75 = arith.constant 0 : index
    %132 = vector.load %arg9[%c3_73, %c0_74, %c0_75] : memref<4x8x1xf32, #tpu.memory_space<vmem>>, vector<1x8x1xf32>
    %133 = vector.shape_cast %132 : vector<1x8x1xf32> to vector<8x1xf32>
    %134 = vector.shape_cast %131 : vector<8x1xf32> to vector<1x8x1xf32>
    tpu.vector_store %arg9[%c3_73, %c0_74, %c0_75], %134 {strides = array<i32>} : memref<4x8x1xf32, #tpu.memory_space<vmem>>, vector<1x8x1xf32>,
    %c0_76 = arith.constant 0 : index
    %c24 = arith.constant 24 : index
    %135 = vector.load %arg7[%c0_76, %c24] : memref<8x32xf32, #tpu.memory_space<vmem>>, vector<8x8xf32>
    %136 = vector.broadcast %122 : vector<8x1xf32> to vector<8x8xf32>
    %137 = arith.mulf %136, %135 : vector<8x8xf32>
    %138 = arith.truncf %125 : vector<8x12xf32> to vector<8x12xbf16>
    %139 = vector.extract_strided_slice %13 {offsets = [0, 24], sizes = [12, 8], strides = [1, 1]} : vector<12x32xbf16> to vector<12x8xbf16>
    %cst_77 = arith.constant dense<0.000000e+00> : vector<8x8xf32>
    %140 = tpu.matmul %138, %139, %cst_77 {dimension_numbers = #tpu.dot_dimension_numbers<[1], [0], [0], [1], [0, 0, 1, 1], [], []>} : vector<8x12xbf16>, vector<12x8xbf16>, vector<8x8xf32> -> vector<8x8xf32>
    %141 = arith.addf %137, %140 : vector<8x8xf32>
    %c0_78 = arith.constant 0 : index
    %c24_79 = arith.constant 24 : index
    %142 = vector.load %arg7[%c0_78, %c24_79] : memref<8x32xf32, #tpu.memory_space<vmem>>, vector<8x8xf32>
    tpu.vector_store %arg7[%c0_78, %c24_79], %141 {strides = array<i32>} : memref<8x32xf32, #tpu.memory_space<vmem>>, vector<8x8xf32>,
    %c3_80 = arith.constant 3 : index
    %c0_81 = arith.constant 0 : index
    %c0_82 = arith.constant 0 : index
    %143 = vector.load %arg8[%c3_80, %c0_81, %c0_82] : memref<4x8x1xf32, #tpu.memory_space<vmem>>, vector<1x8x1xf32>
    %144 = vector.shape_cast %143 : vector<1x8x1xf32> to vector<8x1xf32>
    %145 = vector.shape_cast %120 : vector<8x1xf32> to vector<1x8x1xf32>
    tpu.vector_store %arg8[%c3_80, %c0_81, %c0_82], %145 {strides = array<i32>} : memref<4x8x1xf32, #tpu.memory_space<vmem>>, vector<1x8x1xf32>,
    %c0_i32_83 = arith.constant 0 : i32
    %146 = arith.cmpi eq, %arg2, %c0_i32_83 : i32
    %147 = arith.extui %146 : i1 to i32
    %c0_i32_84 = arith.constant 0 : i32
    %148 = arith.cmpi ne, %147, %c0_i32_84 : i32
    scf.if %148 {
      %c0_85 = arith.constant 0 : index
      %c0_86 = arith.constant 0 : index
      %c0_87 = arith.constant 0 : index
      %149 = vector.load %arg9[%c0_85, %c0_86, %c0_87] : memref<4x8x1xf32, #tpu.memory_space<vmem>>, vector<1x8x1xf32>
      %150 = vector.shape_cast %149 : vector<1x8x1xf32> to vector<8x1xf32>
      %151 = tpu.reciprocal %150 {approx = true} : vector<8x1xf32> -> vector<8x1xf32>
      %c0_88 = arith.constant 0 : index
      %c0_89 = arith.constant 0 : index
      %152 = vector.load %arg7[%c0_88, %c0_89] : memref<8x32xf32, #tpu.memory_space<vmem>>, vector<8x8xf32>
      %153 = vector.broadcast %151 : vector<8x1xf32> to vector<8x8xf32>
      %154 = arith.mulf %152, %153 : vector<8x8xf32>
      %c0_90 = arith.constant 0 : index
      %c0_91 = arith.constant 0 : index
      %c0_92 = arith.constant 0 : index
      %155 = vector.load %arg6[%c0_90, %c0_91, %c0_92] : memref<1x8x32xf32, #tpu.memory_space<vmem>>, vector<1x8x8xf32>
      %156 = vector.shape_cast %155 : vector<1x8x8xf32> to vector<8x8xf32>
      %157 = vector.shape_cast %154 : vector<8x8xf32> to vector<1x8x8xf32>
      tpu.vector_store %arg6[%c0_90, %c0_91, %c0_92], %157 {strides = array<i32>} : memref<1x8x32xf32, #tpu.memory_space<vmem>>, vector<1x8x8xf32>,
      %c1_93 = arith.constant 1 : index
      %c0_94 = arith.constant 0 : index
      %c0_95 = arith.constant 0 : index
      %158 = vector.load %arg9[%c1_93, %c0_94, %c0_95] : memref<4x8x1xf32, #tpu.memory_space<vmem>>, vector<1x8x1xf32>
      %159 = vector.shape_cast %158 : vector<1x8x1xf32> to vector<8x1xf32>
      %160 = tpu.reciprocal %159 {approx = true} : vector<8x1xf32> -> vector<8x1xf32>
      %c0_96 = arith.constant 0 : index
      %c8_97 = arith.constant 8 : index
      %161 = vector.load %arg7[%c0_96, %c8_97] : memref<8x32xf32, #tpu.memory_space<vmem>>, vector<8x8xf32>
      %162 = vector.broadcast %160 : vector<8x1xf32> to vector<8x8xf32>
      %163 = arith.mulf %161, %162 : vector<8x8xf32>
      %c0_98 = arith.constant 0 : index
      %c0_99 = arith.constant 0 : index
      %c8_100 = arith.constant 8 : index
      %164 = vector.load %arg6[%c0_98, %c0_99, %c8_100] : memref<1x8x32xf32, #tpu.memory_space<vmem>>, vector<1x8x8xf32>
      %165 = vector.shape_cast %164 : vector<1x8x8xf32> to vector<8x8xf32>
      %166 = vector.shape_cast %163 : vector<8x8xf32> to vector<1x8x8xf32>
      tpu.vector_store %arg6[%c0_98, %c0_99, %c8_100], %166 {strides = array<i32>} : memref<1x8x32xf32, #tpu.memory_space<vmem>>, vector<1x8x8xf32>,
      %c2_101 = arith.constant 2 : index
      %c0_102 = arith.constant 0 : index
      %c0_103 = arith.constant 0 : index
      %167 = vector.load %arg9[%c2_101, %c0_102, %c0_103] : memref<4x8x1xf32, #tpu.memory_space<vmem>>, vector<1x8x1xf32>
      %168 = vector.shape_cast %167 : vector<1x8x1xf32> to vector<8x1xf32>
      %169 = tpu.reciprocal %168 {approx = true} : vector<8x1xf32> -> vector<8x1xf32>
      %c0_104 = arith.constant 0 : index
      %c16_105 = arith.constant 16 : index
      %170 = vector.load %arg7[%c0_104, %c16_105] : memref<8x32xf32, #tpu.memory_space<vmem>>, vector<8x8xf32>
      %171 = vector.broadcast %169 : vector<8x1xf32> to vector<8x8xf32>
      %172 = arith.mulf %170, %171 : vector<8x8xf32>
      %c0_106 = arith.constant 0 : index
      %c0_107 = arith.constant 0 : index
      %c16_108 = arith.constant 16 : index
      %173 = vector.load %arg6[%c0_106, %c0_107, %c16_108] : memref<1x8x32xf32, #tpu.memory_space<vmem>>, vector<1x8x8xf32>
      %174 = vector.shape_cast %173 : vector<1x8x8xf32> to vector<8x8xf32>
      %175 = vector.shape_cast %172 : vector<8x8xf32> to vector<1x8x8xf32>
      tpu.vector_store %arg6[%c0_106, %c0_107, %c16_108], %175 {strides = array<i32>} : memref<1x8x32xf32, #tpu.memory_space<vmem>>, vector<1x8x8xf32>,
      %c3_109 = arith.constant 3 : index
      %c0_110 = arith.constant 0 : index
      %c0_111 = arith.constant 0 : index
      %176 = vector.load %arg9[%c3_109, %c0_110, %c0_111] : memref<4x8x1xf32, #tpu.memory_space<vmem>>, vector<1x8x1xf32>
      %177 = vector.shape_cast %176 : vector<1x8x1xf32> to vector<8x1xf32>
      %178 = tpu.reciprocal %177 {approx = true} : vector<8x1xf32> -> vector<8x1xf32>
      %c0_112 = arith.constant 0 : index
      %c24_113 = arith.constant 24 : index
      %179 = vector.load %arg7[%c0_112, %c24_113] : memref<8x32xf32, #tpu.memory_space<vmem>>, vector<8x8xf32>
      %180 = vector.broadcast %178 : vector<8x1xf32> to vector<8x8xf32>
      %181 = arith.mulf %179, %180 : vector<8x8xf32>
      %c0_114 = arith.constant 0 : index
      %c0_115 = arith.constant 0 : index
      %c24_116 = arith.constant 24 : index
      %182 = vector.load %arg6[%c0_114, %c0_115, %c24_116] : memref<1x8x32xf32, #tpu.memory_space<vmem>>, vector<1x8x8xf32>
      %183 = vector.shape_cast %182 : vector<1x8x8xf32> to vector<8x8xf32>
      %184 = vector.shape_cast %181 : vector<8x8xf32> to vector<1x8x8xf32>
      tpu.vector_store %arg6[%c0_114, %c0_115, %c24_116], %184 {strides = array<i32>} : memref<1x8x32xf32, #tpu.memory_space<vmem>>, vector<1x8x8xf32>,
    } else {
    }
    return
  }
  func.func @transform_0(%arg0: i32, %arg1: i32, %arg2: i32) -> (i32, i32, i32) {
    %c0_i32 = arith.constant 0 : i32
    %c0_i32_0 = arith.constant 0 : i32
    return %arg0, %arg1, %c0_i32 : i32, i32, i32
  }
  func.func @transform_1(%arg0: i32, %arg1: i32, %arg2: i32) -> (i32, i32, i32) {
    %c0_i32 = arith.constant 0 : i32
    %c0_i32_0 = arith.constant 0 : i32
    return %arg0, %arg2, %c0_i32 : i32, i32, i32
  }
  func.func @transform_2(%arg0: i32, %arg1: i32, %arg2: i32) -> (i32, i32, i32) {
    %c0_i32 = arith.constant 0 : i32
    %c0_i32_0 = arith.constant 0 : i32
    return %arg0, %arg2, %c0_i32 : i32, i32, i32
  }
  func.func @transform_3(%arg0: i32, %arg1: i32, %arg2: i32) -> (i32, i32, i32) {
    %c0_i32 = arith.constant 0 : i32
    %c0_i32_0 = arith.constant 0 : i32
    return %arg0, %arg1, %c0_i32 : i32, i32, i32
  }
}

module attributes {stable_mosaic.version = 11 : i64} {
  func.func @_linear_residual_kernel(%arg0: i32, %arg1: i32, %arg2: i32, %arg3: memref<16x128xf32, #tpu.memory_space<vmem>>, %arg4: memref<128x32xbf16, #tpu.memory_space<vmem>>, %arg5: memref<1x32xf32, #tpu.memory_space<vmem>>, %arg6: memref<16x32xf32, #tpu.memory_space<vmem>>, %arg7: memref<16x32xf32, #tpu.memory_space<vmem>>, %arg8: memref<16x32xf32, #tpu.memory_space<vmem>>) attributes {dimension_semantics = [#tpu.dimension_semantics<parallel>, #tpu.dimension_semantics<parallel>, #tpu.dimension_semantics<arbitrary>], iteration_bounds = array<i64: 1, 1, 1>, scalar_prefetch = 0 : i64, scratch_operands = 1 : i64, tpu.core_type = #tpu.core_type<tc>, window_params = [{transform_indices = @transform_0, window_bounds = array<i64: 16, 128>}, {transform_indices = @transform_1, window_bounds = array<i64: 128, 32>}, {transform_indices = @transform_2, window_bounds = array<i64: 1, 32>}, {transform_indices = @transform_3, window_bounds = array<i64: 16, 32>}, {transform_indices = @transform_4, window_bounds = array<i64: 16, 32>}]} {
    %c0_i32 = arith.constant 0 : i32
    %0 = arith.cmpi eq, %arg2, %c0_i32 : i32
    %1 = arith.extui %0 : i1 to i32
    %c0_i32_0 = arith.constant 0 : i32
    %2 = arith.cmpi ne, %1, %c0_i32_0 : i32
    scf.if %2 {
      %cst_10 = arith.constant 0.000000e+00 : f32
      %13 = vector.broadcast %cst_10 : f32 to vector<16x32xf32>
      %c0_11 = arith.constant 0 : index
      %c0_12 = arith.constant 0 : index
      %14 = vector.load %arg8[%c0_11, %c0_12] : memref<16x32xf32, #tpu.memory_space<vmem>>, vector<16x32xf32>
      tpu.vector_store %arg8[%c0_11, %c0_12], %13 {strides = array<i32>} : memref<16x32xf32, #tpu.memory_space<vmem>>, vector<16x32xf32>,
    } else {
    }
    %c0 = arith.constant 0 : index
    %c0_1 = arith.constant 0 : index
    %3 = vector.load %arg8[%c0, %c0_1] : memref<16x32xf32, #tpu.memory_space<vmem>>, vector<16x32xf32>
    %c0_2 = arith.constant 0 : index
    %c0_3 = arith.constant 0 : index
    %4 = vector.load %arg3[%c0_2, %c0_3] : memref<16x128xf32, #tpu.memory_space<vmem>>, vector<16x128xf32>
    %5 = arith.truncf %4 : vector<16x128xf32> to vector<16x128xbf16>
    %c0_4 = arith.constant 0 : index
    %c0_5 = arith.constant 0 : index
    %6 = vector.load %arg4[%c0_4, %c0_5] : memref<128x32xbf16, #tpu.memory_space<vmem>>, vector<128x32xbf16>
    %cst = arith.constant dense<0.000000e+00> : vector<16x32xf32>
    %7 = tpu.matmul %5, %6, %cst {dimension_numbers = #tpu.dot_dimension_numbers<[1], [0], [0], [1], [0, 0, 1, 1], [], []>} : vector<16x128xbf16>, vector<128x32xbf16>, vector<16x32xf32> -> vector<16x32xf32>
    %8 = arith.addf %3, %7 : vector<16x32xf32>
    %c0_6 = arith.constant 0 : index
    %c0_7 = arith.constant 0 : index
    %9 = vector.load %arg8[%c0_6, %c0_7] : memref<16x32xf32, #tpu.memory_space<vmem>>, vector<16x32xf32>
    tpu.vector_store %arg8[%c0_6, %c0_7], %8 {strides = array<i32>} : memref<16x32xf32, #tpu.memory_space<vmem>>, vector<16x32xf32>,
    %c0_i32_8 = arith.constant 0 : i32
    %10 = arith.cmpi eq, %arg2, %c0_i32_8 : i32
    %11 = arith.extui %10 : i1 to i32
    %c0_i32_9 = arith.constant 0 : i32
    %12 = arith.cmpi ne, %11, %c0_i32_9 : i32
    scf.if %12 {
      %c0_10 = arith.constant 0 : index
      %c0_11 = arith.constant 0 : index
      %13 = vector.load %arg8[%c0_10, %c0_11] : memref<16x32xf32, #tpu.memory_space<vmem>>, vector<16x32xf32>
      %c0_12 = arith.constant 0 : index
      %c0_13 = arith.constant 0 : index
      %14 = vector.load %arg5[%c0_12, %c0_13] : memref<1x32xf32, #tpu.memory_space<vmem>>, vector<1x32xf32>
      %15 = vector.broadcast %14 : vector<1x32xf32> to vector<16x32xf32>
      %16 = arith.addf %13, %15 : vector<16x32xf32>
      %c0_14 = arith.constant 0 : index
      %c0_15 = arith.constant 0 : index
      %17 = vector.load %arg6[%c0_14, %c0_15] : memref<16x32xf32, #tpu.memory_space<vmem>>, vector<16x32xf32>
      %18 = arith.addf %16, %17 : vector<16x32xf32>
      %c0_16 = arith.constant 0 : index
      %c0_17 = arith.constant 0 : index
      %19 = vector.load %arg7[%c0_16, %c0_17] : memref<16x32xf32, #tpu.memory_space<vmem>>, vector<16x32xf32>
      tpu.vector_store %arg7[%c0_16, %c0_17], %18 {strides = array<i32>} : memref<16x32xf32, #tpu.memory_space<vmem>>, vector<16x32xf32>,
    } else {
    }
    return
  }
  func.func @transform_0(%arg0: i32, %arg1: i32, %arg2: i32) -> (i32, i32) {
    %c0_i32 = arith.constant 0 : i32
    return %arg0, %arg2 : i32, i32
  }
  func.func @transform_1(%arg0: i32, %arg1: i32, %arg2: i32) -> (i32, i32) {
    %c0_i32 = arith.constant 0 : i32
    return %arg2, %arg1 : i32, i32
  }
  func.func @transform_2(%arg0: i32, %arg1: i32, %arg2: i32) -> (i32, i32) {
    %c0_i32 = arith.constant 0 : i32
    %c0_i32_0 = arith.constant 0 : i32
    return %c0_i32, %arg1 : i32, i32
  }
  func.func @transform_3(%arg0: i32, %arg1: i32, %arg2: i32) -> (i32, i32) {
    %c0_i32 = arith.constant 0 : i32
    return %arg0, %arg1 : i32, i32
  }
  func.func @transform_4(%arg0: i32, %arg1: i32, %arg2: i32) -> (i32, i32) {
    %c0_i32 = arith.constant 0 : i32
    return %arg0, %arg1 : i32, i32
  }
}

module attributes {stable_mosaic.version = 11 : i64} {
  func.func @_layernorm_kernel(%arg0: i32, %arg1: memref<16x32xf32, #tpu.memory_space<vmem>>, %arg2: memref<1x32xf32, #tpu.memory_space<vmem>>, %arg3: memref<1x32xf32, #tpu.memory_space<vmem>>, %arg4: memref<16x32xf32, #tpu.memory_space<vmem>>) attributes {dimension_semantics = [#tpu.dimension_semantics<parallel>], iteration_bounds = array<i64: 1>, scalar_prefetch = 0 : i64, scratch_operands = 0 : i64, tpu.core_type = #tpu.core_type<tc>, window_params = [{transform_indices = @transform_0, window_bounds = array<i64: 16, 32>}, {pipeline_mode = #tpu.pipeline_mode<synchronous>, transform_indices = @transform_1, window_bounds = array<i64: 1, 32>}, {pipeline_mode = #tpu.pipeline_mode<synchronous>, transform_indices = @transform_2, window_bounds = array<i64: 1, 32>}, {transform_indices = @transform_3, window_bounds = array<i64: 16, 32>}]} {
    %c0 = arith.constant 0 : index
    %c0_0 = arith.constant 0 : index
    %0 = vector.load %arg1[%c0, %c0_0] : memref<16x32xf32, #tpu.memory_space<vmem>>, vector<16x32xf32>
    %cst = arith.constant dense<0.000000e+00> : vector<16xf32>
    %1 = vector.multi_reduction <add>, %0, %cst [1] : vector<16x32xf32> to vector<16xf32>
    %2 = vector.shape_cast %1 : vector<16xf32> to vector<16x1xf32>
    %cst_1 = arith.constant 3.200000e+01 : f32
    %3 = vector.broadcast %cst_1 : f32 to vector<16x1xf32>
    %4 = arith.divf %2, %3 : vector<16x1xf32>
    %5 = vector.broadcast %4 : vector<16x1xf32> to vector<16x32xf32>
    %6 = arith.subf %0, %5 : vector<16x32xf32>
    %7 = arith.mulf %6, %6 : vector<16x32xf32>
    %cst_2 = arith.constant dense<0.000000e+00> : vector<16xf32>
    %8 = vector.multi_reduction <add>, %7, %cst_2 [1] : vector<16x32xf32> to vector<16xf32>
    %9 = vector.shape_cast %8 : vector<16xf32> to vector<16x1xf32>
    %cst_3 = arith.constant 3.200000e+01 : f32
    %10 = vector.broadcast %cst_3 : f32 to vector<16x1xf32>
    %11 = arith.divf %9, %10 : vector<16x1xf32>
    %cst_4 = arith.constant 9.99999974E-6 : f32
    %12 = vector.broadcast %cst_4 : f32 to vector<16x1xf32>
    %13 = arith.addf %11, %12 : vector<16x1xf32>
    %14 = math.rsqrt %13 : vector<16x1xf32>
    %15 = vector.broadcast %14 : vector<16x1xf32> to vector<16x32xf32>
    %16 = arith.mulf %6, %15 : vector<16x32xf32>
    %c0_5 = arith.constant 0 : index
    %c0_6 = arith.constant 0 : index
    %17 = vector.load %arg2[%c0_5, %c0_6] : memref<1x32xf32, #tpu.memory_space<vmem>>, vector<1x32xf32>
    %18 = vector.broadcast %17 : vector<1x32xf32> to vector<16x32xf32>
    %19 = arith.mulf %16, %18 : vector<16x32xf32>
    %c0_7 = arith.constant 0 : index
    %c0_8 = arith.constant 0 : index
    %20 = vector.load %arg3[%c0_7, %c0_8] : memref<1x32xf32, #tpu.memory_space<vmem>>, vector<1x32xf32>
    %21 = vector.broadcast %20 : vector<1x32xf32> to vector<16x32xf32>
    %22 = arith.addf %19, %21 : vector<16x32xf32>
    %c0_9 = arith.constant 0 : index
    %c0_10 = arith.constant 0 : index
    %23 = vector.load %arg4[%c0_9, %c0_10] : memref<16x32xf32, #tpu.memory_space<vmem>>, vector<16x32xf32>
    tpu.vector_store %arg4[%c0_9, %c0_10], %22 {strides = array<i32>} : memref<16x32xf32, #tpu.memory_space<vmem>>, vector<16x32xf32>,
    return
  }
  func.func @transform_0(%arg0: i32) -> (i32, i32) {
    %c0_i32 = arith.constant 0 : i32
    %c0_i32_0 = arith.constant 0 : i32
    return %arg0, %c0_i32 : i32, i32
  }
  func.func @transform_1(%arg0: i32) -> (i32, i32) {
    %c0_i32 = arith.constant 0 : i32
    %c0_i32_0 = arith.constant 0 : i32
    %c0_i32_1 = arith.constant 0 : i32
    return %c0_i32, %c0_i32_0 : i32, i32
  }
  func.func @transform_2(%arg0: i32) -> (i32, i32) {
    %c0_i32 = arith.constant 0 : i32
    %c0_i32_0 = arith.constant 0 : i32
    %c0_i32_1 = arith.constant 0 : i32
    return %c0_i32, %c0_i32_0 : i32, i32
  }
  func.func @transform_3(%arg0: i32) -> (i32, i32) {
    %c0_i32 = arith.constant 0 : i32
    %c0_i32_0 = arith.constant 0 : i32
    return %arg0, %c0_i32 : i32, i32
  }
}

</mosaic_0001>

<llo_original>
// kernel: wrapped_transformer_decoder.25
$region0: #{wrapped_transformer_decoder.25}
  #allocation0 [shape = 'u32[]', space=smem, size = 0x4, offset = 0x4, fixed_abs, tag = 'smem constant byte address 0x4 - core index']
  #allocation1 [shape = 'u32[144,128]{1,0:T(1,128)}', space=vmem, size = 0x12000, scoped, tag = 'internal scratch']
  %s0 = inlined_call_operand.vmem [shape: f32[16,32], index: 0, kind: input, shape index: {}]
  %s1 = inlined_call_operand.vmem [shape: f32[16,1], index: 1, kind: output, shape index: {0}]
  %s2 = inlined_call_operand.vmem [shape: f32[16,1], index: 2, kind: output, shape index: {1}]
  %3 = xla_tuple %s1, %s2
  %s4 = sld [smem:[#allocation0]]
  $region22: #{wrapped_transformer_decoder.25} parent=0
    _
  %s6 = ssub.s32 1, %s4
  %s7 = scalar_select 0, %s6, %s4
  // Predicated region
  $region2: #{wrapped_transformer_decoder.25} parent=0 // pred_check
    _
  $region3: #{wrapped_transformer_decoder.25} parent=0 // pred_check_branch
    %9 = sbr.rel (0) target = $region5
  $region4: #{wrapped_transformer_decoder.25} parent=0 // pred_region
    _
  $region5: #{wrapped_transformer_decoder.25} parent=0 // pred_fallthru
    _
  %v10 = vld [vmem:[%s0] sm:$0xff]
  %v11 = vld [vmem:[%s0 + $0x8] sm:$0xff]
  %vm12 = vcmask 261120
  %v13 = vsel %vm12, %v10, 0.0
  %14 = vadd.xlane.f32.xlu0 %v13
  %v15 = vpop.xlane.xlu0 %14
  %v16 = vsel %vm12, %v11, 0.0
  %17 = vadd.xlane.f32.xlu0 %v16
  %v18 = vpop.xlane.xlu0 %17
  %v19 = vrcp.pop 32.0
  %v20 = vmul.f32 %v15, %v19
  %v21 = vmul.f32 %v18, %v19
  %v22 = vsub.f32 %v10, %v20
  %v23 = vsub.f32 %v11, %v21
  %v24 = vmul.f32 %v22, %v22
  %v25 = vmul.f32 %v23, %v23
  %v26 = vsel %vm12, %v24, 0.0
  %27 = vadd.xlane.f32.xlu0 %v26
  %v28 = vpop.xlane.xlu0 %27
  %v29 = vsel %vm12, %v25, 0.0
  %30 = vadd.xlane.f32.xlu0 %v29
  %v31 = vpop.xlane.xlu0 %30
  %v32 = vmul.f32 %v28, %v19
  %v33 = vmul.f32 %v31, %v19
  %vm34 = vcmask 7168
  %35 = vst.msk [vmem:[%s1] sm:$0xff] %vm34, %v20
  %36 = vst.msk [vmem:[%s1 + $0x8] sm:$0xff] %vm34, %v21
  %v37 = vadd.f32 %v32, 1e-05
  %v38 = vadd.f32 %v33, 1e-05
  %v39 = vrsqrt.pop %v37
  %v40 = vrsqrt.pop %v38
  %41 = vst.msk [vmem:[%s2] sm:$0xff] %vm34, %v39
  %42 = vst.msk [vmem:[%s2 + $0x8] sm:$0xff] %vm34, %v40
  // Predicated region
  $region6: #{wrapped_transformer_decoder.25} parent=0 // pred_check
    _
  $region7: #{wrapped_transformer_decoder.25} parent=0 // pred_check_branch
    %44 = sbr.rel (0) target = $region9
  $region8: #{wrapped_transformer_decoder.25} parent=0 // pred_region
    _
  $region9: #{wrapped_transformer_decoder.25} parent=0 // pred_fallthru
    _
  // Predicated region
  $region10: #{wrapped_transformer_decoder.25} parent=0 // pred_check
    _
  $region11: #{wrapped_transformer_decoder.25} parent=0 // pred_check_branch
    %46 = sbr.rel (0) target = $region13
  $region12: #{wrapped_transformer_decoder.25} parent=0 // pred_region
    _
  $region13: #{wrapped_transformer_decoder.25} parent=0 // pred_fallthru
    _
  // Predicated region
  $region14: #{wrapped_transformer_decoder.25} parent=0 // pred_check
    _
  $region15: #{wrapped_transformer_decoder.25} parent=0 // pred_check_branch
    %48 = sbr.rel (0) target = $region17
  $region16: #{wrapped_transformer_decoder.25} parent=0 // pred_region
    _
  $region17: #{wrapped_transformer_decoder.25} parent=0 // pred_fallthru
    _
  // Predicated region
  $region18: #{wrapped_transformer_decoder.25} parent=0 // pred_check
    _
  $region19: #{wrapped_transformer_decoder.25} parent=0 // pred_check_branch
    %50 = sbr.rel (0) target = $region21
  $region20: #{wrapped_transformer_decoder.25} parent=0 // pred_region
    _
  $region21: #{wrapped_transformer_decoder.25} parent=0 // pred_fallthru
    _

// kernel: wrapped_transformer_decoder.26
$region0: #{wrapped_transformer_decoder.26}
  #allocation0 [shape = 'u32[]', space=smem, size = 0x4, offset = 0x4, fixed_abs, tag = 'smem constant byte address 0x4 - core index']
  #allocation1 [shape = 'u32[144,128]{1,0:T(1,128)}', space=vmem, size = 0x12000, scoped, tag = 'internal scratch']
  #allocation2 [shape = 'f32[16,96]{1,0:T(8,128)}', space=vmem, size = 0x2000, scoped, tag = 'scratch operand']
  %s0 = inlined_call_operand.vmem [shape: f32[16,32], index: 0, kind: input, shape index: {}]
  %s1 = inlined_call_operand.vmem [shape: f32[16,1], index: 1, kind: input, shape index: {}]
  %s2 = inlined_call_operand.vmem [shape: f32[16,1], index: 2, kind: input, shape index: {}]
  %s3 = inlined_call_operand.vmem [shape: f32[1,32], index: 3, kind: input, shape index: {}]
  %s4 = inlined_call_operand.vmem [shape: f32[1,32], index: 4, kind: input, shape index: {}]
  %s5 = inlined_call_operand.vmem [shape: bf16[32,96], index: 5, kind: input, shape index: {}]
  %s6 = inlined_call_operand.vmem [shape: f32[1,96], index: 6, kind: input, shape index: {}]
  %s7 = inlined_call_operand.vmem [shape: f32[16,96], index: 7, kind: output, shape index: {}]
  %s8 = sld [smem:[#allocation0]]
  $region46: #{wrapped_transformer_decoder.26} parent=0
    _
  %s10 = ssub.s32 1, %s8
  %s11 = scalar_select 0, %s10, %s8
  // Predicated region
  $region2: #{wrapped_transformer_decoder.26} parent=0 // pred_check
    _
  $region3: #{wrapped_transformer_decoder.26} parent=0 // pred_check_branch
    %13 = sbr.rel (0) target = $region5
  $region4: #{wrapped_transformer_decoder.26} parent=0 // pred_region
    _
  $region5: #{wrapped_transformer_decoder.26} parent=0 // pred_fallthru
    _
  // Predicated region
  $region6: #{wrapped_transformer_decoder.26} parent=0 // pred_check
    _
  $region7: #{wrapped_transformer_decoder.26} parent=0 // pred_check_branch
    %15 = sbr.rel (0) target = $region9
  $region8: #{wrapped_transformer_decoder.26} parent=0 // pred_region
    _
  $region9: #{wrapped_transformer_decoder.26} parent=0 // pred_fallthru
    _
  // Predicated region
  $region10: #{wrapped_transformer_decoder.26} parent=0 // pred_check
    _
  $region11: #{wrapped_transformer_decoder.26} parent=0 // pred_check_branch
    %17 = sbr.rel (0) target = $region13
  $region12: #{wrapped_transformer_decoder.26} parent=0 // pred_region
    _
  $region13: #{wrapped_transformer_decoder.26} parent=0 // pred_fallthru
    _
  // Predicated region
  $region14: #{wrapped_transformer_decoder.26} parent=0 // pred_check
    _
  $region15: #{wrapped_transformer_decoder.26} parent=0 // pred_check_branch
    %19 = sbr.rel (0) target = $region17
  $region16: #{wrapped_transformer_decoder.26} parent=0 // pred_region
    _
  $region17: #{wrapped_transformer_decoder.26} parent=0 // pred_fallthru
    _
  // Predicated region
  $region18: #{wrapped_transformer_decoder.26} parent=0 // pred_check
    _
  $region19: #{wrapped_transformer_decoder.26} parent=0 // pred_check_branch
    %21 = sbr.rel (0) target = $region21
  $region20: #{wrapped_transformer_decoder.26} parent=0 // pred_region
    _
  $region21: #{wrapped_transformer_decoder.26} parent=0 // pred_fallthru
    _
  // Predicated region
  $region22: #{wrapped_transformer_decoder.26} parent=0 // pred_check
    _
  $region23: #{wrapped_transformer_decoder.26} parent=0 // pred_check_branch
    %23 = sbr.rel (0) target = $region25
  $region24: #{wrapped_transformer_decoder.26} parent=0 // pred_region
    _
  $region25: #{wrapped_transformer_decoder.26} parent=0 // pred_fallthru
    _
  // Predicated region
  $region26: #{wrapped_transformer_decoder.26} parent=0 // pred_check
    _
  $region27: #{wrapped_transformer_decoder.26} parent=0 // pred_check_branch
    %25 = sbr.rel (0) target = $region29
  $region28: #{wrapped_transformer_decoder.26} parent=0 // pred_region
    _
  $region29: #{wrapped_transformer_decoder.26} parent=0 // pred_fallthru
    _
  %p27 = scmp.eq.s32.totalorder 0, 0
  // Predicated region
  $region30: #{wrapped_transformer_decoder.26} parent=0 // pred_check
    %p28 = pneg %p27
  $region31: #{wrapped_transformer_decoder.26} parent=0 // pred_check_branch
    %30 = sbr.rel (%p28) target = $region33
  $region32: #{wrapped_transformer_decoder.26} parent=0 // pred_region
    %vm31 = vcmask 785408
    %32 = vst.msk [vmem:[#allocation2] sm:$0xff] %vm31, 0.0
    %33 = vst.msk [vmem:[#allocation2 + $0x8] sm:$0xff] %vm31, 0.0
  $region33: #{wrapped_transformer_decoder.26} parent=0 // pred_fallthru
    _
  %v34 = vld [vmem:[%s0] sm:$0xff]
  %v35 = vld [vmem:[%s0 + $0x8] sm:$0xff]
  %v36 = vld [vmem:[%s1] sm:$0xff]
  %v37 = vld [vmem:[%s1 + $0x8] sm:$0xff]
  %39 = vset.pattern.permute.xlu0 0
  %40 = vperm.xlu0 %39, %v36
  %v41 = vpop.permute.xlu0 %40
  %44 = vset.pattern.permute.xlu0 0
  %45 = vperm.xlu0 %44, %v37
  %v46 = vpop.permute.xlu0 %45
  %v48 = vsub.f32 %v34, %v41
  %v49 = vsub.f32 %v35, %v46
  %v50 = vld [vmem:[%s2] sm:$0xff]
  %v51 = vld [vmem:[%s2 + $0x8] sm:$0xff]
  %53 = vset.pattern.permute.xlu0 0
  %54 = vperm.xlu0 %53, %v50
  %v55 = vpop.permute.xlu0 %54
  %58 = vset.pattern.permute.xlu0 0
  %59 = vperm.xlu0 %58, %v51
  %v60 = vpop.permute.xlu0 %59
  %v62 = vmul.f32 %v48, %v55
  %v63 = vmul.f32 %v49, %v60
  %v64 = vld [vmem:[%s3] sm:$0x1]
  %v66 = vlaneseq
  %v67 = vshrl.u32 %v66, 7
  %v68 = vsub.s32 0, %v67
  %v69 = vrot.slane %v64, %v68
  %v71 = vmul.f32 %v62, %v69
  %v72 = vmul.f32 %v63, %v69
  %v73 = vld [vmem:[%s4] sm:$0x1]
  %v75 = vlaneseq
  %v76 = vshrl.u32 %v75, 7
  %v77 = vsub.s32 0, %v76
  %v78 = vrot.slane %v73, %v77
  %v80 = vadd.f32 %v71, %v78
  %v81 = vadd.f32 %v72, %v78
  %v82 = vld [vmem:[#allocation2] sm:$0xff]
  %v83 = vld [vmem:[#allocation2 + $0x8] sm:$0xff]
  %v84 = vpack.c.bf16 %v81, %v80
  %v85 = vld [vmem:[%s5] sm:$0xf]
  %v86 = vld [vmem:[%s5 + $0x4] sm:$0xf]
  %v87 = vld [vmem:[%s5 + $0x8] sm:$0xf]
  %v88 = vld [vmem:[%s5 + $0xc] sm:$0xf]
  %v93 = vunpack.c.l.b16 %v85
  %v94 = vunpack.c.l.b16 %v86
  %v95 = vunpack.c.l.b16 %v87
  %v96 = vunpack.c.l.b16 %v88
  %v97 = vpack.c.b16 %v94, %v93
  %v98 = vpack.c.b16 %v96, %v95
  %vm101 = vcmask 261120
  %v103 = vsel %vm101, %v84, 0
  %105 = vmatprep.subr.bf16.mxu0 0
  %106 = vmatpush1.bf16.msra.mxu0 %v97
  %107 = vmatprep.subr.bf16.mxu0 0
  %108 = vmatpush1.bf16.msra.mxu0 %v98
  %109 = vmatprep.subr.bf16.mxu0 0
  %110 = vmatpush1.bf16.msra.mxu0 0
  %111 = vmatprep.subr.bf16.mxu0 0
  %112 = vmatpush1.bf16.msra.mxu0 0
  %113 = vmatprep.subr.bf16.mxu0 0
  %114 = vmatpush1.bf16.msra.mxu0 0
  %115 = vmatprep.subr.bf16.mxu0 0
  %116 = vmatpush1.bf16.msra.mxu0 0
  %117 = vmatprep.subr.bf16.mxu0 0
  %118 = vmatpush1.bf16.msra.mxu0 0
  %119 = vmatprep.subr.bf16.mxu0 0
  %120 = vmatpush1.bf16.msra.mxu0 0
  %121 = vmatprep.subr.bf16.mxu0 0
  %122 = vmatpush1.bf16.msra.mxu0 0
  %123 = vmatprep.subr.bf16.mxu0 0
  %124 = vmatpush1.bf16.msra.mxu0 0
  %125 = vmatprep.subr.bf16.mxu0 0
  %126 = vmatpush1.bf16.msra.mxu0 0
  %127 = vmatprep.subr.bf16.mxu0 0
  %128 = vmatpush1.bf16.msra.mxu0 0
  %129 = vmatprep.subr.bf16.mxu0 0
  %130 = vmatpush1.bf16.msra.mxu0 0
  %131 = vmatprep.subr.bf16.mxu0 0
  %132 = vmatpush1.bf16.msra.mxu0 0
  %133 = vmatprep.subr.bf16.mxu0 0
  %134 = vmatpush1.bf16.msra.mxu0 0
  %135 = vmatprep.subr.bf16.mxu0 0
  %136 = vmatpush1.bf16.msra.mxu0 0
  %137 = vmatprep.mubr.bf16.mxu0 0
  %138 = vmatmul.mubr.bf16.gmra.mrb[0].mxu0 %v103
  %v139 = vpop.f32.mrb[0].mxu0
  %v140 = vadd.f32 0.0, %v139
  %v141 = vpop.f32.mrb[0].mxu0
  %v142 = vpop.f32.mrb[0].mxu0
  %v143 = vadd.f32 0.0, %v142
  %v144 = vpop.f32.mrb[0].mxu0
  %145 = vdwg.mxu0
  %v146 = vadd.f32 %v82, %v140
  %v147 = vadd.f32 %v83, %v143
  %vm148 = vcmask 785408
  %149 = vst.msk [vmem:[#allocation2] sm:$0xff] %vm148, %v146
  %150 = vst.msk [vmem:[#allocation2 + $0x8] sm:$0xff] %vm148, %v147
  // Predicated region
  $region34: #{wrapped_transformer_decoder.26} parent=0 // pred_check
    %p151 = pneg %p27
  $region35: #{wrapped_transformer_decoder.26} parent=0 // pred_check_branch
    %153 = sbr.rel (%p151) target = $region37
  $region36: #{wrapped_transformer_decoder.26} parent=0 // pred_region
    %v154 = vld [vmem:[#allocation2] sm:$0xff]
    %v155 = vld [vmem:[#allocation2 + $0x8] sm:$0xff]
    %v156 = vld [vmem:[%s6] sm:$0x1]
    %v158 = vlaneseq
    %v159 = vshrl.u32 %v158, 7
    %v160 = vsub.s32 0, %v159
    %v161 = vrot.slane %v156, %v160
    %v163 = vadd.f32 %v154, %v161
    %v164 = vadd.f32 %v155, %v161
    %165 = vst.msk [vmem:[%s7] sm:$0xff] %vm148, %v163
    %166 = vst.msk [vmem:[%s7 + $0x8] sm:$0xff] %vm148, %v164
  $region37: #{wrapped_transformer_decoder.26} parent=0 // pred_fallthru
    _
  // Predicated region
  $region38: #{wrapped_transformer_decoder.26} parent=0 // pred_check
    _
  $region39: #{wrapped_transformer_decoder.26} parent=0 // pred_check_branch
    %168 = sbr.rel (0) target = $region41
  $region40: #{wrapped_transformer_decoder.26} parent=0 // pred_region
    _
  $region41: #{wrapped_transformer_decoder.26} parent=0 // pred_fallthru
    _
  // Predicated region
  $region42: #{wrapped_transformer_decoder.26} parent=0 // pred_check
    _
  $region43: #{wrapped_transformer_decoder.26} parent=0 // pred_check_branch
    %170 = sbr.rel (0) target = $region45
  $region44: #{wrapped_transformer_decoder.26} parent=0 // pred_region
    _
  $region45: #{wrapped_transformer_decoder.26} parent=0 // pred_fallthru
    _

// kernel: wrapped_transformer_decoder.27
$region0: #{wrapped_transformer_decoder.27}
  #allocation0 [shape = 'u32[]', space=smem, size = 0x4, offset = 0x4, fixed_abs, tag = 'smem constant byte address 0x4 - core index']
  #allocation1 [shape = 'u32[144,128]{1,0:T(1,128)}', space=vmem, size = 0x12000, scoped, tag = 'internal scratch']
  #allocation2 [shape = 'f32[8,32]{1,0:T(8,128)}', space=vmem, size = 0x1000, scoped, tag = 'scratch operand']
  #allocation3 [shape = 'f32[4,8,1]{2,1,0:T(8,128)}', space=vmem, size = 0x4000, scoped, tag = 'scratch operand']
  #allocation4 [shape = 'f32[4,8,1]{2,1,0:T(8,128)}', space=vmem, size = 0x4000, scoped, tag = 'scratch operand']
  %s0 = inlined_call_operand.vmem [shape: f32[2,8,32], index: 0, kind: input, shape index: {}]
  %s1 = inlined_call_operand.vmem [shape: f32[2,8,32], index: 1, kind: input, shape index: {}]
  %s2 = inlined_call_operand.vmem [shape: f32[2,8,32], index: 2, kind: input, shape index: {}]
  %s3 = inlined_call_operand.vmem [shape: f32[2,8,32], index: 3, kind: output, shape index: {}]
  %s4 = sld [smem:[#allocation0]]
  $region53: #{wrapped_transformer_decoder.27} parent=0
    _
  %s6 = ssub.s32 1, %s4
  %s7 = scalar_select 0, %s6, %s4
  loop: start=0, step=1, limit=4
  $region2: #{wrapped_transformer_decoder.27} parent=0 // loop_pre_header
    _
  $region3: #{wrapped_transformer_decoder.27} parent=0 // loop_header
    %s9 = sphi 0, %s13
    %p10 = scmp.ge.s32.totalorder %s9, 4
    %s16 = sphi 0, %s35
    %s17 = sphi 0, %s31
    %s18 = sphi 0, %s27
    %s19 = sphi 0, %s16
    %s20 = sphi 0, %s17
    %s21 = sphi 0, %s18
    %s22 = sphi 0, %s19
    %s23 = sphi 0, %s20
    %s24 = sphi 0, %s21
    %s40 = sphi 0, %s42
    %s43 = sphi 0, %s40
    %s44 = sphi 0, %s43
    %s60 = sphi 0, %s44
    %s68 = sphi 0, %s70
    %s71 = sphi 0, %s68
    %s72 = sphi 0, %s71
    %s88 = sphi 0, %s72
    %s96 = sphi 0, %s98
    %s99 = sphi 0, %s96
    %s100 = sphi 0, %s99
    %s116 = sphi 0, %s100
    %s124 = sphi 0, %s126
    %s127 = sphi 0, %s124
    %s128 = sphi 0, %s127
    %s144 = sphi 0, %s128
  $region4: #{wrapped_transformer_decoder.27} parent=0 // loop_header_branch
    %12 = sbr.rel (%p10) target = $region8
  $region5: #{wrapped_transformer_decoder.27} parent=0 // loop_body
    %s14 = ssub.s32 %s9, 1
    %s15 = ssub.s32 %s9, 2
    %s25 = sadd.s32 1, %s18
    %p26 = scmp.ge.s32.totalorder %s25, 1
    %s27 = scalar_select %p26, 0, %s25
    %s28 = sadd.s32 1, %s17
    %s29 = scalar_select %p26, %s28, %s17
    %p30 = scmp.ge.s32.totalorder %s29, 1
    %s31 = scalar_select %p30, 0, %s29
    %s32 = sadd.s32 1, %s16
    %s33 = scalar_select %p30, %s32, %s16
    %p34 = scmp.ge.s32.totalorder %s33, 2
    %s35 = scalar_select %p34, 0, %s33
    %s36 = ssub.s32 %s16, %s35
    %s37 = ssub.s32 %s17, %s31
    %s38 = sor.u32 %s36, %s37
    %p39 = scmp.eq.s32.totalorder %s38, 0
    %s41 = sadd.s32 %s40, 1
    %s42 = scalar_select %p39, %s40, %s41
    %p45 = pneg %p39
    %p46 = scmp.eq.s32.totalorder %s9, 1
    %p47 = por %p45, %p46
    %p48 = scmp.ne.s32.totalorder %s40, %s43
    %p49 = scmp.eq.s32.totalorder %s9, 0
    %p50 = por %p48, %p49
    %p51 = scmp.ne.s32.totalorder %s40, %s43
    %p52 = scmp.eq.s32.totalorder %s14, 1
    %p53 = por %p51, %p52
    %p54 = scmp.ne.s32.totalorder %s43, %s44
    %p55 = scmp.eq.s32.totalorder %s14, 0
    %p56 = por %p54, %p55
    %p57 = scmp.ne.s32.totalorder %s43, %s44
    %p58 = scmp.eq.s32.totalorder %s15, 1
    %p59 = por %p57, %p58
    %p61 = scmp.ne.s32.totalorder %s44, %s60
    %p62 = scmp.eq.s32.totalorder %s15, 0
    %p63 = por %p61, %p62
    %s64 = ssub.s32 %s16, %s35
    %s65 = ssub.s32 %s18, %s27
    %s66 = sor.u32 %s64, %s65
    %p67 = scmp.eq.s32.totalorder %s66, 0
    %s69 = sadd.s32 %s68, 1
    %s70 = scalar_select %p67, %s68, %s69
    %p73 = pneg %p67
    %p74 = scmp.eq.s32.totalorder %s9, 1
    %p75 = por %p73, %p74
    %p76 = scmp.ne.s32.totalorder %s68, %s71
    %p77 = scmp.eq.s32.totalorder %s9, 0
    %p78 = por %p76, %p77
    %p79 = scmp.ne.s32.totalorder %s68, %s71
    %p80 = scmp.eq.s32.totalorder %s14, 1
    %p81 = por %p79, %p80
    %p82 = scmp.ne.s32.totalorder %s71, %s72
    %p83 = scmp.eq.s32.totalorder %s14, 0
    %p84 = por %p82, %p83
    %p85 = scmp.ne.s32.totalorder %s71, %s72
    %p86 = scmp.eq.s32.totalorder %s15, 1
    %p87 = por %p85, %p86
    %p89 = scmp.ne.s32.totalorder %s72, %s88
    %p90 = scmp.eq.s32.totalorder %s15, 0
    %p91 = por %p89, %p90
    %s92 = ssub.s32 %s16, %s35
    %s93 = ssub.s32 %s18, %s27
    %s94 = sor.u32 %s92, %s93
    %p95 = scmp.eq.s32.totalorder %s94, 0
    %s97 = sadd.s32 %s96, 1
    %s98 = scalar_select %p95, %s96, %s97
    %p101 = pneg %p95
    %p102 = scmp.eq.s32.totalorder %s9, 1
    %p103 = por %p101, %p102
    %p104 = scmp.ne.s32.totalorder %s96, %s99
    %p105 = scmp.eq.s32.totalorder %s9, 0
    %p106 = por %p104, %p105
    %p107 = scmp.ne.s32.totalorder %s96, %s99
    %p108 = scmp.eq.s32.totalorder %s14, 1
    %p109 = por %p107, %p108
    %p110 = scmp.ne.s32.totalorder %s99, %s100
    %p111 = scmp.eq.s32.totalorder %s14, 0
    %p112 = por %p110, %p111
    %p113 = scmp.ne.s32.totalorder %s99, %s100
    %p114 = scmp.eq.s32.totalorder %s15, 1
    %p115 = por %p113, %p114
    %p117 = scmp.ne.s32.totalorder %s100, %s116
    %p118 = scmp.eq.s32.totalorder %s15, 0
    %p119 = por %p117, %p118
    %s120 = ssub.s32 %s16, %s35
    %s121 = ssub.s32 %s17, %s31
    %s122 = sor.u32 %s120, %s121
    %p123 = scmp.eq.s32.totalorder %s122, 0
    %s125 = sadd.s32 %s124, 1
    %s126 = scalar_select %p123, %s124, %s125
    %p129 = pneg %p123
    %p130 = scmp.eq.s32.totalorder %s9, 1
    %p131 = por %p129, %p130
    %p132 = scmp.ne.s32.totalorder %s124, %s127
    %p133 = scmp.eq.s32.totalorder %s9, 0
    %p134 = por %p132, %p133
    %p135 = scmp.ne.s32.totalorder %s124, %s127
    %p136 = scmp.eq.s32.totalorder %s14, 1
    %p137 = por %p135, %p136
    %p138 = scmp.ne.s32.totalorder %s127, %s128
    %p139 = scmp.eq.s32.totalorder %s14, 0
    %p140 = por %p138, %p139
    %p141 = scmp.ne.s32.totalorder %s127, %s128
    %p142 = scmp.eq.s32.totalorder %s15, 1
    %p143 = por %p141, %p142
    %p145 = scmp.ne.s32.totalorder %s128, %s144
    %p146 = scmp.eq.s32.totalorder %s15, 0
    %p147 = por %p145, %p146
    %p148 = scmp.le.s32.totalorder 1, %s9
    %p149 = scmp.lt.s32.totalorder %s9, 3
    %p150 = pnand %p148, %p149
    %p151 = pneg %p150
    // Predicated region
    $region9: #{wrapped_transformer_decoder.27} parent=5 // pred_check
      _
    $region10: #{wrapped_transformer_decoder.27} parent=5 // pred_check_branch
      %153 = sbr.rel (%p150) target = $region12
    $region11: #{wrapped_transformer_decoder.27} parent=5 // pred_region
      %s154 = ssub.s32 %s9, 1
    $region12: #{wrapped_transformer_decoder.27} parent=5 // pred_fallthru
      _
    %p155 = scmp.lt.s32.totalorder %s9, 2
    // Predicated region
    $region13: #{wrapped_transformer_decoder.27} parent=5 // pred_check
      %p156 = pneg %p155
    $region14: #{wrapped_transformer_decoder.27} parent=5 // pred_check_branch
      %158 = sbr.rel (%p156) target = $region16
    $region15: #{wrapped_transformer_decoder.27} parent=5 // pred_region
      // Predicated region
      $region17: #{wrapped_transformer_decoder.27} parent=15 // pred_check
        %p159 = pneg %p50
      $region18: #{wrapped_transformer_decoder.27} parent=15 // pred_check_branch
        %161 = sbr.rel (%p159) target = $region20
      $region19: #{wrapped_transformer_decoder.27} parent=15 // pred_region
        %p162 = scmp.lt.s32.totalorder %s16, 1
        %s163 = scalar_select %p162, %s16, 1
        %p164 = scmp.lt.s32.totalorder %s17, 0
        %s165 = scalar_select %p164, %s17, 0
        %s166 = sadd.s32 %s165, %s163
        %s167 = smul.addr %s166, 8
        %s168 = scalar_lea.vmem %s0, %s167
      $region20: #{wrapped_transformer_decoder.27} parent=15 // pred_fallthru
        _
      // Predicated region
      $region21: #{wrapped_transformer_decoder.27} parent=15 // pred_check
        %p169 = pneg %p78
      $region22: #{wrapped_transformer_decoder.27} parent=15 // pred_check_branch
        %171 = sbr.rel (%p169) target = $region24
      $region23: #{wrapped_transformer_decoder.27} parent=15 // pred_region
        %p172 = scmp.lt.s32.totalorder %s16, 1
        %s173 = scalar_select %p172, %s16, 1
        %p174 = scmp.lt.s32.totalorder %s18, 0
        %s175 = scalar_select %p174, %s18, 0
        %s176 = sadd.s32 %s175, %s173
        %s177 = smul.addr %s176, 8
        %s178 = scalar_lea.vmem %s1, %s177
      $region24: #{wrapped_transformer_decoder.27} parent=15 // pred_fallthru
        _
      // Predicated region
      $region25: #{wrapped_transformer_decoder.27} parent=15 // pred_check
        %p179 = pneg %p106
      $region26: #{wrapped_transformer_decoder.27} parent=15 // pred_check_branch
        %181 = sbr.rel (%p179) target = $region28
      $region27: #{wrapped_transformer_decoder.27} parent=15 // pred_region
        %p182 = scmp.lt.s32.totalorder %s16, 1
        %s183 = scalar_select %p182, %s16, 1
        %p184 = scmp.lt.s32.totalorder %s18, 0
        %s185 = scalar_select %p184, %s18, 0
        %s186 = sadd.s32 %s185, %s183
        %s187 = smul.addr %s186, 8
        %s188 = scalar_lea.vmem %s2, %s187
      $region28: #{wrapped_transformer_decoder.27} parent=15 // pred_fallthru
        _
    $region16: #{wrapped_transformer_decoder.27} parent=5 // pred_fallthru
      _
    %p189 = scmp.le.s32.totalorder 1, %s9
    %p190 = scmp.lt.s32.totalorder %s9, 3
    %p191 = pnand %p189, %p190
    %p192 = pneg %p191
    // Predicated region
    $region29: #{wrapped_transformer_decoder.27} parent=5 // pred_check
      _
    $region30: #{wrapped_transformer_decoder.27} parent=5 // pred_check_branch
      %194 = sbr.rel (%p191) target = $region32
    $region31: #{wrapped_transformer_decoder.27} parent=5 // pred_region
      %s195 = ssub.s32 %s9, 1
      %p196 = scmp.lt.s32.totalorder %s19, 1
      %s197 = scalar_select %p196, %s19, 1
      %p198 = scmp.lt.s32.totalorder %s20, 0
      %s199 = scalar_select %p198, %s20, 0
      %s200 = sadd.s32 %s199, %s197
      %s201 = smul.addr %s200, 8
      %s202 = scalar_lea.vmem %s0, %s201
      %p203 = pneg %p56
      %p204 = pneg %p53
      %p205 = scmp.lt.s32.totalorder %s19, 1
      %s206 = scalar_select %p205, %s19, 1
      %p207 = scmp.lt.s32.totalorder %s21, 0
      %s208 = scalar_select %p207, %s21, 0
      %s209 = sadd.s32 %s208, %s206
      %s210 = smul.addr %s209, 8
      %s211 = scalar_lea.vmem %s1, %s210
      %p212 = pneg %p84
      %p213 = pneg %p81
      %p214 = scmp.lt.s32.totalorder %s19, 1
      %s215 = scalar_select %p214, %s19, 1
      %p216 = scmp.lt.s32.totalorder %s21, 0
      %s217 = scalar_select %p216, %s21, 0
      %s218 = sadd.s32 %s217, %s215
      %s219 = smul.addr %s218, 8
      %s220 = scalar_lea.vmem %s2, %s219
      %p221 = pneg %p112
      %p222 = pneg %p109
      %p223 = pneg %p140
      %p224 = pneg %p137
      %p225 = scmp.lt.s32.totalorder %s19, 1
      %s226 = scalar_select %p225, %s19, 1
      %p227 = scmp.lt.s32.totalorder %s20, 0
      %s228 = scalar_select %p227, %s20, 0
      %s229 = sadd.s32 %s228, %s226
      %s230 = smul.addr %s229, 8
      %s231 = scalar_lea.vmem %s3, %s230
      %p232 = scmp.lt.s32.totalorder %s19, 1
      %s233 = scalar_select %p232, %s19, 1
      %p234 = scmp.lt.s32.totalorder %s20, 0
      %s235 = scalar_select %p234, %s20, 0
      %s236 = sadd.s32 %s235, %s233
      %s237 = smul.addr %s236, 8
      %s238 = scalar_lea.vmem %s0, %s237
      %p239 = scmp.lt.s32.totalorder %s19, 1
      %s240 = scalar_select %p239, %s19, 1
      %p241 = scmp.lt.s32.totalorder %s21, 0
      %s242 = scalar_select %p241, %s21, 0
      %s243 = sadd.s32 %s242, %s240
      %s244 = smul.addr %s243, 8
      %s245 = scalar_lea.vmem %s1, %s244
      %p246 = scmp.lt.s32.totalorder %s19, 1
      %s247 = scalar_select %p246, %s19, 1
      %p248 = scmp.lt.s32.totalorder %s21, 0
      %s249 = scalar_select %p248, %s21, 0
      %s250 = sadd.s32 %s249, %s247
      %s251 = smul.addr %s250, 8
      %s252 = scalar_lea.vmem %s2, %s251
      %p253 = scmp.lt.s32.totalorder %s19, 1
      %s254 = scalar_select %p253, %s19, 1
      %p255 = scmp.lt.s32.totalorder %s20, 0
      %s256 = scalar_select %p255, %s20, 0
      %s257 = sadd.s32 %s256, %s254
      %s258 = smul.addr %s257, 8
      %s259 = scalar_lea.vmem %s3, %s258
      %p261 = scmp.eq.s32.totalorder %s21, 0
      // Predicated region
      $region33: #{wrapped_transformer_decoder.27} parent=31 // pred_check
        %p262 = pneg %p261
      $region34: #{wrapped_transformer_decoder.27} parent=31 // pred_check_branch
        %264 = sbr.rel (%p262) target = $region36
      $region35: #{wrapped_transformer_decoder.27} parent=31 // pred_region
        %vm265 = vcmask 7168
        %266 = vst.msk [vmem:[#allocation3] sm:$0xff] %vm265, -inf
        %267 = vst.msk [vmem:[#allocation3 + $0x8] sm:$0xff] %vm265, -inf
        %268 = vst.msk [vmem:[#allocation3 + $0x10] sm:$0xff] %vm265, -inf
        %269 = vst.msk [vmem:[#allocation3 + $0x18] sm:$0xff] %vm265, -inf
        %270 = vst.msk [vmem:[#allocation4] sm:$0xff] %vm265, 0.0
        %271 = vst.msk [vmem:[#allocation4 + $0x8] sm:$0xff] %vm265, 0.0
        %272 = vst.msk [vmem:[#allocation4 + $0x10] sm:$0xff] %vm265, 0.0
        %273 = vst.msk [vmem:[#allocation4 + $0x18] sm:$0xff] %vm265, 0.0
        %vm274 = vcmask 261120
        %275 = vst.msk [vmem:[#allocation2] sm:$0xff] %vm274, 0.0
      $region36: #{wrapped_transformer_decoder.27} parent=31 // pred_fallthru
        _
      %v276 = vld [vmem:[%s238] sm:$0xff]
      %v277 = vmul.f32 %v276, 0.35355338
      %v278 = vpack.c.bf16 %v277, %v277
      %v279 = vld [vmem:[%s245] sm:$0xff]
      %v280 = vpack.c.bf16 %v279, %v279
      %v281 = vld [vmem:[%s252] sm:$0xff]
      %v282 = vpack.c.bf16 %v281, %v281
      %vm283 = vcmask 64512
      %v285 = vsel %vm283, %v278, 0
      %v288 = vsel %vm283, %v280, 0
      %290 = vmatprep.subr.bf16.mxu0 0
      %291 = vmatpush1.bf16.xpose.msra.mxu0 %v288
      %292 = vmatprep.subr.bf16.mxu0 0
      %293 = vmatpush1.bf16.xpose.msra.mxu0 0
      %294 = vmatprep.subr.bf16.mxu0 0
      %295 = vmatpush1.bf16.xpose.msra.mxu0 0
      %296 = vmatprep.subr.bf16.mxu0 0
      %297 = vmatpush1.bf16.xpose.msra.mxu0 0
      %298 = vmatprep.subr.bf16.mxu0 0
      %299 = vmatpush1.bf16.xpose.msra.mxu0 0
      %300 = vmatprep.subr.bf16.mxu0 0
      %301 = vmatpush1.bf16.xpose.msra.mxu0 0
      %302 = vmatprep.subr.bf16.mxu0 0
      %303 = vmatpush1.bf16.xpose.msra.mxu0 0
      %304 = vmatprep.subr.bf16.mxu0 0
      %305 = vmatpush1.bf16.xpose.msra.mxu0 0
      %306 = vmatprep.subr.bf16.mxu0 0
      %307 = vmatpush1.bf16.xpose.msra.mxu0 0
      %308 = vmatprep.subr.bf16.mxu0 0
      %309 = vmatpush1.bf16.xpose.msra.mxu0 0
      %310 = vmatprep.subr.bf16.mxu0 0
      %311 = vmatpush1.bf16.xpose.msra.mxu0 0
      %312 = vmatprep.subr.bf16.mxu0 0
      %313 = vmatpush1.bf16.xpose.msra.mxu0 0
      %314 = vmatprep.subr.bf16.mxu0 0
      %315 = vmatpush1.bf16.xpose.msra.mxu0 0
      %316 = vmatprep.subr.bf16.mxu0 0
      %317 = vmatpush1.bf16.xpose.msra.mxu0 0
      %318 = vmatprep.subr.bf16.mxu0 0
      %319 = vmatpush1.bf16.xpose.msra.mxu0 0
      %320 = vmatprep.subr.bf16.mxu0 0
      %321 = vmatpush1.bf16.xpose.msra.mxu0 0
      %322 = vmatprep.mubr.bf16.mxu0 0
      %323 = vmatmul.mubr.bf16.gmra.mrb[0].mxu0 %v285
      %v324 = vpop.f32.mrb[0].mxu0
      %v325 = vadd.f32 0.0, %v324
      %v326 = vpop.f32.mrb[0].mxu0
      %v327 = vpop.f32.mrb[0].mxu0
      %v328 = vpop.f32.mrb[0].mxu0
      %329 = vdwg.mxu0
      %v330 = vld [vmem:[#allocation3] sm:$0xff]
      %v331 = vsel %vm283, %v325, -inf
      %332 = vmax.xlane.f32.xlu0 %v331
      %v333 = vpop.xlane.xlu0 %332
      %v334 = vmax.f32 %v330, %v333
      %v335 = vsub.f32 %v330, %v334
      %v336 = vmul.f32 %v335, 1.442695
      %v337 = vpow.pop %v336
      %339 = vset.pattern.permute.xlu0 0
      %340 = vperm.xlu0 %339, %v334
      %v341 = vpop.permute.xlu0 %340
      %v343 = vsub.f32 %v325, %v341
      %v344 = vmul.f32 %v343, 1.442695
      %v345 = vpow.pop %v344
      %v346 = vld [vmem:[#allocation4] sm:$0xff]
      %v347 = vmul.f32 %v337, %v346
      %v348 = vsel %vm283, %v345, 0.0
      %349 = vadd.xlane.f32.xlu0 %v348
      %v350 = vpop.xlane.xlu0 %349
      %v351 = vadd.f32 %v347, %v350
      %vm352 = vcmask 7168
      %353 = vst.msk [vmem:[#allocation4] sm:$0xff] %vm352, %v351
      %v354 = vld [vmem:[#allocation2] sm:$0xff]
      %356 = vset.pattern.permute.xlu0 0
      %357 = vperm.xlu0 %356, %v337
      %v358 = vpop.permute.xlu0 %357
      %v360 = vmul.f32 %v358, %v354
      %v361 = vpack.c.bf16 %v345, %v345
      %v363 = vsel %vm283, %v361, 0
      %vm365 = vcmask 1043456
      %v367 = vsel %vm365, %v282, 0
      %369 = vmatprep.subr.bf16.mxu0 0
      %370 = vmatpush1.bf16.msra.mxu0 %v367
      %371 = vmatprep.subr.bf16.mxu0 0
      %372 = vmatpush1.bf16.msra.mxu0 0
      %373 = vmatprep.subr.bf16.mxu0 0
      %374 = vmatpush1.bf16.msra.mxu0 0
      %375 = vmatprep.subr.bf16.mxu0 0
      %376 = vmatpush1.bf16.msra.mxu0 0
      %377 = vmatprep.subr.bf16.mxu0 0
      %378 = vmatpush1.bf16.msra.mxu0 0
      %379 = vmatprep.subr.bf16.mxu0 0
      %380 = vmatpush1.bf16.msra.mxu0 0
      %381 = vmatprep.subr.bf16.mxu0 0
      %382 = vmatpush1.bf16.msra.mxu0 0
      %383 = vmatprep.subr.bf16.mxu0 0
      %384 = vmatpush1.bf16.msra.mxu0 0
      %385 = vmatprep.subr.bf16.mxu0 0
      %386 = vmatpush1.bf16.msra.mxu0 0
      %387 = vmatprep.subr.bf16.mxu0 0
      %388 = vmatpush1.bf16.msra.mxu0 0
      %389 = vmatprep.subr.bf16.mxu0 0
      %390 = vmatpush1.bf16.msra.mxu0 0
      %391 = vmatprep.subr.bf16.mxu0 0
      %392 = vmatpush1.bf16.msra.mxu0 0
      %393 = vmatprep.subr.bf16.mxu0 0
      %394 = vmatpush1.bf16.msra.mxu0 0
      %395 = vmatprep.subr.bf16.mxu0 0
      %396 = vmatpush1.bf16.msra.mxu0 0
      %397 = vmatprep.subr.bf16.mxu0 0
      %398 = vmatpush1.bf16.msra.mxu0 0
      %399 = vmatprep.subr.bf16.mxu0 0
      %400 = vmatpush1.bf16.msra.mxu0 0
      %401 = vmatprep.mubr.bf16.mxu0 0
      %402 = vmatmul.mubr.bf16.gmra.mrb[0].mxu0 %v363
      %v403 = vpop.f32.mrb[0].mxu0
      %v404 = vadd.f32 0.0, %v403
      %v405 = vpop.f32.mrb[0].mxu0
      %v406 = vpop.f32.mrb[0].mxu0
      %v407 = vpop.f32.mrb[0].mxu0
      %408 = vdwg.mxu0
      %v409 = vadd.f32 %v360, %v404
      %410 = vst.msk [vmem:[#allocation2] sm:$0xff] %vm283, %v409
      %411 = vst.msk [vmem:[#allocation3] sm:$0xff] %vm352, %v334
      %413 = vrot.lane.b32.xlu0 %v278, 120
      %v414 = vpop.permute.xlu0 %413
      %416 = vrot.lane.b32.xlu0 %v280, 120
      %v417 = vpop.permute.xlu0 %416
      %v419 = vsel %vm283, %v414, 0
      %v422 = vsel %vm283, %v417, 0
      %424 = vmatprep.subr.bf16.mxu0 0
      %425 = vmatpush1.bf16.xpose.msra.mxu0 %v422
      %426 = vmatprep.subr.bf16.mxu0 0
      %427 = vmatpush1.bf16.xpose.msra.mxu0 0
      %428 = vmatprep.subr.bf16.mxu0 0
      %429 = vmatpush1.bf16.xpose.msra.mxu0 0
      %430 = vmatprep.subr.bf16.mxu0 0
      %431 = vmatpush1.bf16.xpose.msra.mxu0 0
      %432 = vmatprep.subr.bf16.mxu0 0
      %433 = vmatpush1.bf16.xpose.msra.mxu0 0
      %434 = vmatprep.subr.bf16.mxu0 0
      %435 = vmatpush1.bf16.xpose.msra.mxu0 0
      %436 = vmatprep.subr.bf16.mxu0 0
      %437 = vmatpush1.bf16.xpose.msra.mxu0 0
      %438 = vmatprep.subr.bf16.mxu0 0
      %439 = vmatpush1.bf16.xpose.msra.mxu0 0
      %440 = vmatprep.subr.bf16.mxu0 0
      %441 = vmatpush1.bf16.xpose.msra.mxu0 0
      %442 = vmatprep.subr.bf16.mxu0 0
      %443 = vmatpush1.bf16.xpose.msra.mxu0 0
      %444 = vmatprep.subr.bf16.mxu0 0
      %445 = vmatpush1.bf16.xpose.msra.mxu0 0
      %446 = vmatprep.subr.bf16.mxu0 0
      %447 = vmatpush1.bf16.xpose.msra.mxu0 0
      %448 = vmatprep.subr.bf16.mxu0 0
      %449 = vmatpush1.bf16.xpose.msra.mxu0 0
      %450 = vmatprep.subr.bf16.mxu0 0
      %451 = vmatpush1.bf16.xpose.msra.mxu0 0
      %452 = vmatprep.subr.bf16.mxu0 0
      %453 = vmatpush1.bf16.xpose.msra.mxu0 0
      %454 = vmatprep.subr.bf16.mxu0 0
      %455 = vmatpush1.bf16.xpose.msra.mxu0 0
      %456 = vmatprep.mubr.bf16.mxu0 0
      %457 = vmatmul.mubr.bf16.gmra.mrb[0].mxu0 %v419
      %v458 = vpop.f32.mrb[0].mxu0
      %v459 = vadd.f32 0.0, %v458
      %v460 = vpop.f32.mrb[0].mxu0
      %v461 = vpop.f32.mrb[0].mxu0
      %v462 = vpop.f32.mrb[0].mxu0
      %463 = vdwg.mxu0
      %s464 = scalar_lea.vmem [#allocation3], 8
      %v465 = vld [vmem:[%s464] sm:$0xff]
      %v466 = vsel %vm283, %v459, -inf
      %467 = vmax.xlane.f32.xlu0 %v466
      %v468 = vpop.xlane.xlu0 %467
      %v469 = vmax.f32 %v465, %v468
      %v470 = vsub.f32 %v465, %v469
      %v471 = vmul.f32 %v470, 1.442695
      %v472 = vpow.pop %v471
      %474 = vset.pattern.permute.xlu0 0
      %475 = vperm.xlu0 %474, %v469
      %v476 = vpop.permute.xlu0 %475
      %v478 = vsub.f32 %v459, %v476
      %v479 = vmul.f32 %v478, 1.442695
      %v480 = vpow.pop %v479
      %s481 = scalar_lea.vmem [#allocation4], 8
      %v482 = vld [vmem:[%s481] sm:$0xff]
      %v483 = vmul.f32 %v472, %v482
      %v484 = vsel %vm283, %v480, 0.0
      %485 = vadd.xlane.f32.xlu0 %v484
      %v486 = vpop.xlane.xlu0 %485
      %v487 = vadd.f32 %v483, %v486
      %488 = vst.msk [vmem:[%s481] sm:$0xff] %vm352, %v487
      %v489 = vld [vmem:[#allocation2] sm:$0xff]
      %491 = vset.pattern.permute.xlu0 0
      %492 = vperm.xlu0 %491, %v472
      %v493 = vpop.permute.xlu0 %492
      %v495 = vmul.f32 %v493, %v489
      %v496 = vpack.c.bf16 %v480, %v480
      %498 = vrot.lane.b32.xlu0 %v282, 120
      %v499 = vpop.permute.xlu0 %498
      %v501 = vsel %vm283, %v496, 0
      %v504 = vsel %vm365, %v499, 0
      %506 = vmatprep.subr.bf16.mxu0 0
      %507 = vmatpush1.bf16.msra.mxu0 %v504
      %508 = vmatprep.subr.bf16.mxu0 0
      %509 = vmatpush1.bf16.msra.mxu0 0
      %510 = vmatprep.subr.bf16.mxu0 0
      %511 = vmatpush1.bf16.msra.mxu0 0
      %512 = vmatprep.subr.bf16.mxu0 0
      %513 = vmatpush1.bf16.msra.mxu0 0
      %514 = vmatprep.subr.bf16.mxu0 0
      %515 = vmatpush1.bf16.msra.mxu0 0
      %516 = vmatprep.subr.bf16.mxu0 0
      %517 = vmatpush1.bf16.msra.mxu0 0
      %518 = vmatprep.subr.bf16.mxu0 0
      %519 = vmatpush1.bf16.msra.mxu0 0
      %520 = vmatprep.subr.bf16.mxu0 0
      %521 = vmatpush1.bf16.msra.mxu0 0
      %522 = vmatprep.subr.bf16.mxu0 0
      %523 = vmatpush1.bf16.msra.mxu0 0
      %524 = vmatprep.subr.bf16.mxu0 0
      %525 = vmatpush1.bf16.msra.mxu0 0
      %526 = vmatprep.subr.bf16.mxu0 0
      %527 = vmatpush1.bf16.msra.mxu0 0
      %528 = vmatprep.subr.bf16.mxu0 0
      %529 = vmatpush1.bf16.msra.mxu0 0
      %530 = vmatprep.subr.bf16.mxu0 0
      %531 = vmatpush1.bf16.msra.mxu0 0
      %532 = vmatprep.subr.bf16.mxu0 0
      %533 = vmatpush1.bf16.msra.mxu0 0
      %534 = vmatprep.subr.bf16.mxu0 0
      %535 = vmatpush1.bf16.msra.mxu0 0
      %536 = vmatprep.subr.bf16.mxu0 0
      %537 = vmatpush1.bf16.msra.mxu0 0
      %538 = vmatprep.mubr.bf16.mxu0 0
      %539 = vmatmul.mubr.bf16.gmra.mrb[0].mxu0 %v501
      %v540 = vpop.f32.mrb[0].mxu0
      %v541 = vadd.f32 0.0, %v540
      %v542 = vpop.f32.mrb[0].mxu0
      %v543 = vpop.f32.mrb[0].mxu0
      %v544 = vpop.f32.mrb[0].mxu0
      %545 = vdwg.mxu0
      %547 = vrot.lane.b32.xlu0 %v541, 8
      %v548 = vpop.permute.xlu0 %547
      %v550 = vadd.f32 %v495, %v548
      %vm551 = vcmask 130112
      %552 = vst.msk [vmem:[#allocation2] sm:$0xff] %vm551, %v550
      %553 = vst.msk [vmem:[%s464] sm:$0xff] %vm352, %v469
      %554 = vrot.lane.b32.xlu0 %v278, 112
      %v555 = vpop.permute.xlu0 %554
      %556 = vrot.lane.b32.xlu0 %v280, 112
      %v557 = vpop.permute.xlu0 %556
      %v559 = vsel %vm283, %v555, 0
      %v562 = vsel %vm283, %v557, 0
      %564 = vmatprep.subr.bf16.mxu0 0
      %565 = vmatpush1.bf16.xpose.msra.mxu0 %v562
      %566 = vmatprep.subr.bf16.mxu0 0
      %567 = vmatpush1.bf16.xpose.msra.mxu0 0
      %568 = vmatprep.subr.bf16.mxu0 0
      %569 = vmatpush1.bf16.xpose.msra.mxu0 0
      %570 = vmatprep.subr.bf16.mxu0 0
      %571 = vmatpush1.bf16.xpose.msra.mxu0 0
      %572 = vmatprep.subr.bf16.mxu0 0
      %573 = vmatpush1.bf16.xpose.msra.mxu0 0
      %574 = vmatprep.subr.bf16.mxu0 0
      %575 = vmatpush1.bf16.xpose.msra.mxu0 0
      %576 = vmatprep.subr.bf16.mxu0 0
      %577 = vmatpush1.bf16.xpose.msra.mxu0 0
      %578 = vmatprep.subr.bf16.mxu0 0
      %579 = vmatpush1.bf16.xpose.msra.mxu0 0
      %580 = vmatprep.subr.bf16.mxu0 0
      %581 = vmatpush1.bf16.xpose.msra.mxu0 0
      %582 = vmatprep.subr.bf16.mxu0 0
      %583 = vmatpush1.bf16.xpose.msra.mxu0 0
      %584 = vmatprep.subr.bf16.mxu0 0
      %585 = vmatpush1.bf16.xpose.msra.mxu0 0
      %586 = vmatprep.subr.bf16.mxu0 0
      %587 = vmatpush1.bf16.xpose.msra.mxu0 0
      %588 = vmatprep.subr.bf16.mxu0 0
      %589 = vmatpush1.bf16.xpose.msra.mxu0 0
      %590 = vmatprep.subr.bf16.mxu0 0
      %591 = vmatpush1.bf16.xpose.msra.mxu0 0
      %592 = vmatprep.subr.bf16.mxu0 0
      %593 = vmatpush1.bf16.xpose.msra.mxu0 0
      %594 = vmatprep.subr.bf16.mxu0 0
      %595 = vmatpush1.bf16.xpose.msra.mxu0 0
      %596 = vmatprep.mubr.bf16.mxu0 0
      %597 = vmatmul.mubr.bf16.gmra.mrb[0].mxu0 %v559
      %v598 = vpop.f32.mrb[0].mxu0
      %v599 = vadd.f32 0.0, %v598
      %v600 = vpop.f32.mrb[0].mxu0
      %v601 = vpop.f32.mrb[0].mxu0
      %v602 = vpop.f32.mrb[0].mxu0
      %603 = vdwg.mxu0
      %s604 = scalar_lea.vmem [#allocation3], 16
      %v605 = vld [vmem:[%s604] sm:$0xff]
      %v606 = vsel %vm283, %v599, -inf
      %607 = vmax.xlane.f32.xlu0 %v606
      %v608 = vpop.xlane.xlu0 %607
      %v609 = vmax.f32 %v605, %v608
      %v610 = vsub.f32 %v605, %v609
      %v611 = vmul.f32 %v610, 1.442695
      %v612 = vpow.pop %v611
      %614 = vset.pattern.permute.xlu0 0
      %615 = vperm.xlu0 %614, %v609
      %v616 = vpop.permute.xlu0 %615
      %v618 = vsub.f32 %v599, %v616
      %v619 = vmul.f32 %v618, 1.442695
      %v620 = vpow.pop %v619
      %s621 = scalar_lea.vmem [#allocation4], 16
      %v622 = vld [vmem:[%s621] sm:$0xff]
      %v623 = vmul.f32 %v612, %v622
      %v624 = vsel %vm283, %v620, 0.0
      %625 = vadd.xlane.f32.xlu0 %v624
      %v626 = vpop.xlane.xlu0 %625
      %v627 = vadd.f32 %v623, %v626
      %628 = vst.msk [vmem:[%s621] sm:$0xff] %vm352, %v627
      %v629 = vld [vmem:[#allocation2] sm:$0xff]
      %631 = vset.pattern.permute.xlu0 0
      %632 = vperm.xlu0 %631, %v612
      %v633 = vpop.permute.xlu0 %632
      %v635 = vmul.f32 %v633, %v629
      %v636 = vpack.c.bf16 %v620, %v620
      %637 = vrot.lane.b32.xlu0 %v282, 112
      %v638 = vpop.permute.xlu0 %637
      %v640 = vsel %vm283, %v636, 0
      %v643 = vsel %vm365, %v638, 0
      %645 = vmatprep.subr.bf16.mxu0 0
      %646 = vmatpush1.bf16.msra.mxu0 %v643
      %647 = vmatprep.subr.bf16.mxu0 0
      %648 = vmatpush1.bf16.msra.mxu0 0
      %649 = vmatprep.subr.bf16.mxu0 0
      %650 = vmatpush1.bf16.msra.mxu0 0
      %651 = vmatprep.subr.bf16.mxu0 0
      %652 = vmatpush1.bf16.msra.mxu0 0
      %653 = vmatprep.subr.bf16.mxu0 0
      %654 = vmatpush1.bf16.msra.mxu0 0
      %655 = vmatprep.subr.bf16.mxu0 0
      %656 = vmatpush1.bf16.msra.mxu0 0
      %657 = vmatprep.subr.bf16.mxu0 0
      %658 = vmatpush1.bf16.msra.mxu0 0
      %659 = vmatprep.subr.bf16.mxu0 0
      %660 = vmatpush1.bf16.msra.mxu0 0
      %661 = vmatprep.subr.bf16.mxu0 0
      %662 = vmatpush1.bf16.msra.mxu0 0
      %663 = vmatprep.subr.bf16.mxu0 0
      %664 = vmatpush1.bf16.msra.mxu0 0
      %665 = vmatprep.subr.bf16.mxu0 0
      %666 = vmatpush1.bf16.msra.mxu0 0
      %667 = vmatprep.subr.bf16.mxu0 0
      %668 = vmatpush1.bf16.msra.mxu0 0
      %669 = vmatprep.subr.bf16.mxu0 0
      %670 = vmatpush1.bf16.msra.mxu0 0
      %671 = vmatprep.subr.bf16.mxu0 0
      %672 = vmatpush1.bf16.msra.mxu0 0
      %673 = vmatprep.subr.bf16.mxu0 0
      %674 = vmatpush1.bf16.msra.mxu0 0
      %675 = vmatprep.subr.bf16.mxu0 0
      %676 = vmatpush1.bf16.msra.mxu0 0
      %677 = vmatprep.mubr.bf16.mxu0 0
      %678 = vmatmul.mubr.bf16.gmra.mrb[0].mxu0 %v640
      %v679 = vpop.f32.mrb[0].mxu0
      %v680 = vadd.f32 0.0, %v679
      %v681 = vpop.f32.mrb[0].mxu0
      %v682 = vpop.f32.mrb[0].mxu0
      %v683 = vpop.f32.mrb[0].mxu0
      %684 = vdwg.mxu0
      %686 = vrot.lane.b32.xlu0 %v680, 16
      %v687 = vpop.permute.xlu0 %686
      %v689 = vadd.f32 %v635, %v687
      %vm690 = vcmask 195712
      %691 = vst.msk [vmem:[#allocation2] sm:$0xff] %vm690, %v689
      %692 = vst.msk [vmem:[%s604] sm:$0xff] %vm352, %v609
      %693 = vrot.lane.b32.xlu0 %v278, 104
      %v694 = vpop.permute.xlu0 %693
      %695 = vrot.lane.b32.xlu0 %v280, 104
      %v696 = vpop.permute.xlu0 %695
      %v698 = vsel %vm283, %v694, 0
      %v701 = vsel %vm283, %v696, 0
      %703 = vmatprep.subr.bf16.mxu0 0
      %704 = vmatpush1.bf16.xpose.msra.mxu0 %v701
      %705 = vmatprep.subr.bf16.mxu0 0
      %706 = vmatpush1.bf16.xpose.msra.mxu0 0
      %707 = vmatprep.subr.bf16.mxu0 0
      %708 = vmatpush1.bf16.xpose.msra.mxu0 0
      %709 = vmatprep.subr.bf16.mxu0 0
      %710 = vmatpush1.bf16.xpose.msra.mxu0 0
      %711 = vmatprep.subr.bf16.mxu0 0
      %712 = vmatpush1.bf16.xpose.msra.mxu0 0
      %713 = vmatprep.subr.bf16.mxu0 0
      %714 = vmatpush1.bf16.xpose.msra.mxu0 0
      %715 = vmatprep.subr.bf16.mxu0 0
      %716 = vmatpush1.bf16.xpose.msra.mxu0 0
      %717 = vmatprep.subr.bf16.mxu0 0
      %718 = vmatpush1.bf16.xpose.msra.mxu0 0
      %719 = vmatprep.subr.bf16.mxu0 0
      %720 = vmatpush1.bf16.xpose.msra.mxu0 0
      %721 = vmatprep.subr.bf16.mxu0 0
      %722 = vmatpush1.bf16.xpose.msra.mxu0 0
      %723 = vmatprep.subr.bf16.mxu0 0
      %724 = vmatpush1.bf16.xpose.msra.mxu0 0
      %725 = vmatprep.subr.bf16.mxu0 0
      %726 = vmatpush1.bf16.xpose.msra.mxu0 0
      %727 = vmatprep.subr.bf16.mxu0 0
      %728 = vmatpush1.bf16.xpose.msra.mxu0 0
      %729 = vmatprep.subr.bf16.mxu0 0
      %730 = vmatpush1.bf16.xpose.msra.mxu0 0
      %731 = vmatprep.subr.bf16.mxu0 0
      %732 = vmatpush1.bf16.xpose.msra.mxu0 0
      %733 = vmatprep.subr.bf16.mxu0 0
      %734 = vmatpush1.bf16.xpose.msra.mxu0 0
      %735 = vmatprep.mubr.bf16.mxu0 0
      %736 = vmatmul.mubr.bf16.gmra.mrb[0].mxu0 %v698
      %v737 = vpop.f32.mrb[0].mxu0
      %v738 = vadd.f32 0.0, %v737
      %v739 = vpop.f32.mrb[0].mxu0
      %v740 = vpop.f32.mrb[0].mxu0
      %v741 = vpop.f32.mrb[0].mxu0
      %742 = vdwg.mxu0
      %s743 = scalar_lea.vmem [#allocation3], 24
      %v744 = vld [vmem:[%s743] sm:$0xff]
      %v745 = vsel %vm283, %v738, -inf
      %746 = vmax.xlane.f32.xlu0 %v745
      %v747 = vpop.xlane.xlu0 %746
      %v748 = vmax.f32 %v744, %v747
      %v749 = vsub.f32 %v744, %v748
      %v750 = vmul.f32 %v749, 1.442695
      %v751 = vpow.pop %v750
      %753 = vset.pattern.permute.xlu0 0
      %754 = vperm.xlu0 %753, %v748
      %v755 = vpop.permute.xlu0 %754
      %v757 = vsub.f32 %v738, %v755
      %v758 = vmul.f32 %v757, 1.442695
      %v759 = vpow.pop %v758
      %s760 = scalar_lea.vmem [#allocation4], 24
      %v761 = vld [vmem:[%s760] sm:$0xff]
      %v762 = vmul.f32 %v751, %v761
      %v763 = vsel %vm283, %v759, 0.0
      %764 = vadd.xlane.f32.xlu0 %v763
      %v765 = vpop.xlane.xlu0 %764
      %v766 = vadd.f32 %v762, %v765
      %767 = vst.msk [vmem:[%s760] sm:$0xff] %vm352, %v766
      %v768 = vld [vmem:[#allocation2] sm:$0xff]
      %770 = vset.pattern.permute.xlu0 0
      %771 = vperm.xlu0 %770, %v751
      %v772 = vpop.permute.xlu0 %771
      %v774 = vmul.f32 %v772, %v768
      %v775 = vpack.c.bf16 %v759, %v759
      %776 = vrot.lane.b32.xlu0 %v282, 104
      %v777 = vpop.permute.xlu0 %776
      %v779 = vsel %vm283, %v775, 0
      %v782 = vsel %vm365, %v777, 0
      %784 = vmatprep.subr.bf16.mxu0 0
      %785 = vmatpush1.bf16.msra.mxu0 %v782
      %786 = vmatprep.subr.bf16.mxu0 0
      %787 = vmatpush1.bf16.msra.mxu0 0
      %788 = vmatprep.subr.bf16.mxu0 0
      %789 = vmatpush1.bf16.msra.mxu0 0
      %790 = vmatprep.subr.bf16.mxu0 0
      %791 = vmatpush1.bf16.msra.mxu0 0
      %792 = vmatprep.subr.bf16.mxu0 0
      %793 = vmatpush1.bf16.msra.mxu0 0
      %794 = vmatprep.subr.bf16.mxu0 0
      %795 = vmatpush1.bf16.msra.mxu0 0
      %796 = vmatprep.subr.bf16.mxu0 0
      %797 = vmatpush1.bf16.msra.mxu0 0
      %798 = vmatprep.subr.bf16.mxu0 0
      %799 = vmatpush1.bf16.msra.mxu0 0
      %800 = vmatprep.subr.bf16.mxu0 0
      %801 = vmatpush1.bf16.msra.mxu0 0
      %802 = vmatprep.subr.bf16.mxu0 0
      %803 = vmatpush1.bf16.msra.mxu0 0
      %804 = vmatprep.subr.bf16.mxu0 0
      %805 = vmatpush1.bf16.msra.mxu0 0
      %806 = vmatprep.subr.bf16.mxu0 0
      %807 = vmatpush1.bf16.msra.mxu0 0
      %808 = vmatprep.subr.bf16.mxu0 0
      %809 = vmatpush1.bf16.msra.mxu0 0
      %810 = vmatprep.subr.bf16.mxu0 0
      %811 = vmatpush1.bf16.msra.mxu0 0
      %812 = vmatprep.subr.bf16.mxu0 0
      %813 = vmatpush1.bf16.msra.mxu0 0
      %814 = vmatprep.subr.bf16.mxu0 0
      %815 = vmatpush1.bf16.msra.mxu0 0
      %816 = vmatprep.mubr.bf16.mxu0 0
      %817 = vmatmul.mubr.bf16.gmra.mrb[0].mxu0 %v779
      %v818 = vpop.f32.mrb[0].mxu0
      %v819 = vadd.f32 0.0, %v818
      %v820 = vpop.f32.mrb[0].mxu0
      %v821 = vpop.f32.mrb[0].mxu0
      %v822 = vpop.f32.mrb[0].mxu0
      %823 = vdwg.mxu0
      %825 = vrot.lane.b32.xlu0 %v819, 24
      %v826 = vpop.permute.xlu0 %825
      %v828 = vadd.f32 %v774, %v826
      %vm829 = vcmask 261312
      %830 = vst.msk [vmem:[#allocation2] sm:$0xff] %vm829, %v828
      %831 = vst.msk [vmem:[%s743] sm:$0xff] %vm352, %v748
      // Predicated region
      $region37: #{wrapped_transformer_decoder.27} parent=31 // pred_check
        %p832 = pneg %p261
      $region38: #{wrapped_transformer_decoder.27} parent=31 // pred_check_branch
        %834 = sbr.rel (%p832) target = $region40
      $region39: #{wrapped_transformer_decoder.27} parent=31 // pred_region
        %v835 = vld [vmem:[#allocation4] sm:$0xff]
        %v836 = vrcp.pop %v835
        %v837 = vld [vmem:[#allocation2] sm:$0xff]
        %839 = vset.pattern.permute.xlu0 0
        %840 = vperm.xlu0 %839, %v836
        %v841 = vpop.permute.xlu0 %840
        %v843 = vmul.f32 %v837, %v841
        %844 = vst.msk [vmem:[%s259] sm:$0xff] %vm283, %v843
        %v845 = vld [vmem:[%s481] sm:$0xff]
        %v846 = vrcp.pop %v845
        %v847 = vld [vmem:[#allocation2] sm:$0xff]
        %849 = vset.pattern.permute.xlu0 0
        %850 = vperm.xlu0 %849, %v846
        %v851 = vpop.permute.xlu0 %850
        %v853 = vmul.f32 %v847, %v851
        %854 = vst.msk [vmem:[%s259] sm:$0xff] %vm551, %v853
        %v855 = vld [vmem:[%s621] sm:$0xff]
        %v856 = vrcp.pop %v855
        %v857 = vld [vmem:[#allocation2] sm:$0xff]
        %859 = vset.pattern.permute.xlu0 0
        %860 = vperm.xlu0 %859, %v856
        %v861 = vpop.permute.xlu0 %860
        %v863 = vmul.f32 %v857, %v861
        %864 = vst.msk [vmem:[%s259] sm:$0xff] %vm690, %v863
        %v865 = vld [vmem:[%s760] sm:$0xff]
        %v866 = vrcp.pop %v865
        %v867 = vld [vmem:[#allocation2] sm:$0xff]
        %869 = vset.pattern.permute.xlu0 0
        %870 = vperm.xlu0 %869, %v866
        %v871 = vpop.permute.xlu0 %870
        %v873 = vmul.f32 %v867, %v871
        %874 = vst.msk [vmem:[%s259] sm:$0xff] %vm829, %v873
      $region40: #{wrapped_transformer_decoder.27} parent=31 // pred_fallthru
        _
      %p875 = scmp.lt.s32.totalorder %s19, 1
      %s876 = scalar_select %p875, %s19, 1
      %p877 = scmp.lt.s32.totalorder %s20, 0
      %s878 = scalar_select %p877, %s20, 0
      %s879 = sadd.s32 %s878, %s876
      %s880 = smul.addr %s879, 8
      %s881 = scalar_lea.vmem %s3, %s880
      // Predicated region
      $region41: #{wrapped_transformer_decoder.27} parent=31 // pred_check
        %p882 = pneg %p137
      $region42: #{wrapped_transformer_decoder.27} parent=31 // pred_check_branch
        %884 = sbr.rel (%p882) target = $region44
      $region43: #{wrapped_transformer_decoder.27} parent=31 // pred_region
        _
      $region44: #{wrapped_transformer_decoder.27} parent=31 // pred_fallthru
        _
    $region32: #{wrapped_transformer_decoder.27} parent=5 // pred_fallthru
      _
    %p885 = scmp.le.s32.totalorder 2, %s9
    // Predicated region
    $region45: #{wrapped_transformer_decoder.27} parent=5 // pred_check
      %p886 = pneg %p885
    $region46: #{wrapped_transformer_decoder.27} parent=5 // pred_check_branch
      %888 = sbr.rel (%p886) target = $region48
    $region47: #{wrapped_transformer_decoder.27} parent=5 // pred_region
      %s889 = ssub.s32 %s9, 2
      // Predicated region
      $region49: #{wrapped_transformer_decoder.27} parent=47 // pred_check
        %p890 = pneg %p143
      $region50: #{wrapped_transformer_decoder.27} parent=47 // pred_check_branch
        %892 = sbr.rel (%p890) target = $region52
      $region51: #{wrapped_transformer_decoder.27} parent=47 // pred_region
        %p893 = scmp.lt.s32.totalorder %s22, 1
        %s894 = scalar_select %p893, %s22, 1
        %p895 = scmp.lt.s32.totalorder %s23, 0
        %s896 = scalar_select %p895, %s23, 0
        %s897 = sadd.s32 %s896, %s894
        %s898 = smul.addr %s897, 8
        %s899 = scalar_lea.vmem %s3, %s898
      $region52: #{wrapped_transformer_decoder.27} parent=47 // pred_fallthru
        _
    $region48: #{wrapped_transformer_decoder.27} parent=5 // pred_fallthru
      _
  $region6: #{wrapped_transformer_decoder.27} parent=0 // loop_footer
    %s13 = sadd.s32 1, %s9
  $region7: #{wrapped_transformer_decoder.27} parent=0 // loop_footer_branch
    %8 = sbr.rel target = $region3
  $region8: #{wrapped_transformer_decoder.27} parent=0 // loop_exit
    _

// kernel: wrapped_transformer_decoder.28
$region0: #{wrapped_transformer_decoder.28}
  #allocation0 [shape = 'u32[]', space=smem, size = 0x4, offset = 0x4, fixed_abs, tag = 'smem constant byte address 0x4 - core index']
  #allocation1 [shape = 'u32[144,128]{1,0:T(1,128)}', space=vmem, size = 0x12000, scoped, tag = 'internal scratch']
  #allocation2 [shape = 'f32[16,32]{1,0:T(8,128)}', space=vmem, size = 0x2000, scoped, tag = 'scratch operand']
  %s0 = inlined_call_operand.vmem [shape: f32[16,32], index: 0, kind: input, shape index: {}]
  %s1 = inlined_call_operand.vmem [shape: bf16[32,32], index: 1, kind: input, shape index: {}]
  %s2 = inlined_call_operand.vmem [shape: f32[1,32], index: 2, kind: input, shape index: {}]
  %s3 = inlined_call_operand.vmem [shape: f32[16,32], index: 3, kind: input, shape index: {}]
  %s4 = inlined_call_operand.vmem [shape: f32[16,32], index: 4, kind: output, shape index: {}]
  %s5 = sld [smem:[#allocation0]]
  $region34: #{wrapped_transformer_decoder.28} parent=0
    _
  %s7 = ssub.s32 1, %s5
  %s8 = scalar_select 0, %s7, %s5
  // Predicated region
  $region2: #{wrapped_transformer_decoder.28} parent=0 // pred_check
    _
  $region3: #{wrapped_transformer_decoder.28} parent=0 // pred_check_branch
    %10 = sbr.rel (0) target = $region5
  $region4: #{wrapped_transformer_decoder.28} parent=0 // pred_region
    _
  $region5: #{wrapped_transformer_decoder.28} parent=0 // pred_fallthru
    _
  // Predicated region
  $region6: #{wrapped_transformer_decoder.28} parent=0 // pred_check
    _
  $region7: #{wrapped_transformer_decoder.28} parent=0 // pred_check_branch
    %12 = sbr.rel (0) target = $region9
  $region8: #{wrapped_transformer_decoder.28} parent=0 // pred_region
    _
  $region9: #{wrapped_transformer_decoder.28} parent=0 // pred_fallthru
    _
  // Predicated region
  $region10: #{wrapped_transformer_decoder.28} parent=0 // pred_check
    _
  $region11: #{wrapped_transformer_decoder.28} parent=0 // pred_check_branch
    %14 = sbr.rel (0) target = $region13
  $region12: #{wrapped_transformer_decoder.28} parent=0 // pred_region
    _
  $region13: #{wrapped_transformer_decoder.28} parent=0 // pred_fallthru
    _
  // Predicated region
  $region14: #{wrapped_transformer_decoder.28} parent=0 // pred_check
    _
  $region15: #{wrapped_transformer_decoder.28} parent=0 // pred_check_branch
    %16 = sbr.rel (0) target = $region17
  $region16: #{wrapped_transformer_decoder.28} parent=0 // pred_region
    _
  $region17: #{wrapped_transformer_decoder.28} parent=0 // pred_fallthru
    _
  %p18 = scmp.eq.s32.totalorder 0, 0
  // Predicated region
  $region18: #{wrapped_transformer_decoder.28} parent=0 // pred_check
    %p19 = pneg %p18
  $region19: #{wrapped_transformer_decoder.28} parent=0 // pred_check_branch
    %21 = sbr.rel (%p19) target = $region21
  $region20: #{wrapped_transformer_decoder.28} parent=0 // pred_region
    %vm22 = vcmask 261120
    %23 = vst.msk [vmem:[#allocation2] sm:$0xff] %vm22, 0.0
    %24 = vst.msk [vmem:[#allocation2 + $0x8] sm:$0xff] %vm22, 0.0
  $region21: #{wrapped_transformer_decoder.28} parent=0 // pred_fallthru
    _
  %v25 = vld [vmem:[#allocation2] sm:$0xff]
  %v26 = vld [vmem:[#allocation2 + $0x8] sm:$0xff]
  %v27 = vld [vmem:[%s0] sm:$0xff]
  %v28 = vld [vmem:[%s0 + $0x8] sm:$0xff]
  %v29 = vpack.c.bf16 %v28, %v27
  %v30 = vld [vmem:[%s1] sm:$0xf]
  %v31 = vld [vmem:[%s1 + $0x4] sm:$0xf]
  %v32 = vld [vmem:[%s1 + $0x8] sm:$0xf]
  %v33 = vld [vmem:[%s1 + $0xc] sm:$0xf]
  %v38 = vunpack.c.l.b16 %v30
  %v39 = vunpack.c.l.b16 %v31
  %v40 = vunpack.c.l.b16 %v32
  %v41 = vunpack.c.l.b16 %v33
  %v42 = vpack.c.b16 %v39, %v38
  %v43 = vpack.c.b16 %v41, %v40
  %vm46 = vcmask 261120
  %v48 = vsel %vm46, %v29, 0
  %50 = vmatprep.subr.bf16.mxu0 0
  %51 = vmatpush1.bf16.msra.mxu0 %v42
  %52 = vmatprep.subr.bf16.mxu0 0
  %53 = vmatpush1.bf16.msra.mxu0 %v43
  %54 = vmatprep.subr.bf16.mxu0 0
  %55 = vmatpush1.bf16.msra.mxu0 0
  %56 = vmatprep.subr.bf16.mxu0 0
  %57 = vmatpush1.bf16.msra.mxu0 0
  %58 = vmatprep.subr.bf16.mxu0 0
  %59 = vmatpush1.bf16.msra.mxu0 0
  %60 = vmatprep.subr.bf16.mxu0 0
  %61 = vmatpush1.bf16.msra.mxu0 0
  %62 = vmatprep.subr.bf16.mxu0 0
  %63 = vmatpush1.bf16.msra.mxu0 0
  %64 = vmatprep.subr.bf16.mxu0 0
  %65 = vmatpush1.bf16.msra.mxu0 0
  %66 = vmatprep.subr.bf16.mxu0 0
  %67 = vmatpush1.bf16.msra.mxu0 0
  %68 = vmatprep.subr.bf16.mxu0 0
  %69 = vmatpush1.bf16.msra.mxu0 0
  %70 = vmatprep.subr.bf16.mxu0 0
  %71 = vmatpush1.bf16.msra.mxu0 0
  %72 = vmatprep.subr.bf16.mxu0 0
  %73 = vmatpush1.bf16.msra.mxu0 0
  %74 = vmatprep.subr.bf16.mxu0 0
  %75 = vmatpush1.bf16.msra.mxu0 0
  %76 = vmatprep.subr.bf16.mxu0 0
  %77 = vmatpush1.bf16.msra.mxu0 0
  %78 = vmatprep.subr.bf16.mxu0 0
  %79 = vmatpush1.bf16.msra.mxu0 0
  %80 = vmatprep.subr.bf16.mxu0 0
  %81 = vmatpush1.bf16.msra.mxu0 0
  %82 = vmatprep.mubr.bf16.mxu0 0
  %83 = vmatmul.mubr.bf16.gmra.mrb[0].mxu0 %v48
  %v84 = vpop.f32.mrb[0].mxu0
  %v85 = vadd.f32 0.0, %v84
  %v86 = vpop.f32.mrb[0].mxu0
  %v87 = vpop.f32.mrb[0].mxu0
  %v88 = vadd.f32 0.0, %v87
  %v89 = vpop.f32.mrb[0].mxu0
  %90 = vdwg.mxu0
  %v91 = vadd.f32 %v25, %v85
  %v92 = vadd.f32 %v26, %v88
  %93 = vst.msk [vmem:[#allocation2] sm:$0xff] %vm46, %v91
  %94 = vst.msk [vmem:[#allocation2 + $0x8] sm:$0xff] %vm46, %v92
  // Predicated region
  $region22: #{wrapped_transformer_decoder.28} parent=0 // pred_check
    %p95 = pneg %p18
  $region23: #{wrapped_transformer_decoder.28} parent=0 // pred_check_branch
    %97 = sbr.rel (%p95) target = $region25
  $region24: #{wrapped_transformer_decoder.28} parent=0 // pred_region
    %v98 = vld [vmem:[#allocation2] sm:$0xff]
    %v99 = vld [vmem:[#allocation2 + $0x8] sm:$0xff]
    %v100 = vld [vmem:[%s2] sm:$0x1]
    %v102 = vlaneseq
    %v103 = vshrl.u32 %v102, 7
    %v104 = vsub.s32 0, %v103
    %v105 = vrot.slane %v100, %v104
    %v107 = vadd.f32 %v98, %v105
    %v108 = vadd.f32 %v99, %v105
    %v109 = vld [vmem:[%s3] sm:$0xff]
    %v110 = vld [vmem:[%s3 + $0x8] sm:$0xff]
    %v111 = vadd.f32 %v107, %v109
    %v112 = vadd.f32 %v108, %v110
    %113 = vst.msk [vmem:[%s4] sm:$0xff] %vm46, %v111
    %114 = vst.msk [vmem:[%s4 + $0x8] sm:$0xff] %vm46, %v112
  $region25: #{wrapped_transformer_decoder.28} parent=0 // pred_fallthru
    _
  // Predicated region
  $region26: #{wrapped_transformer_decoder.28} parent=0 // pred_check
    _
  $region27: #{wrapped_transformer_decoder.28} parent=0 // pred_check_branch
    %116 = sbr.rel (0) target = $region29
  $region28: #{wrapped_transformer_decoder.28} parent=0 // pred_region
    _
  $region29: #{wrapped_transformer_decoder.28} parent=0 // pred_fallthru
    _
  // Predicated region
  $region30: #{wrapped_transformer_decoder.28} parent=0 // pred_check
    _
  $region31: #{wrapped_transformer_decoder.28} parent=0 // pred_check_branch
    %118 = sbr.rel (0) target = $region33
  $region32: #{wrapped_transformer_decoder.28} parent=0 // pred_region
    _
  $region33: #{wrapped_transformer_decoder.28} parent=0 // pred_fallthru
    _

// kernel: wrapped_transformer_decoder.30
$region0: #{wrapped_transformer_decoder.30}
  #allocation0 [shape = 'u32[]', space=smem, size = 0x4, offset = 0x4, fixed_abs, tag = 'smem constant byte address 0x4 - core index']
  #allocation1 [shape = 'u32[144,128]{1,0:T(1,128)}', space=vmem, size = 0x12000, scoped, tag = 'internal scratch']
  #allocation2 [shape = 'f32[16,32]{1,0:T(8,128)}', space=vmem, size = 0x2000, scoped, tag = 'scratch operand']
  %s0 = inlined_call_operand.vmem [shape: f32[16,32], index: 0, kind: input, shape index: {}]
  %s1 = inlined_call_operand.vmem [shape: f32[16,1], index: 1, kind: input, shape index: {}]
  %s2 = inlined_call_operand.vmem [shape: f32[16,1], index: 2, kind: input, shape index: {}]
  %s3 = inlined_call_operand.vmem [shape: f32[1,32], index: 3, kind: input, shape index: {}]
  %s4 = inlined_call_operand.vmem [shape: f32[1,32], index: 4, kind: input, shape index: {}]
  %s5 = inlined_call_operand.vmem [shape: bf16[32,32], index: 5, kind: input, shape index: {}]
  %s6 = inlined_call_operand.vmem [shape: f32[1,32], index: 6, kind: input, shape index: {}]
  %s7 = inlined_call_operand.vmem [shape: f32[16,32], index: 7, kind: output, shape index: {}]
  %s8 = sld [smem:[#allocation0]]
  $region46: #{wrapped_transformer_decoder.30} parent=0
    _
  %s10 = ssub.s32 1, %s8
  %s11 = scalar_select 0, %s10, %s8
  // Predicated region
  $region2: #{wrapped_transformer_decoder.30} parent=0 // pred_check
    _
  $region3: #{wrapped_transformer_decoder.30} parent=0 // pred_check_branch
    %13 = sbr.rel (0) target = $region5
  $region4: #{wrapped_transformer_decoder.30} parent=0 // pred_region
    _
  $region5: #{wrapped_transformer_decoder.30} parent=0 // pred_fallthru
    _
  // Predicated region
  $region6: #{wrapped_transformer_decoder.30} parent=0 // pred_check
    _
  $region7: #{wrapped_transformer_decoder.30} parent=0 // pred_check_branch
    %15 = sbr.rel (0) target = $region9
  $region8: #{wrapped_transformer_decoder.30} parent=0 // pred_region
    _
  $region9: #{wrapped_transformer_decoder.30} parent=0 // pred_fallthru
    _
  // Predicated region
  $region10: #{wrapped_transformer_decoder.30} parent=0 // pred_check
    _
  $region11: #{wrapped_transformer_decoder.30} parent=0 // pred_check_branch
    %17 = sbr.rel (0) target = $region13
  $region12: #{wrapped_transformer_decoder.30} parent=0 // pred_region
    _
  $region13: #{wrapped_transformer_decoder.30} parent=0 // pred_fallthru
    _
  // Predicated region
  $region14: #{wrapped_transformer_decoder.30} parent=0 // pred_check
    _
  $region15: #{wrapped_transformer_decoder.30} parent=0 // pred_check_branch
    %19 = sbr.rel (0) target = $region17
  $region16: #{wrapped_transformer_decoder.30} parent=0 // pred_region
    _
  $region17: #{wrapped_transformer_decoder.30} parent=0 // pred_fallthru
    _
  // Predicated region
  $region18: #{wrapped_transformer_decoder.30} parent=0 // pred_check
    _
  $region19: #{wrapped_transformer_decoder.30} parent=0 // pred_check_branch
    %21 = sbr.rel (0) target = $region21
  $region20: #{wrapped_transformer_decoder.30} parent=0 // pred_region
    _
  $region21: #{wrapped_transformer_decoder.30} parent=0 // pred_fallthru
    _
  // Predicated region
  $region22: #{wrapped_transformer_decoder.30} parent=0 // pred_check
    _
  $region23: #{wrapped_transformer_decoder.30} parent=0 // pred_check_branch
    %23 = sbr.rel (0) target = $region25
  $region24: #{wrapped_transformer_decoder.30} parent=0 // pred_region
    _
  $region25: #{wrapped_transformer_decoder.30} parent=0 // pred_fallthru
    _
  // Predicated region
  $region26: #{wrapped_transformer_decoder.30} parent=0 // pred_check
    _
  $region27: #{wrapped_transformer_decoder.30} parent=0 // pred_check_branch
    %25 = sbr.rel (0) target = $region29
  $region28: #{wrapped_transformer_decoder.30} parent=0 // pred_region
    _
  $region29: #{wrapped_transformer_decoder.30} parent=0 // pred_fallthru
    _
  %p27 = scmp.eq.s32.totalorder 0, 0
  // Predicated region
  $region30: #{wrapped_transformer_decoder.30} parent=0 // pred_check
    %p28 = pneg %p27
  $region31: #{wrapped_transformer_decoder.30} parent=0 // pred_check_branch
    %30 = sbr.rel (%p28) target = $region33
  $region32: #{wrapped_transformer_decoder.30} parent=0 // pred_region
    %vm31 = vcmask 261120
    %32 = vst.msk [vmem:[#allocation2] sm:$0xff] %vm31, 0.0
    %33 = vst.msk [vmem:[#allocation2 + $0x8] sm:$0xff] %vm31, 0.0
  $region33: #{wrapped_transformer_decoder.30} parent=0 // pred_fallthru
    _
  %v34 = vld [vmem:[%s0] sm:$0xff]
  %v35 = vld [vmem:[%s0 + $0x8] sm:$0xff]
  %v36 = vld [vmem:[%s1] sm:$0xff]
  %v37 = vld [vmem:[%s1 + $0x8] sm:$0xff]
  %39 = vset.pattern.permute.xlu0 0
  %40 = vperm.xlu0 %39, %v36
  %v41 = vpop.permute.xlu0 %40
  %44 = vset.pattern.permute.xlu0 0
  %45 = vperm.xlu0 %44, %v37
  %v46 = vpop.permute.xlu0 %45
  %v48 = vsub.f32 %v34, %v41
  %v49 = vsub.f32 %v35, %v46
  %v50 = vld [vmem:[%s2] sm:$0xff]
  %v51 = vld [vmem:[%s2 + $0x8] sm:$0xff]
  %53 = vset.pattern.permute.xlu0 0
  %54 = vperm.xlu0 %53, %v50
  %v55 = vpop.permute.xlu0 %54
  %58 = vset.pattern.permute.xlu0 0
  %59 = vperm.xlu0 %58, %v51
  %v60 = vpop.permute.xlu0 %59
  %v62 = vmul.f32 %v48, %v55
  %v63 = vmul.f32 %v49, %v60
  %v64 = vld [vmem:[%s3] sm:$0x1]
  %v66 = vlaneseq
  %v67 = vshrl.u32 %v66, 7
  %v68 = vsub.s32 0, %v67
  %v69 = vrot.slane %v64, %v68
  %v71 = vmul.f32 %v62, %v69
  %v72 = vmul.f32 %v63, %v69
  %v73 = vld [vmem:[%s4] sm:$0x1]
  %v75 = vlaneseq
  %v76 = vshrl.u32 %v75, 7
  %v77 = vsub.s32 0, %v76
  %v78 = vrot.slane %v73, %v77
  %v80 = vadd.f32 %v71, %v78
  %v81 = vadd.f32 %v72, %v78
  %v82 = vld [vmem:[#allocation2] sm:$0xff]
  %v83 = vld [vmem:[#allocation2 + $0x8] sm:$0xff]
  %v84 = vpack.c.bf16 %v81, %v80
  %v85 = vld [vmem:[%s5] sm:$0xf]
  %v86 = vld [vmem:[%s5 + $0x4] sm:$0xf]
  %v87 = vld [vmem:[%s5 + $0x8] sm:$0xf]
  %v88 = vld [vmem:[%s5 + $0xc] sm:$0xf]
  %v93 = vunpack.c.l.b16 %v85
  %v94 = vunpack.c.l.b16 %v86
  %v95 = vunpack.c.l.b16 %v87
  %v96 = vunpack.c.l.b16 %v88
  %v97 = vpack.c.b16 %v94, %v93
  %v98 = vpack.c.b16 %v96, %v95
  %vm101 = vcmask 261120
  %v103 = vsel %vm101, %v84, 0
  %105 = vmatprep.subr.bf16.mxu0 0
  %106 = vmatpush1.bf16.msra.mxu0 %v97
  %107 = vmatprep.subr.bf16.mxu0 0
  %108 = vmatpush1.bf16.msra.mxu0 %v98
  %109 = vmatprep.subr.bf16.mxu0 0
  %110 = vmatpush1.bf16.msra.mxu0 0
  %111 = vmatprep.subr.bf16.mxu0 0
  %112 = vmatpush1.bf16.msra.mxu0 0
  %113 = vmatprep.subr.bf16.mxu0 0
  %114 = vmatpush1.bf16.msra.mxu0 0
  %115 = vmatprep.subr.bf16.mxu0 0
  %116 = vmatpush1.bf16.msra.mxu0 0
  %117 = vmatprep.subr.bf16.mxu0 0
  %118 = vmatpush1.bf16.msra.mxu0 0
  %119 = vmatprep.subr.bf16.mxu0 0
  %120 = vmatpush1.bf16.msra.mxu0 0
  %121 = vmatprep.subr.bf16.mxu0 0
  %122 = vmatpush1.bf16.msra.mxu0 0
  %123 = vmatprep.subr.bf16.mxu0 0
  %124 = vmatpush1.bf16.msra.mxu0 0
  %125 = vmatprep.subr.bf16.mxu0 0
  %126 = vmatpush1.bf16.msra.mxu0 0
  %127 = vmatprep.subr.bf16.mxu0 0
  %128 = vmatpush1.bf16.msra.mxu0 0
  %129 = vmatprep.subr.bf16.mxu0 0
  %130 = vmatpush1.bf16.msra.mxu0 0
  %131 = vmatprep.subr.bf16.mxu0 0
  %132 = vmatpush1.bf16.msra.mxu0 0
  %133 = vmatprep.subr.bf16.mxu0 0
  %134 = vmatpush1.bf16.msra.mxu0 0
  %135 = vmatprep.subr.bf16.mxu0 0
  %136 = vmatpush1.bf16.msra.mxu0 0
  %137 = vmatprep.mubr.bf16.mxu0 0
  %138 = vmatmul.mubr.bf16.gmra.mrb[0].mxu0 %v103
  %v139 = vpop.f32.mrb[0].mxu0
  %v140 = vadd.f32 0.0, %v139
  %v141 = vpop.f32.mrb[0].mxu0
  %v142 = vpop.f32.mrb[0].mxu0
  %v143 = vadd.f32 0.0, %v142
  %v144 = vpop.f32.mrb[0].mxu0
  %145 = vdwg.mxu0
  %v146 = vadd.f32 %v82, %v140
  %v147 = vadd.f32 %v83, %v143
  %148 = vst.msk [vmem:[#allocation2] sm:$0xff] %vm101, %v146
  %149 = vst.msk [vmem:[#allocation2 + $0x8] sm:$0xff] %vm101, %v147
  // Predicated region
  $region34: #{wrapped_transformer_decoder.30} parent=0 // pred_check
    %p150 = pneg %p27
  $region35: #{wrapped_transformer_decoder.30} parent=0 // pred_check_branch
    %152 = sbr.rel (%p150) target = $region37
  $region36: #{wrapped_transformer_decoder.30} parent=0 // pred_region
    %v153 = vld [vmem:[#allocation2] sm:$0xff]
    %v154 = vld [vmem:[#allocation2 + $0x8] sm:$0xff]
    %v155 = vld [vmem:[%s6] sm:$0x1]
    %v157 = vlaneseq
    %v158 = vshrl.u32 %v157, 7
    %v159 = vsub.s32 0, %v158
    %v160 = vrot.slane %v155, %v159
    %v162 = vadd.f32 %v153, %v160
    %v163 = vadd.f32 %v154, %v160
    %164 = vst.msk [vmem:[%s7] sm:$0xff] %vm101, %v162
    %165 = vst.msk [vmem:[%s7 + $0x8] sm:$0xff] %vm101, %v163
  $region37: #{wrapped_transformer_decoder.30} parent=0 // pred_fallthru
    _
  // Predicated region
  $region38: #{wrapped_transformer_decoder.30} parent=0 // pred_check
    _
  $region39: #{wrapped_transformer_decoder.30} parent=0 // pred_check_branch
    %167 = sbr.rel (0) target = $region41
  $region40: #{wrapped_transformer_decoder.30} parent=0 // pred_region
    _
  $region41: #{wrapped_transformer_decoder.30} parent=0 // pred_fallthru
    _
  // Predicated region
  $region42: #{wrapped_transformer_decoder.30} parent=0 // pred_check
    _
  $region43: #{wrapped_transformer_decoder.30} parent=0 // pred_check_branch
    %169 = sbr.rel (0) target = $region45
  $region44: #{wrapped_transformer_decoder.30} parent=0 // pred_region
    _
  $region45: #{wrapped_transformer_decoder.30} parent=0 // pred_fallthru
    _

// kernel: wrapped_transformer_decoder.35
$region0: #{wrapped_transformer_decoder.35}
  #allocation0 [shape = 'u32[]', space=smem, size = 0x4, offset = 0x4, fixed_abs, tag = 'smem constant byte address 0x4 - core index']
  #allocation1 [shape = 'u32[144,128]{1,0:T(1,128)}', space=vmem, size = 0x12000, scoped, tag = 'internal scratch']
  #allocation2 [shape = 'f32[16,128]{1,0:T(8,128)}', space=vmem, size = 0x2000, scoped, tag = 'scratch operand']
  %s0 = inlined_call_operand.vmem [shape: f32[16,32], index: 0, kind: input, shape index: {}]
  %s1 = inlined_call_operand.vmem [shape: f32[16,1], index: 1, kind: input, shape index: {}]
  %s2 = inlined_call_operand.vmem [shape: f32[16,1], index: 2, kind: input, shape index: {}]
  %s3 = inlined_call_operand.vmem [shape: f32[1,32], index: 3, kind: input, shape index: {}]
  %s4 = inlined_call_operand.vmem [shape: f32[1,32], index: 4, kind: input, shape index: {}]
  %s5 = inlined_call_operand.vmem [shape: bf16[32,128], index: 5, kind: input, shape index: {}]
  %s6 = inlined_call_operand.vmem [shape: f32[1,128], index: 6, kind: input, shape index: {}]
  %s7 = inlined_call_operand.vmem [shape: f32[16,128], index: 7, kind: output, shape index: {}]
  %s8 = sld [smem:[#allocation0]]
  $region46: #{wrapped_transformer_decoder.35} parent=0
    _
  %s10 = ssub.s32 1, %s8
  %s11 = scalar_select 0, %s10, %s8
  // Predicated region
  $region2: #{wrapped_transformer_decoder.35} parent=0 // pred_check
    _
  $region3: #{wrapped_transformer_decoder.35} parent=0 // pred_check_branch
    %13 = sbr.rel (0) target = $region5
  $region4: #{wrapped_transformer_decoder.35} parent=0 // pred_region
    _
  $region5: #{wrapped_transformer_decoder.35} parent=0 // pred_fallthru
    _
  // Predicated region
  $region6: #{wrapped_transformer_decoder.35} parent=0 // pred_check
    _
  $region7: #{wrapped_transformer_decoder.35} parent=0 // pred_check_branch
    %15 = sbr.rel (0) target = $region9
  $region8: #{wrapped_transformer_decoder.35} parent=0 // pred_region
    _
  $region9: #{wrapped_transformer_decoder.35} parent=0 // pred_fallthru
    _
  // Predicated region
  $region10: #{wrapped_transformer_decoder.35} parent=0 // pred_check
    _
  $region11: #{wrapped_transformer_decoder.35} parent=0 // pred_check_branch
    %17 = sbr.rel (0) target = $region13
  $region12: #{wrapped_transformer_decoder.35} parent=0 // pred_region
    _
  $region13: #{wrapped_transformer_decoder.35} parent=0 // pred_fallthru
    _
  // Predicated region
  $region14: #{wrapped_transformer_decoder.35} parent=0 // pred_check
    _
  $region15: #{wrapped_transformer_decoder.35} parent=0 // pred_check_branch
    %19 = sbr.rel (0) target = $region17
  $region16: #{wrapped_transformer_decoder.35} parent=0 // pred_region
    _
  $region17: #{wrapped_transformer_decoder.35} parent=0 // pred_fallthru
    _
  // Predicated region
  $region18: #{wrapped_transformer_decoder.35} parent=0 // pred_check
    _
  $region19: #{wrapped_transformer_decoder.35} parent=0 // pred_check_branch
    %21 = sbr.rel (0) target = $region21
  $region20: #{wrapped_transformer_decoder.35} parent=0 // pred_region
    _
  $region21: #{wrapped_transformer_decoder.35} parent=0 // pred_fallthru
    _
  // Predicated region
  $region22: #{wrapped_transformer_decoder.35} parent=0 // pred_check
    _
  $region23: #{wrapped_transformer_decoder.35} parent=0 // pred_check_branch
    %23 = sbr.rel (0) target = $region25
  $region24: #{wrapped_transformer_decoder.35} parent=0 // pred_region
    _
  $region25: #{wrapped_transformer_decoder.35} parent=0 // pred_fallthru
    _
  // Predicated region
  $region26: #{wrapped_transformer_decoder.35} parent=0 // pred_check
    _
  $region27: #{wrapped_transformer_decoder.35} parent=0 // pred_check_branch
    %25 = sbr.rel (0) target = $region29
  $region28: #{wrapped_transformer_decoder.35} parent=0 // pred_region
    _
  $region29: #{wrapped_transformer_decoder.35} parent=0 // pred_fallthru
    _
  %p27 = scmp.eq.s32.totalorder 0, 0
  // Predicated region
  $region30: #{wrapped_transformer_decoder.35} parent=0 // pred_check
    %p28 = pneg %p27
  $region31: #{wrapped_transformer_decoder.35} parent=0 // pred_check_branch
    %30 = sbr.rel (%p28) target = $region33
  $region32: #{wrapped_transformer_decoder.35} parent=0 // pred_region
    %31 = vst [vmem:[#allocation2] sm:$0xff] 0.0
    %32 = vst [vmem:[#allocation2 + $0x8] sm:$0xff] 0.0
  $region33: #{wrapped_transformer_decoder.35} parent=0 // pred_fallthru
    _
  %v33 = vld [vmem:[%s0] sm:$0xff]
  %v34 = vld [vmem:[%s0 + $0x8] sm:$0xff]
  %v35 = vld [vmem:[%s1] sm:$0xff]
  %v36 = vld [vmem:[%s1 + $0x8] sm:$0xff]
  %38 = vset.pattern.permute.xlu0 0
  %39 = vperm.xlu0 %38, %v35
  %v40 = vpop.permute.xlu0 %39
  %43 = vset.pattern.permute.xlu0 0
  %44 = vperm.xlu0 %43, %v36
  %v45 = vpop.permute.xlu0 %44
  %v47 = vsub.f32 %v33, %v40
  %v48 = vsub.f32 %v34, %v45
  %v49 = vld [vmem:[%s2] sm:$0xff]
  %v50 = vld [vmem:[%s2 + $0x8] sm:$0xff]
  %52 = vset.pattern.permute.xlu0 0
  %53 = vperm.xlu0 %52, %v49
  %v54 = vpop.permute.xlu0 %53
  %57 = vset.pattern.permute.xlu0 0
  %58 = vperm.xlu0 %57, %v50
  %v59 = vpop.permute.xlu0 %58
  %v61 = vmul.f32 %v47, %v54
  %v62 = vmul.f32 %v48, %v59
  %v63 = vld [vmem:[%s3] sm:$0x1]
  %v65 = vlaneseq
  %v66 = vshrl.u32 %v65, 7
  %v67 = vsub.s32 0, %v66
  %v68 = vrot.slane %v63, %v67
  %v70 = vmul.f32 %v61, %v68
  %v71 = vmul.f32 %v62, %v68
  %v72 = vld [vmem:[%s4] sm:$0x1]
  %v74 = vlaneseq
  %v75 = vshrl.u32 %v74, 7
  %v76 = vsub.s32 0, %v75
  %v77 = vrot.slane %v72, %v76
  %v79 = vadd.f32 %v70, %v77
  %v80 = vadd.f32 %v71, %v77
  %v81 = vld [vmem:[#allocation2] sm:$0xff]
  %v82 = vld [vmem:[#allocation2 + $0x8] sm:$0xff]
  %v83 = vpack.c.bf16 %v80, %v79
  %v84 = vld [vmem:[%s5] sm:$0xf]
  %v85 = vld [vmem:[%s5 + $0x4] sm:$0xf]
  %v86 = vld [vmem:[%s5 + $0x8] sm:$0xf]
  %v87 = vld [vmem:[%s5 + $0xc] sm:$0xf]
  %v92 = vunpack.c.l.b16 %v84
  %v93 = vunpack.c.l.b16 %v85
  %v94 = vunpack.c.l.b16 %v86
  %v95 = vunpack.c.l.b16 %v87
  %v96 = vpack.c.b16 %v93, %v92
  %v97 = vpack.c.b16 %v95, %v94
  %vm100 = vcmask 261120
  %v102 = vsel %vm100, %v83, 0
  %104 = vmatprep.subr.bf16.mxu0 0
  %105 = vmatpush1.bf16.msra.mxu0 %v96
  %106 = vmatprep.subr.bf16.mxu0 0
  %107 = vmatpush1.bf16.msra.mxu0 %v97
  %108 = vmatprep.subr.bf16.mxu0 0
  %109 = vmatpush1.bf16.msra.mxu0 0
  %110 = vmatprep.subr.bf16.mxu0 0
  %111 = vmatpush1.bf16.msra.mxu0 0
  %112 = vmatprep.subr.bf16.mxu0 0
  %113 = vmatpush1.bf16.msra.mxu0 0
  %114 = vmatprep.subr.bf16.mxu0 0
  %115 = vmatpush1.bf16.msra.mxu0 0
  %116 = vmatprep.subr.bf16.mxu0 0
  %117 = vmatpush1.bf16.msra.mxu0 0
  %118 = vmatprep.subr.bf16.mxu0 0
  %119 = vmatpush1.bf16.msra.mxu0 0
  %120 = vmatprep.subr.bf16.mxu0 0
  %121 = vmatpush1.bf16.msra.mxu0 0
  %122 = vmatprep.subr.bf16.mxu0 0
  %123 = vmatpush1.bf16.msra.mxu0 0
  %124 = vmatprep.subr.bf16.mxu0 0
  %125 = vmatpush1.bf16.msra.mxu0 0
  %126 = vmatprep.subr.bf16.mxu0 0
  %127 = vmatpush1.bf16.msra.mxu0 0
  %128 = vmatprep.subr.bf16.mxu0 0
  %129 = vmatpush1.bf16.msra.mxu0 0
  %130 = vmatprep.subr.bf16.mxu0 0
  %131 = vmatpush1.bf16.msra.mxu0 0
  %132 = vmatprep.subr.bf16.mxu0 0
  %133 = vmatpush1.bf16.msra.mxu0 0
  %134 = vmatprep.subr.bf16.mxu0 0
  %135 = vmatpush1.bf16.msra.mxu0 0
  %136 = vmatprep.mubr.bf16.mxu0 0
  %137 = vmatmul.mubr.bf16.gmra.mrb[0].mxu0 %v102
  %v138 = vpop.f32.mrb[0].mxu0
  %v139 = vadd.f32 0.0, %v138
  %v140 = vpop.f32.mrb[0].mxu0
  %v141 = vpop.f32.mrb[0].mxu0
  %v142 = vadd.f32 0.0, %v141
  %v143 = vpop.f32.mrb[0].mxu0
  %144 = vdwg.mxu0
  %v145 = vadd.f32 %v81, %v139
  %v146 = vadd.f32 %v82, %v142
  %147 = vst [vmem:[#allocation2] sm:$0xff] %v145
  %148 = vst [vmem:[#allocation2 + $0x8] sm:$0xff] %v146
  // Predicated region
  $region34: #{wrapped_transformer_decoder.35} parent=0 // pred_check
    %p149 = pneg %p27
  $region35: #{wrapped_transformer_decoder.35} parent=0 // pred_check_branch
    %151 = sbr.rel (%p149) target = $region37
  $region36: #{wrapped_transformer_decoder.35} parent=0 // pred_region
    %v152 = vld [vmem:[#allocation2] sm:$0xff]
    %v153 = vld [vmem:[#allocation2 + $0x8] sm:$0xff]
    %v154 = vld [vmem:[%s6] sm:$0x1]
    %v156 = vlaneseq
    %v157 = vshrl.u32 %v156, 7
    %v158 = vsub.s32 0, %v157
    %v159 = vrot.slane %v154, %v158
    %v161 = vadd.f32 %v152, %v159
    %v162 = vadd.f32 %v153, %v159
    %v163 = vmul.f32 %v161, 0.5
    %v164 = vmul.f32 %v162, 0.5
    %v165 = vmul.f32 %v161, 0.70710677
    %v166 = vmul.f32 %v162, 0.70710677
    %v167 = verf.f32.pop %v165
    %v168 = verf.f32.pop %v166
    %v169 = vadd.f32 %v167, 1.0
    %v170 = vadd.f32 %v168, 1.0
    %v171 = vmul.f32 %v163, %v169
    %v172 = vmul.f32 %v164, %v170
    %173 = vst [vmem:[%s7] sm:$0xff] %v171
    %174 = vst [vmem:[%s7 + $0x8] sm:$0xff] %v172
  $region37: #{wrapped_transformer_decoder.35} parent=0 // pred_fallthru
    _
  // Predicated region
  $region38: #{wrapped_transformer_decoder.35} parent=0 // pred_check
    _
  $region39: #{wrapped_transformer_decoder.35} parent=0 // pred_check_branch
    %176 = sbr.rel (0) target = $region41
  $region40: #{wrapped_transformer_decoder.35} parent=0 // pred_region
    _
  $region41: #{wrapped_transformer_decoder.35} parent=0 // pred_fallthru
    _
  // Predicated region
  $region42: #{wrapped_transformer_decoder.35} parent=0 // pred_check
    _
  $region43: #{wrapped_transformer_decoder.35} parent=0 // pred_check_branch
    %178 = sbr.rel (0) target = $region45
  $region44: #{wrapped_transformer_decoder.35} parent=0 // pred_region
    _
  $region45: #{wrapped_transformer_decoder.35} parent=0 // pred_fallthru
    _

// kernel: wrapped_transformer_decoder.31
$region0: #{wrapped_transformer_decoder.31}
  #allocation0 [shape = 'u32[]', space=smem, size = 0x4, offset = 0x4, fixed_abs, tag = 'smem constant byte address 0x4 - core index']
  #allocation1 [shape = 'u32[144,128]{1,0:T(1,128)}', space=vmem, size = 0x12000, scoped, tag = 'internal scratch']
  #allocation2 [shape = 'f32[24,64]{1,0:T(8,128)}', space=vmem, size = 0x3000, scoped, tag = 'scratch operand']
  %s0 = inlined_call_operand.vmem [shape: f32[24,32], index: 0, kind: input, shape index: {}]
  %s1 = inlined_call_operand.vmem [shape: bf16[32,64], index: 1, kind: input, shape index: {}]
  %s2 = inlined_call_operand.vmem [shape: f32[1,64], index: 2, kind: input, shape index: {}]
  %s3 = inlined_call_operand.vmem [shape: f32[24,64], index: 3, kind: output, shape index: {}]
  %s4 = sld [smem:[#allocation0]]
  $region30: #{wrapped_transformer_decoder.31} parent=0
    _
  %s6 = ssub.s32 1, %s4
  %s7 = scalar_select 0, %s6, %s4
  // Predicated region
  $region2: #{wrapped_transformer_decoder.31} parent=0 // pred_check
    _
  $region3: #{wrapped_transformer_decoder.31} parent=0 // pred_check_branch
    %9 = sbr.rel (0) target = $region5
  $region4: #{wrapped_transformer_decoder.31} parent=0 // pred_region
    _
  $region5: #{wrapped_transformer_decoder.31} parent=0 // pred_fallthru
    _
  // Predicated region
  $region6: #{wrapped_transformer_decoder.31} parent=0 // pred_check
    _
  $region7: #{wrapped_transformer_decoder.31} parent=0 // pred_check_branch
    %11 = sbr.rel (0) target = $region9
  $region8: #{wrapped_transformer_decoder.31} parent=0 // pred_region
    _
  $region9: #{wrapped_transformer_decoder.31} parent=0 // pred_fallthru
    _
  // Predicated region
  $region10: #{wrapped_transformer_decoder.31} parent=0 // pred_check
    _
  $region11: #{wrapped_transformer_decoder.31} parent=0 // pred_check_branch
    %13 = sbr.rel (0) target = $region13
  $region12: #{wrapped_transformer_decoder.31} parent=0 // pred_region
    _
  $region13: #{wrapped_transformer_decoder.31} parent=0 // pred_fallthru
    _
  %p15 = scmp.eq.s32.totalorder 0, 0
  // Predicated region
  $region14: #{wrapped_transformer_decoder.31} parent=0 // pred_check
    %p16 = pneg %p15
  $region15: #{wrapped_transformer_decoder.31} parent=0 // pred_check_branch
    %18 = sbr.rel (%p16) target = $region17
  $region16: #{wrapped_transformer_decoder.31} parent=0 // pred_region
    %vm19 = vcmask 523264
    %20 = vst.msk [vmem:[#allocation2] sm:$0xff] %vm19, 0.0
    %21 = vst.msk [vmem:[#allocation2 + $0x8] sm:$0xff] %vm19, 0.0
    %22 = vst.msk [vmem:[#allocation2 + $0x10] sm:$0xff] %vm19, 0.0
  $region17: #{wrapped_transformer_decoder.31} parent=0 // pred_fallthru
    _
  %v23 = vld [vmem:[#allocation2] sm:$0xff]
  %v24 = vld [vmem:[#allocation2 + $0x8] sm:$0xff]
  %v25 = vld [vmem:[#allocation2 + $0x10] sm:$0xff]
  %v26 = vld [vmem:[%s0] sm:$0xff]
  %v27 = vld [vmem:[%s0 + $0x8] sm:$0xff]
  %v28 = vld [vmem:[%s0 + $0x10] sm:$0xff]
  %v29 = vpack.c.bf16 %v27, %v26
  %v30 = vpack.c.bf16 %v28, %v28
  %v31 = vld [vmem:[%s1] sm:$0xf]
  %v32 = vld [vmem:[%s1 + $0x4] sm:$0xf]
  %v33 = vld [vmem:[%s1 + $0x8] sm:$0xf]
  %v34 = vld [vmem:[%s1 + $0xc] sm:$0xf]
  %v39 = vunpack.c.l.b16 %v31
  %v40 = vunpack.c.l.b16 %v32
  %v41 = vunpack.c.l.b16 %v33
  %v42 = vunpack.c.l.b16 %v34
  %v43 = vpack.c.b16 %v40, %v39
  %v44 = vpack.c.b16 %v42, %v41
  %vm47 = vcmask 261120
  %v49 = vsel %vm47, %v29, 0
  %v52 = vsel %vm47, %v30, 0
  %54 = vmatprep.subr.bf16.mxu0 0
  %55 = vmatpush1.bf16.msra.mxu0 %v43
  %56 = vmatprep.subr.bf16.mxu0 0
  %57 = vmatpush1.bf16.msra.mxu0 %v44
  %58 = vmatprep.subr.bf16.mxu0 0
  %59 = vmatpush1.bf16.msra.mxu0 0
  %60 = vmatprep.subr.bf16.mxu0 0
  %61 = vmatpush1.bf16.msra.mxu0 0
  %62 = vmatprep.subr.bf16.mxu0 0
  %63 = vmatpush1.bf16.msra.mxu0 0
  %64 = vmatprep.subr.bf16.mxu0 0
  %65 = vmatpush1.bf16.msra.mxu0 0
  %66 = vmatprep.subr.bf16.mxu0 0
  %67 = vmatpush1.bf16.msra.mxu0 0
  %68 = vmatprep.subr.bf16.mxu0 0
  %69 = vmatpush1.bf16.msra.mxu0 0
  %70 = vmatprep.subr.bf16.mxu0 0
  %71 = vmatpush1.bf16.msra.mxu0 0
  %72 = vmatprep.subr.bf16.mxu0 0
  %73 = vmatpush1.bf16.msra.mxu0 0
  %74 = vmatprep.subr.bf16.mxu0 0
  %75 = vmatpush1.bf16.msra.mxu0 0
  %76 = vmatprep.subr.bf16.mxu0 0
  %77 = vmatpush1.bf16.msra.mxu0 0
  %78 = vmatprep.subr.bf16.mxu0 0
  %79 = vmatpush1.bf16.msra.mxu0 0
  %80 = vmatprep.subr.bf16.mxu0 0
  %81 = vmatpush1.bf16.msra.mxu0 0
  %82 = vmatprep.subr.bf16.mxu0 0
  %83 = vmatpush1.bf16.msra.mxu0 0
  %84 = vmatprep.subr.bf16.mxu0 0
  %85 = vmatpush1.bf16.msra.mxu0 0
  %86 = vmatprep.mubr.bf16.mxu0 0
  %87 = vmatmul.mubr.bf16.gmra.mrb[0].mxu0 %v49
  %v88 = vpop.f32.mrb[0].mxu0
  %v89 = vadd.f32 0.0, %v88
  %v90 = vpop.f32.mrb[0].mxu0
  %v91 = vpop.f32.mrb[0].mxu0
  %v92 = vadd.f32 0.0, %v91
  %v93 = vpop.f32.mrb[0].mxu0
  %94 = vmatprep.mubr.bf16.mxu0 0
  %95 = vmatmul.mubr.bf16.gmra.mrb[0].mxu0 %v52
  %v96 = vpop.f32.mrb[0].mxu0
  %v97 = vadd.f32 0.0, %v96
  %v98 = vpop.f32.mrb[0].mxu0
  %v99 = vpop.f32.mrb[0].mxu0
  %v100 = vpop.f32.mrb[0].mxu0
  %101 = vdwg.mxu0
  %v102 = vadd.f32 %v23, %v89
  %v103 = vadd.f32 %v24, %v92
  %v104 = vadd.f32 %v25, %v97
  %vm105 = vcmask 523264
  %106 = vst.msk [vmem:[#allocation2] sm:$0xff] %vm105, %v102
  %107 = vst.msk [vmem:[#allocation2 + $0x8] sm:$0xff] %vm105, %v103
  %108 = vst.msk [vmem:[#allocation2 + $0x10] sm:$0xff] %vm105, %v104
  // Predicated region
  $region18: #{wrapped_transformer_decoder.31} parent=0 // pred_check
    %p109 = pneg %p15
  $region19: #{wrapped_transformer_decoder.31} parent=0 // pred_check_branch
    %111 = sbr.rel (%p109) target = $region21
  $region20: #{wrapped_transformer_decoder.31} parent=0 // pred_region
    %v112 = vld [vmem:[#allocation2] sm:$0xff]
    %v113 = vld [vmem:[#allocation2 + $0x8] sm:$0xff]
    %v114 = vld [vmem:[#allocation2 + $0x10] sm:$0xff]
    %v115 = vld [vmem:[%s2] sm:$0x1]
    %v117 = vlaneseq
    %v118 = vshrl.u32 %v117, 7
    %v119 = vsub.s32 0, %v118
    %v120 = vrot.slane %v115, %v119
    %v122 = vadd.f32 %v112, %v120
    %v123 = vadd.f32 %v113, %v120
    %v124 = vadd.f32 %v114, %v120
    %125 = vst.msk [vmem:[%s3] sm:$0xff] %vm105, %v122
    %126 = vst.msk [vmem:[%s3 + $0x8] sm:$0xff] %vm105, %v123
    %127 = vst.msk [vmem:[%s3 + $0x10] sm:$0xff] %vm105, %v124
  $region21: #{wrapped_transformer_decoder.31} parent=0 // pred_fallthru
    _
  // Predicated region
  $region22: #{wrapped_transformer_decoder.31} parent=0 // pred_check
    _
  $region23: #{wrapped_transformer_decoder.31} parent=0 // pred_check_branch
    %129 = sbr.rel (0) target = $region25
  $region24: #{wrapped_transformer_decoder.31} parent=0 // pred_region
    _
  $region25: #{wrapped_transformer_decoder.31} parent=0 // pred_fallthru
    _
  // Predicated region
  $region26: #{wrapped_transformer_decoder.31} parent=0 // pred_check
    _
  $region27: #{wrapped_transformer_decoder.31} parent=0 // pred_check_branch
    %131 = sbr.rel (0) target = $region29
  $region28: #{wrapped_transformer_decoder.31} parent=0 // pred_region
    _
  $region29: #{wrapped_transformer_decoder.31} parent=0 // pred_fallthru
    _

// kernel: wrapped_transformer_decoder.36
$region0: #{wrapped_transformer_decoder.36}
  #allocation0 [shape = 'u32[]', space=smem, size = 0x4, offset = 0x4, fixed_abs, tag = 'smem constant byte address 0x4 - core index']
  #allocation1 [shape = 'u32[144,128]{1,0:T(1,128)}', space=vmem, size = 0x12000, scoped, tag = 'internal scratch']
  #allocation2 [shape = 'f32[16,32]{1,0:T(8,128)}', space=vmem, size = 0x2000, scoped, tag = 'scratch operand']
  %s0 = inlined_call_operand.vmem [shape: f32[16,128], index: 0, kind: input, shape index: {}]
  %s1 = inlined_call_operand.vmem [shape: bf16[128,32], index: 1, kind: input, shape index: {}]
  %s2 = inlined_call_operand.vmem [shape: f32[1,32], index: 2, kind: input, shape index: {}]
  %s3 = inlined_call_operand.vmem [shape: f32[16,32], index: 3, kind: input, shape index: {}]
  %s4 = inlined_call_operand.vmem [shape: f32[16,32], index: 4, kind: output, shape index: {}]
  %s5 = sld [smem:[#allocation0]]
  $region34: #{wrapped_transformer_decoder.36} parent=0
    _
  %s7 = ssub.s32 1, %s5
  %s8 = scalar_select 0, %s7, %s5
  // Predicated region
  $region2: #{wrapped_transformer_decoder.36} parent=0 // pred_check
    _
  $region3: #{wrapped_transformer_decoder.36} parent=0 // pred_check_branch
    %10 = sbr.rel (0) target = $region5
  $region4: #{wrapped_transformer_decoder.36} parent=0 // pred_region
    _
  $region5: #{wrapped_transformer_decoder.36} parent=0 // pred_fallthru
    _
  // Predicated region
  $region6: #{wrapped_transformer_decoder.36} parent=0 // pred_check
    _
  $region7: #{wrapped_transformer_decoder.36} parent=0 // pred_check_branch
    %12 = sbr.rel (0) target = $region9
  $region8: #{wrapped_transformer_decoder.36} parent=0 // pred_region
    _
  $region9: #{wrapped_transformer_decoder.36} parent=0 // pred_fallthru
    _
  // Predicated region
  $region10: #{wrapped_transformer_decoder.36} parent=0 // pred_check
    _
  $region11: #{wrapped_transformer_decoder.36} parent=0 // pred_check_branch
    %14 = sbr.rel (0) target = $region13
  $region12: #{wrapped_transformer_decoder.36} parent=0 // pred_region
    _
  $region13: #{wrapped_transformer_decoder.36} parent=0 // pred_fallthru
    _
  // Predicated region
  $region14: #{wrapped_transformer_decoder.36} parent=0 // pred_check
    _
  $region15: #{wrapped_transformer_decoder.36} parent=0 // pred_check_branch
    %16 = sbr.rel (0) target = $region17
  $region16: #{wrapped_transformer_decoder.36} parent=0 // pred_region
    _
  $region17: #{wrapped_transformer_decoder.36} parent=0 // pred_fallthru
    _
  %p18 = scmp.eq.s32.totalorder 0, 0
  // Predicated region
  $region18: #{wrapped_transformer_decoder.36} parent=0 // pred_check
    %p19 = pneg %p18
  $region19: #{wrapped_transformer_decoder.36} parent=0 // pred_check_branch
    %21 = sbr.rel (%p19) target = $region21
  $region20: #{wrapped_transformer_decoder.36} parent=0 // pred_region
    %vm22 = vcmask 261120
    %23 = vst.msk [vmem:[#allocation2] sm:$0xff] %vm22, 0.0
    %24 = vst.msk [vmem:[#allocation2 + $0x8] sm:$0xff] %vm22, 0.0
  $region21: #{wrapped_transformer_decoder.36} parent=0 // pred_fallthru
    _
  %v25 = vld [vmem:[#allocation2] sm:$0xff]
  %v26 = vld [vmem:[#allocation2 + $0x8] sm:$0xff]
  %v27 = vld [vmem:[%s0] sm:$0xff]
  %v28 = vld [vmem:[%s0 + $0x8] sm:$0xff]
  %v29 = vpack.c.bf16 %v28, %v27
  %v30 = vld [vmem:[%s1] sm:$0xf]
  %v31 = vld [vmem:[%s1 + $0x4] sm:$0xf]
  %v32 = vld [vmem:[%s1 + $0x8] sm:$0xf]
  %v33 = vld [vmem:[%s1 + $0xc] sm:$0xf]
  %v34 = vld [vmem:[%s1 + $0x10] sm:$0xf]
  %v35 = vld [vmem:[%s1 + $0x14] sm:$0xf]
  %v36 = vld [vmem:[%s1 + $0x18] sm:$0xf]
  %v37 = vld [vmem:[%s1 + $0x1c] sm:$0xf]
  %v38 = vld [vmem:[%s1 + $0x20] sm:$0xf]
  %v39 = vld [vmem:[%s1 + $0x24] sm:$0xf]
  %v40 = vld [vmem:[%s1 + $0x28] sm:$0xf]
  %v41 = vld [vmem:[%s1 + $0x2c] sm:$0xf]
  %v42 = vld [vmem:[%s1 + $0x30] sm:$0xf]
  %v43 = vld [vmem:[%s1 + $0x34] sm:$0xf]
  %v44 = vld [vmem:[%s1 + $0x38] sm:$0xf]
  %v45 = vld [vmem:[%s1 + $0x3c] sm:$0xf]
  %v62 = vunpack.c.l.b16 %v30
  %v63 = vunpack.c.l.b16 %v31
  %v64 = vunpack.c.l.b16 %v32
  %v65 = vunpack.c.l.b16 %v33
  %v66 = vunpack.c.l.b16 %v34
  %v67 = vunpack.c.l.b16 %v35
  %v68 = vunpack.c.l.b16 %v36
  %v69 = vunpack.c.l.b16 %v37
  %v70 = vunpack.c.l.b16 %v38
  %v71 = vunpack.c.l.b16 %v39
  %v72 = vunpack.c.l.b16 %v40
  %v73 = vunpack.c.l.b16 %v41
  %v74 = vunpack.c.l.b16 %v42
  %v75 = vunpack.c.l.b16 %v43
  %v76 = vunpack.c.l.b16 %v44
  %v77 = vunpack.c.l.b16 %v45
  %v78 = vpack.c.b16 %v63, %v62
  %v79 = vpack.c.b16 %v65, %v64
  %v80 = vpack.c.b16 %v67, %v66
  %v81 = vpack.c.b16 %v69, %v68
  %v82 = vpack.c.b16 %v71, %v70
  %v83 = vpack.c.b16 %v73, %v72
  %v84 = vpack.c.b16 %v75, %v74
  %v85 = vpack.c.b16 %v77, %v76
  %94 = vmatprep.subr.bf16.mxu0 0
  %95 = vmatpush1.bf16.msra.mxu0 %v78
  %96 = vmatprep.subr.bf16.mxu0 0
  %97 = vmatpush1.bf16.msra.mxu0 %v79
  %98 = vmatprep.subr.bf16.mxu0 0
  %99 = vmatpush1.bf16.msra.mxu0 %v80
  %100 = vmatprep.subr.bf16.mxu0 0
  %101 = vmatpush1.bf16.msra.mxu0 %v81
  %102 = vmatprep.subr.bf16.mxu0 0
  %103 = vmatpush1.bf16.msra.mxu0 %v82
  %104 = vmatprep.subr.bf16.mxu0 0
  %105 = vmatpush1.bf16.msra.mxu0 %v83
  %106 = vmatprep.subr.bf16.mxu0 0
  %107 = vmatpush1.bf16.msra.mxu0 %v84
  %108 = vmatprep.subr.bf16.mxu0 0
  %109 = vmatpush1.bf16.msra.mxu0 %v85
  %110 = vmatprep.subr.bf16.mxu0 0
  %111 = vmatpush1.bf16.msra.mxu0 0
  %112 = vmatprep.subr.bf16.mxu0 0
  %113 = vmatpush1.bf16.msra.mxu0 0
  %114 = vmatprep.subr.bf16.mxu0 0
  %115 = vmatpush1.bf16.msra.mxu0 0
  %116 = vmatprep.subr.bf16.mxu0 0
  %117 = vmatpush1.bf16.msra.mxu0 0
  %118 = vmatprep.subr.bf16.mxu0 0
  %119 = vmatpush1.bf16.msra.mxu0 0
  %120 = vmatprep.subr.bf16.mxu0 0
  %121 = vmatpush1.bf16.msra.mxu0 0
  %122 = vmatprep.subr.bf16.mxu0 0
  %123 = vmatpush1.bf16.msra.mxu0 0
  %124 = vmatprep.subr.bf16.mxu0 0
  %125 = vmatpush1.bf16.msra.mxu0 0
  %126 = vmatprep.mubr.bf16.mxu0 0
  %127 = vmatmul.mubr.bf16.gmra.mrb[0].mxu0 %v29
  %v128 = vpop.f32.mrb[0].mxu0
  %v129 = vadd.f32 0.0, %v128
  %v130 = vpop.f32.mrb[0].mxu0
  %v131 = vpop.f32.mrb[0].mxu0
  %v132 = vadd.f32 0.0, %v131
  %v133 = vpop.f32.mrb[0].mxu0
  %134 = vdwg.mxu0
  %v135 = vadd.f32 %v25, %v129
  %v136 = vadd.f32 %v26, %v132
  %vm137 = vcmask 261120
  %138 = vst.msk [vmem:[#allocation2] sm:$0xff] %vm137, %v135
  %139 = vst.msk [vmem:[#allocation2 + $0x8] sm:$0xff] %vm137, %v136
  // Predicated region
  $region22: #{wrapped_transformer_decoder.36} parent=0 // pred_check
    %p140 = pneg %p18
  $region23: #{wrapped_transformer_decoder.36} parent=0 // pred_check_branch
    %142 = sbr.rel (%p140) target = $region25
  $region24: #{wrapped_transformer_decoder.36} parent=0 // pred_region
    %v143 = vld [vmem:[#allocation2] sm:$0xff]
    %v144 = vld [vmem:[#allocation2 + $0x8] sm:$0xff]
    %v145 = vld [vmem:[%s2] sm:$0x1]
    %v147 = vlaneseq
    %v148 = vshrl.u32 %v147, 7
    %v149 = vsub.s32 0, %v148
    %v150 = vrot.slane %v145, %v149
    %v152 = vadd.f32 %v143, %v150
    %v153 = vadd.f32 %v144, %v150
    %v154 = vld [vmem:[%s3] sm:$0xff]
    %v155 = vld [vmem:[%s3 + $0x8] sm:$0xff]
    %v156 = vadd.f32 %v152, %v154
    %v157 = vadd.f32 %v153, %v155
    %158 = vst.msk [vmem:[%s4] sm:$0xff] %vm137, %v156
    %159 = vst.msk [vmem:[%s4 + $0x8] sm:$0xff] %vm137, %v157
  $region25: #{wrapped_transformer_decoder.36} parent=0 // pred_fallthru
    _
  // Predicated region
  $region26: #{wrapped_transformer_decoder.36} parent=0 // pred_check
    _
  $region27: #{wrapped_transformer_decoder.36} parent=0 // pred_check_branch
    %161 = sbr.rel (0) target = $region29
  $region28: #{wrapped_transformer_decoder.36} parent=0 // pred_region
    _
  $region29: #{wrapped_transformer_decoder.36} parent=0 // pred_fallthru
    _
  // Predicated region
  $region30: #{wrapped_transformer_decoder.36} parent=0 // pred_check
    _
  $region31: #{wrapped_transformer_decoder.36} parent=0 // pred_check_branch
    %163 = sbr.rel (0) target = $region33
  $region32: #{wrapped_transformer_decoder.36} parent=0 // pred_region
    _
  $region33: #{wrapped_transformer_decoder.36} parent=0 // pred_fallthru
    _

// kernel: wrapped_transformer_decoder.49
$region0: #{wrapped_transformer_decoder.49}
  #allocation0 [shape = 'u32[]', space=smem, size = 0x4, offset = 0x4, fixed_abs, tag = 'smem constant byte address 0x4 - core index']
  #allocation1 [shape = 'u32[144,128]{1,0:T(1,128)}', space=vmem, size = 0x12000, scoped, tag = 'internal scratch']
  %s0 = inlined_call_operand.vmem [shape: f32[16,32], index: 0, kind: input, shape index: {}]
  %s1 = inlined_call_operand.vmem [shape: f32[1,32], index: 1, kind: input, shape index: {}]
  %s2 = inlined_call_operand.vmem [shape: f32[1,32], index: 2, kind: input, shape index: {}]
  %s3 = inlined_call_operand.hbm [shape: f32[16,32], index: 3, kind: output, shape index: {}]
  %s4 = sld [smem:[#allocation0]]
  $region22: #{wrapped_transformer_decoder.49} parent=0
    _
  %s6 = ssub.s32 1, %s4
  %s7 = scalar_select 0, %s6, %s4
  $region1: #{wrapped_transformer_decoder.49} parent=0
    #allocation2 [shape = 'u8[8192]{0}', space=vmem, size = 0x2000, scoped, tag = 'output window, operand 0, single buffered']
    #allocation3 [shape = 's32[1]{0}', space=sflag, size = 0x4, scoped, tag = 'scoped memory for wrapped_transformer_decoder.49']
    %8 = vsyncpa [#allocation3], 0
    // Predicated region
    $region2: #{wrapped_transformer_decoder.49} parent=1 // pred_check
      _
    $region3: #{wrapped_transformer_decoder.49} parent=1 // pred_check_branch
      %10 = sbr.rel (0) target = $region5
    $region4: #{wrapped_transformer_decoder.49} parent=1 // pred_region
      _
    $region5: #{wrapped_transformer_decoder.49} parent=1 // pred_fallthru
      _
    // Predicated region
    $region6: #{wrapped_transformer_decoder.49} parent=1 // pred_check
      _
    $region7: #{wrapped_transformer_decoder.49} parent=1 // pred_check_branch
      %12 = sbr.rel (0) target = $region9
    $region8: #{wrapped_transformer_decoder.49} parent=1 // pred_region
      _
    $region9: #{wrapped_transformer_decoder.49} parent=1 // pred_fallthru
      _
    // Predicated region
    $region10: #{wrapped_transformer_decoder.49} parent=1 // pred_check
      _
    $region11: #{wrapped_transformer_decoder.49} parent=1 // pred_check_branch
      %14 = sbr.rel (0) target = $region13
    $region12: #{wrapped_transformer_decoder.49} parent=1 // pred_region
      _
    $region13: #{wrapped_transformer_decoder.49} parent=1 // pred_fallthru
      _
    %v15 = vld [vmem:[%s0] sm:$0xff]
    %v16 = vld [vmem:[%s0 + $0x8] sm:$0xff]
    %vm17 = vcmask 261120
    %v18 = vsel %vm17, %v15, 0.0
    %19 = vadd.xlane.f32.xlu0 %v18
    %v20 = vpop.xlane.xlu0 %19
    %v21 = vsel %vm17, %v16, 0.0
    %22 = vadd.xlane.f32.xlu0 %v21
    %v23 = vpop.xlane.xlu0 %22
    %v24 = vrcp.pop 32.0
    %v25 = vmul.f32 %v20, %v24
    %v26 = vmul.f32 %v23, %v24
    %v27 = vsub.f32 %v15, %v25
    %v28 = vsub.f32 %v16, %v26
    %v29 = vmul.f32 %v27, %v27
    %v30 = vmul.f32 %v28, %v28
    %v31 = vsel %vm17, %v29, 0.0
    %32 = vadd.xlane.f32.xlu0 %v31
    %v33 = vpop.xlane.xlu0 %32
    %v34 = vsel %vm17, %v30, 0.0
    %35 = vadd.xlane.f32.xlu0 %v34
    %v36 = vpop.xlane.xlu0 %35
    %v37 = vmul.f32 %v33, %v24
    %v38 = vmul.f32 %v36, %v24
    %v39 = vadd.f32 %v37, 1e-05
    %v40 = vadd.f32 %v38, 1e-05
    %v41 = vrsqrt.pop %v39
    %v42 = vrsqrt.pop %v40
    %v43 = vmul.f32 %v27, %v41
    %v44 = vmul.f32 %v28, %v42
    %v45 = vld [vmem:[%s1] sm:$0x1]
    %v47 = vlaneseq
    %v48 = vshrl.u32 %v47, 7
    %v49 = vsub.s32 0, %v48
    %v50 = vrot.slane %v45, %v49
    %v52 = vmul.f32 %v43, %v50
    %v53 = vmul.f32 %v44, %v50
    %v54 = vld [vmem:[%s2] sm:$0x1]
    %v56 = vlaneseq
    %v57 = vshrl.u32 %v56, 7
    %v58 = vsub.s32 0, %v57
    %v59 = vrot.slane %v54, %v58
    %v61 = vadd.f32 %v52, %v59
    %v62 = vadd.f32 %v53, %v59
    %63 = vst.msk [vmem:[#allocation2] sm:$0xff] %vm17, %v61
    %64 = vst.msk [vmem:[#allocation2 + $0x8] sm:$0xff] %vm17, %v62
    // Predicated region
    $region14: #{wrapped_transformer_decoder.49} parent=1 // pred_check
      _
    $region15: #{wrapped_transformer_decoder.49} parent=1 // pred_check_branch
      %66 = sbr.rel (0) target = $region17
    $region16: #{wrapped_transformer_decoder.49} parent=1 // pred_region
      %s68 = ssub.s32 256, 256
      %69 = vsyncadd [#allocation3], %s68
      %s70 = sshll.u32 [#allocation2], 4
      %s71 = int_to_ptr.vmem [resolvable:$true] %s70
      %76 = dma.vmem_to_hbm [thread:$0]  %s71, 256, %s3, [#allocation3], 128, 128, 8
    $region17: #{wrapped_transformer_decoder.49} parent=1 // pred_fallthru
      _
    // Predicated region
    $region18: #{wrapped_transformer_decoder.49} parent=1 // pred_check
      _
    $region19: #{wrapped_transformer_decoder.49} parent=1 // pred_check_branch
      %78 = sbr.rel (0) target = $region21
    $region20: #{wrapped_transformer_decoder.49} parent=1 // pred_region
      %79 = dma.done [#allocation3], 256
    $region21: #{wrapped_transformer_decoder.49} parent=1 // pred_fallthru
      _
    %80 = vsyncpa [#allocation3], 1

// kernel: wrapped_transformer_decoder.32
$region0: #{wrapped_transformer_decoder.32}
  #allocation0 [shape = 'u32[]', space=smem, size = 0x4, offset = 0x4, fixed_abs, tag = 'smem constant byte address 0x4 - core index']
  #allocation1 [shape = 'u32[144,128]{1,0:T(1,128)}', space=vmem, size = 0x12000, scoped, tag = 'internal scratch']
  #allocation2 [shape = 'f32[8,32]{1,0:T(8,128)}', space=vmem, size = 0x1000, scoped, tag = 'scratch operand']
  #allocation3 [shape = 'f32[4,8,1]{2,1,0:T(8,128)}', space=vmem, size = 0x4000, scoped, tag = 'scratch operand']
  #allocation4 [shape = 'f32[4,8,1]{2,1,0:T(8,128)}', space=vmem, size = 0x4000, scoped, tag = 'scratch operand']
  %s0 = inlined_call_operand.vmem [shape: f32[2,8,32], index: 0, kind: input, shape index: {}]
  %s1 = inlined_call_operand.vmem [shape: f32[2,12,32], index: 1, kind: input, shape index: {}]
  %s2 = inlined_call_operand.vmem [shape: f32[2,12,32], index: 2, kind: input, shape index: {}]
  %s3 = inlined_call_operand.vmem [shape: f32[2,8,32], index: 3, kind: output, shape index: {}]
  %s4 = sld [smem:[#allocation0]]
  $region53: #{wrapped_transformer_decoder.32} parent=0
    _
  %s6 = ssub.s32 1, %s4
  %s7 = scalar_select 0, %s6, %s4
  loop: start=0, step=1, limit=4
  $region2: #{wrapped_transformer_decoder.32} parent=0 // loop_pre_header
    _
  $region3: #{wrapped_transformer_decoder.32} parent=0 // loop_header
    %s9 = sphi 0, %s13
    %p10 = scmp.ge.s32.totalorder %s9, 4
    %s16 = sphi 0, %s35
    %s17 = sphi 0, %s31
    %s18 = sphi 0, %s27
    %s19 = sphi 0, %s16
    %s20 = sphi 0, %s17
    %s21 = sphi 0, %s18
    %s22 = sphi 0, %s19
    %s23 = sphi 0, %s20
    %s24 = sphi 0, %s21
    %s40 = sphi 0, %s42
    %s43 = sphi 0, %s40
    %s44 = sphi 0, %s43
    %s60 = sphi 0, %s44
    %s68 = sphi 0, %s70
    %s71 = sphi 0, %s68
    %s72 = sphi 0, %s71
    %s88 = sphi 0, %s72
    %s96 = sphi 0, %s98
    %s99 = sphi 0, %s96
    %s100 = sphi 0, %s99
    %s116 = sphi 0, %s100
    %s124 = sphi 0, %s126
    %s127 = sphi 0, %s124
    %s128 = sphi 0, %s127
    %s144 = sphi 0, %s128
  $region4: #{wrapped_transformer_decoder.32} parent=0 // loop_header_branch
    %12 = sbr.rel (%p10) target = $region8
  $region5: #{wrapped_transformer_decoder.32} parent=0 // loop_body
    %s14 = ssub.s32 %s9, 1
    %s15 = ssub.s32 %s9, 2
    %s25 = sadd.s32 1, %s18
    %p26 = scmp.ge.s32.totalorder %s25, 1
    %s27 = scalar_select %p26, 0, %s25
    %s28 = sadd.s32 1, %s17
    %s29 = scalar_select %p26, %s28, %s17
    %p30 = scmp.ge.s32.totalorder %s29, 1
    %s31 = scalar_select %p30, 0, %s29
    %s32 = sadd.s32 1, %s16
    %s33 = scalar_select %p30, %s32, %s16
    %p34 = scmp.ge.s32.totalorder %s33, 2
    %s35 = scalar_select %p34, 0, %s33
    %s36 = ssub.s32 %s16, %s35
    %s37 = ssub.s32 %s17, %s31
    %s38 = sor.u32 %s36, %s37
    %p39 = scmp.eq.s32.totalorder %s38, 0
    %s41 = sadd.s32 %s40, 1
    %s42 = scalar_select %p39, %s40, %s41
    %p45 = pneg %p39
    %p46 = scmp.eq.s32.totalorder %s9, 1
    %p47 = por %p45, %p46
    %p48 = scmp.ne.s32.totalorder %s40, %s43
    %p49 = scmp.eq.s32.totalorder %s9, 0
    %p50 = por %p48, %p49
    %p51 = scmp.ne.s32.totalorder %s40, %s43
    %p52 = scmp.eq.s32.totalorder %s14, 1
    %p53 = por %p51, %p52
    %p54 = scmp.ne.s32.totalorder %s43, %s44
    %p55 = scmp.eq.s32.totalorder %s14, 0
    %p56 = por %p54, %p55
    %p57 = scmp.ne.s32.totalorder %s43, %s44
    %p58 = scmp.eq.s32.totalorder %s15, 1
    %p59 = por %p57, %p58
    %p61 = scmp.ne.s32.totalorder %s44, %s60
    %p62 = scmp.eq.s32.totalorder %s15, 0
    %p63 = por %p61, %p62
    %s64 = ssub.s32 %s16, %s35
    %s65 = ssub.s32 %s18, %s27
    %s66 = sor.u32 %s64, %s65
    %p67 = scmp.eq.s32.totalorder %s66, 0
    %s69 = sadd.s32 %s68, 1
    %s70 = scalar_select %p67, %s68, %s69
    %p73 = pneg %p67
    %p74 = scmp.eq.s32.totalorder %s9, 1
    %p75 = por %p73, %p74
    %p76 = scmp.ne.s32.totalorder %s68, %s71
    %p77 = scmp.eq.s32.totalorder %s9, 0
    %p78 = por %p76, %p77
    %p79 = scmp.ne.s32.totalorder %s68, %s71
    %p80 = scmp.eq.s32.totalorder %s14, 1
    %p81 = por %p79, %p80
    %p82 = scmp.ne.s32.totalorder %s71, %s72
    %p83 = scmp.eq.s32.totalorder %s14, 0
    %p84 = por %p82, %p83
    %p85 = scmp.ne.s32.totalorder %s71, %s72
    %p86 = scmp.eq.s32.totalorder %s15, 1
    %p87 = por %p85, %p86
    %p89 = scmp.ne.s32.totalorder %s72, %s88
    %p90 = scmp.eq.s32.totalorder %s15, 0
    %p91 = por %p89, %p90
    %s92 = ssub.s32 %s16, %s35
    %s93 = ssub.s32 %s18, %s27
    %s94 = sor.u32 %s92, %s93
    %p95 = scmp.eq.s32.totalorder %s94, 0
    %s97 = sadd.s32 %s96, 1
    %s98 = scalar_select %p95, %s96, %s97
    %p101 = pneg %p95
    %p102 = scmp.eq.s32.totalorder %s9, 1
    %p103 = por %p101, %p102
    %p104 = scmp.ne.s32.totalorder %s96, %s99
    %p105 = scmp.eq.s32.totalorder %s9, 0
    %p106 = por %p104, %p105
    %p107 = scmp.ne.s32.totalorder %s96, %s99
    %p108 = scmp.eq.s32.totalorder %s14, 1
    %p109 = por %p107, %p108
    %p110 = scmp.ne.s32.totalorder %s99, %s100
    %p111 = scmp.eq.s32.totalorder %s14, 0
    %p112 = por %p110, %p111
    %p113 = scmp.ne.s32.totalorder %s99, %s100
    %p114 = scmp.eq.s32.totalorder %s15, 1
    %p115 = por %p113, %p114
    %p117 = scmp.ne.s32.totalorder %s100, %s116
    %p118 = scmp.eq.s32.totalorder %s15, 0
    %p119 = por %p117, %p118
    %s120 = ssub.s32 %s16, %s35
    %s121 = ssub.s32 %s17, %s31
    %s122 = sor.u32 %s120, %s121
    %p123 = scmp.eq.s32.totalorder %s122, 0
    %s125 = sadd.s32 %s124, 1
    %s126 = scalar_select %p123, %s124, %s125
    %p129 = pneg %p123
    %p130 = scmp.eq.s32.totalorder %s9, 1
    %p131 = por %p129, %p130
    %p132 = scmp.ne.s32.totalorder %s124, %s127
    %p133 = scmp.eq.s32.totalorder %s9, 0
    %p134 = por %p132, %p133
    %p135 = scmp.ne.s32.totalorder %s124, %s127
    %p136 = scmp.eq.s32.totalorder %s14, 1
    %p137 = por %p135, %p136
    %p138 = scmp.ne.s32.totalorder %s127, %s128
    %p139 = scmp.eq.s32.totalorder %s14, 0
    %p140 = por %p138, %p139
    %p141 = scmp.ne.s32.totalorder %s127, %s128
    %p142 = scmp.eq.s32.totalorder %s15, 1
    %p143 = por %p141, %p142
    %p145 = scmp.ne.s32.totalorder %s128, %s144
    %p146 = scmp.eq.s32.totalorder %s15, 0
    %p147 = por %p145, %p146
    %p148 = scmp.le.s32.totalorder 1, %s9
    %p149 = scmp.lt.s32.totalorder %s9, 3
    %p150 = pnand %p148, %p149
    %p151 = pneg %p150
    // Predicated region
    $region9: #{wrapped_transformer_decoder.32} parent=5 // pred_check
      _
    $region10: #{wrapped_transformer_decoder.32} parent=5 // pred_check_branch
      %153 = sbr.rel (%p150) target = $region12
    $region11: #{wrapped_transformer_decoder.32} parent=5 // pred_region
      %s154 = ssub.s32 %s9, 1
    $region12: #{wrapped_transformer_decoder.32} parent=5 // pred_fallthru
      _
    %p155 = scmp.lt.s32.totalorder %s9, 2
    // Predicated region
    $region13: #{wrapped_transformer_decoder.32} parent=5 // pred_check
      %p156 = pneg %p155
    $region14: #{wrapped_transformer_decoder.32} parent=5 // pred_check_branch
      %158 = sbr.rel (%p156) target = $region16
    $region15: #{wrapped_transformer_decoder.32} parent=5 // pred_region
      // Predicated region
      $region17: #{wrapped_transformer_decoder.32} parent=15 // pred_check
        %p159 = pneg %p50
      $region18: #{wrapped_transformer_decoder.32} parent=15 // pred_check_branch
        %161 = sbr.rel (%p159) target = $region20
      $region19: #{wrapped_transformer_decoder.32} parent=15 // pred_region
        %p162 = scmp.lt.s32.totalorder %s16, 1
        %s163 = scalar_select %p162, %s16, 1
        %p164 = scmp.lt.s32.totalorder %s17, 0
        %s165 = scalar_select %p164, %s17, 0
        %s166 = sadd.s32 %s165, %s163
        %s167 = smul.addr %s166, 8
        %s168 = scalar_lea.vmem %s0, %s167
      $region20: #{wrapped_transformer_decoder.32} parent=15 // pred_fallthru
        _
      // Predicated region
      $region21: #{wrapped_transformer_decoder.32} parent=15 // pred_check
        %p169 = pneg %p78
      $region22: #{wrapped_transformer_decoder.32} parent=15 // pred_check_branch
        %171 = sbr.rel (%p169) target = $region24
      $region23: #{wrapped_transformer_decoder.32} parent=15 // pred_region
        %s172 = smul.u32 2, %s18
        %p173 = scmp.lt.s32.totalorder %s16, 1
        %s174 = scalar_select %p173, %s16, 1
        %p175 = scmp.lt.s32.totalorder %s172, 1
        %s176 = scalar_select %p175, %s172, 1
        %s177 = smul.addr %s174, 2
        %s178 = sadd.s32 %s176, %s177
        %s179 = smul.addr %s178, 8
        %s180 = scalar_lea.vmem %s1, %s179
        %s181 = smul.u32 2, %s18
      $region24: #{wrapped_transformer_decoder.32} parent=15 // pred_fallthru
        _
      // Predicated region
      $region25: #{wrapped_transformer_decoder.32} parent=15 // pred_check
        %p182 = pneg %p106
      $region26: #{wrapped_transformer_decoder.32} parent=15 // pred_check_branch
        %184 = sbr.rel (%p182) target = $region28
      $region27: #{wrapped_transformer_decoder.32} parent=15 // pred_region
        %s185 = smul.u32 2, %s18
        %p186 = scmp.lt.s32.totalorder %s16, 1
        %s187 = scalar_select %p186, %s16, 1
        %p188 = scmp.lt.s32.totalorder %s185, 1
        %s189 = scalar_select %p188, %s185, 1
        %s190 = smul.addr %s187, 2
        %s191 = sadd.s32 %s189, %s190
        %s192 = smul.addr %s191, 8
        %s193 = scalar_lea.vmem %s2, %s192
        %s194 = smul.u32 2, %s18
      $region28: #{wrapped_transformer_decoder.32} parent=15 // pred_fallthru
        _
    $region16: #{wrapped_transformer_decoder.32} parent=5 // pred_fallthru
      _
    %p195 = scmp.le.s32.totalorder 1, %s9
    %p196 = scmp.lt.s32.totalorder %s9, 3
    %p197 = pnand %p195, %p196
    %p198 = pneg %p197
    // Predicated region
    $region29: #{wrapped_transformer_decoder.32} parent=5 // pred_check
      _
    $region30: #{wrapped_transformer_decoder.32} parent=5 // pred_check_branch
      %200 = sbr.rel (%p197) target = $region32
    $region31: #{wrapped_transformer_decoder.32} parent=5 // pred_region
      %s201 = ssub.s32 %s9, 1
      %p202 = scmp.lt.s32.totalorder %s19, 1
      %s203 = scalar_select %p202, %s19, 1
      %p204 = scmp.lt.s32.totalorder %s20, 0
      %s205 = scalar_select %p204, %s20, 0
      %s206 = sadd.s32 %s205, %s203
      %s207 = smul.addr %s206, 8
      %s208 = scalar_lea.vmem %s0, %s207
      %p209 = pneg %p56
      %p210 = pneg %p53
      %s211 = smul.u32 2, %s21
      %p212 = scmp.lt.s32.totalorder %s19, 1
      %s213 = scalar_select %p212, %s19, 1
      %p214 = scmp.lt.s32.totalorder %s211, 1
      %s215 = scalar_select %p214, %s211, 1
      %s216 = smul.addr %s213, 2
      %s217 = sadd.s32 %s215, %s216
      %s218 = smul.addr %s217, 8
      %s219 = scalar_lea.vmem %s1, %s218
      %p220 = pneg %p84
      %p221 = pneg %p81
      %s222 = smul.u32 2, %s21
      %p223 = scmp.lt.s32.totalorder %s19, 1
      %s224 = scalar_select %p223, %s19, 1
      %p225 = scmp.lt.s32.totalorder %s222, 1
      %s226 = scalar_select %p225, %s222, 1
      %s227 = smul.addr %s224, 2
      %s228 = sadd.s32 %s226, %s227
      %s229 = smul.addr %s228, 8
      %s230 = scalar_lea.vmem %s2, %s229
      %p231 = pneg %p112
      %p232 = pneg %p109
      %p233 = pneg %p140
      %p234 = pneg %p137
      %p235 = scmp.lt.s32.totalorder %s19, 1
      %s236 = scalar_select %p235, %s19, 1
      %p237 = scmp.lt.s32.totalorder %s20, 0
      %s238 = scalar_select %p237, %s20, 0
      %s239 = sadd.s32 %s238, %s236
      %s240 = smul.addr %s239, 8
      %s241 = scalar_lea.vmem %s3, %s240
      %p242 = scmp.lt.s32.totalorder %s19, 1
      %s243 = scalar_select %p242, %s19, 1
      %p244 = scmp.lt.s32.totalorder %s20, 0
      %s245 = scalar_select %p244, %s20, 0
      %s246 = sadd.s32 %s245, %s243
      %s247 = smul.addr %s246, 8
      %s248 = scalar_lea.vmem %s0, %s247
      %s249 = smul.u32 2, %s21
      %p250 = scmp.lt.s32.totalorder %s19, 1
      %s251 = scalar_select %p250, %s19, 1
      %p252 = scmp.lt.s32.totalorder %s249, 1
      %s253 = scalar_select %p252, %s249, 1
      %s254 = smul.addr %s251, 2
      %s255 = sadd.s32 %s253, %s254
      %s256 = smul.addr %s255, 8
      %s257 = scalar_lea.vmem %s1, %s256
      %s258 = smul.u32 2, %s21
      %s259 = smul.u32 2, %s21
      %p260 = scmp.lt.s32.totalorder %s19, 1
      %s261 = scalar_select %p260, %s19, 1
      %p262 = scmp.lt.s32.totalorder %s259, 1
      %s263 = scalar_select %p262, %s259, 1
      %s264 = smul.addr %s261, 2
      %s265 = sadd.s32 %s263, %s264
      %s266 = smul.addr %s265, 8
      %s267 = scalar_lea.vmem %s2, %s266
      %s268 = smul.u32 2, %s21
      %p269 = scmp.lt.s32.totalorder %s19, 1
      %s270 = scalar_select %p269, %s19, 1
      %p271 = scmp.lt.s32.totalorder %s20, 0
      %s272 = scalar_select %p271, %s20, 0
      %s273 = sadd.s32 %s272, %s270
      %s274 = smul.addr %s273, 8
      %s275 = scalar_lea.vmem %s3, %s274
      %p277 = scmp.eq.s32.totalorder %s21, 0
      // Predicated region
      $region33: #{wrapped_transformer_decoder.32} parent=31 // pred_check
        %p278 = pneg %p277
      $region34: #{wrapped_transformer_decoder.32} parent=31 // pred_check_branch
        %280 = sbr.rel (%p278) target = $region36
      $region35: #{wrapped_transformer_decoder.32} parent=31 // pred_region
        %vm281 = vcmask 7168
        %282 = vst.msk [vmem:[#allocation3] sm:$0xff] %vm281, -inf
        %283 = vst.msk [vmem:[#allocation3 + $0x8] sm:$0xff] %vm281, -inf
        %284 = vst.msk [vmem:[#allocation3 + $0x10] sm:$0xff] %vm281, -inf
        %285 = vst.msk [vmem:[#allocation3 + $0x18] sm:$0xff] %vm281, -inf
        %286 = vst.msk [vmem:[#allocation4] sm:$0xff] %vm281, 0.0
        %287 = vst.msk [vmem:[#allocation4 + $0x8] sm:$0xff] %vm281, 0.0
        %288 = vst.msk [vmem:[#allocation4 + $0x10] sm:$0xff] %vm281, 0.0
        %289 = vst.msk [vmem:[#allocation4 + $0x18] sm:$0xff] %vm281, 0.0
        %vm290 = vcmask 261120
        %291 = vst.msk [vmem:[#allocation2] sm:$0xff] %vm290, 0.0
      $region36: #{wrapped_transformer_decoder.32} parent=31 // pred_fallthru
        _
      %v292 = vld [vmem:[%s248] sm:$0xff]
      %v293 = vmul.f32 %v292, 0.35355338
      %v294 = vpack.c.bf16 %v293, %v293
      %v295 = vld [vmem:[%s257] sm:$0xff]
      %v296 = vld [vmem:[%s257 + $0x8] sm:$0xf]
      %v297 = vpack.c.bf16 %v296, %v295
      %v298 = vld [vmem:[%s267] sm:$0xff]
      %v299 = vld [vmem:[%s267 + $0x8] sm:$0xf]
      %v300 = vpack.c.bf16 %v299, %v298
      %vm301 = vcmask 64512
      %v303 = vsel %vm301, %v294, 0
      %v306 = vsel %vm301, %v297, 0
      %308 = vmatprep.subr.bf16.mxu0 0
      %309 = vmatpush1.bf16.xpose.msra.mxu0 %v306
      %310 = vmatprep.subr.bf16.mxu0 0
      %311 = vmatpush1.bf16.xpose.msra.mxu0 0
      %312 = vmatprep.subr.bf16.mxu0 0
      %313 = vmatpush1.bf16.xpose.msra.mxu0 0
      %314 = vmatprep.subr.bf16.mxu0 0
      %315 = vmatpush1.bf16.xpose.msra.mxu0 0
      %316 = vmatprep.subr.bf16.mxu0 0
      %317 = vmatpush1.bf16.xpose.msra.mxu0 0
      %318 = vmatprep.subr.bf16.mxu0 0
      %319 = vmatpush1.bf16.xpose.msra.mxu0 0
      %320 = vmatprep.subr.bf16.mxu0 0
      %321 = vmatpush1.bf16.xpose.msra.mxu0 0
      %322 = vmatprep.subr.bf16.mxu0 0
      %323 = vmatpush1.bf16.xpose.msra.mxu0 0
      %324 = vmatprep.subr.bf16.mxu0 0
      %325 = vmatpush1.bf16.xpose.msra.mxu0 0
      %326 = vmatprep.subr.bf16.mxu0 0
      %327 = vmatpush1.bf16.xpose.msra.mxu0 0
      %328 = vmatprep.subr.bf16.mxu0 0
      %329 = vmatpush1.bf16.xpose.msra.mxu0 0
      %330 = vmatprep.subr.bf16.mxu0 0
      %331 = vmatpush1.bf16.xpose.msra.mxu0 0
      %332 = vmatprep.subr.bf16.mxu0 0
      %333 = vmatpush1.bf16.xpose.msra.mxu0 0
      %334 = vmatprep.subr.bf16.mxu0 0
      %335 = vmatpush1.bf16.xpose.msra.mxu0 0
      %336 = vmatprep.subr.bf16.mxu0 0
      %337 = vmatpush1.bf16.xpose.msra.mxu0 0
      %338 = vmatprep.subr.bf16.mxu0 0
      %339 = vmatpush1.bf16.xpose.msra.mxu0 0
      %340 = vmatprep.mubr.bf16.mxu0 0
      %341 = vmatmul.mubr.bf16.gmra.mrb[0].mxu0 %v303
      %v342 = vpop.f32.mrb[0].mxu0
      %v343 = vadd.f32 0.0, %v342
      %v344 = vpop.f32.mrb[0].mxu0
      %v345 = vpop.f32.mrb[0].mxu0
      %v346 = vpop.f32.mrb[0].mxu0
      %347 = vdwg.mxu0
      %v348 = vld [vmem:[#allocation3] sm:$0xff]
      %vm349 = vcmask 97280
      %v350 = vsel %vm349, %v343, -inf
      %351 = vmax.xlane.f32.xlu0 %v350
      %v352 = vpop.xlane.xlu0 %351
      %v353 = vmax.f32 %v348, %v352
      %v354 = vsub.f32 %v348, %v353
      %v355 = vmul.f32 %v354, 1.442695
      %v356 = vpow.pop %v355
      %358 = vset.pattern.permute.xlu0 0
      %359 = vperm.xlu0 %358, %v353
      %v360 = vpop.permute.xlu0 %359
      %v362 = vsub.f32 %v343, %v360
      %v363 = vmul.f32 %v362, 1.442695
      %v364 = vpow.pop %v363
      %v365 = vld [vmem:[#allocation4] sm:$0xff]
      %v366 = vmul.f32 %v356, %v365
      %v367 = vsel %vm349, %v364, 0.0
      %368 = vadd.xlane.f32.xlu0 %v367
      %v369 = vpop.xlane.xlu0 %368
      %v370 = vadd.f32 %v366, %v369
      %vm371 = vcmask 7168
      %372 = vst.msk [vmem:[#allocation4] sm:$0xff] %vm371, %v370
      %v373 = vld [vmem:[#allocation2] sm:$0xff]
      %375 = vset.pattern.permute.xlu0 0
      %376 = vperm.xlu0 %375, %v356
      %v377 = vpop.permute.xlu0 %376
      %v379 = vmul.f32 %v377, %v373
      %v380 = vpack.c.bf16 %v364, %v364
      %v382 = vsel %vm349, %v380, 0
      %vm384 = vcmask 1045504
      %v386 = vsel %vm384, %v300, 0
      %388 = vmatprep.subr.bf16.mxu0 0
      %389 = vmatpush1.bf16.msra.mxu0 %v386
      %390 = vmatprep.subr.bf16.mxu0 0
      %391 = vmatpush1.bf16.msra.mxu0 0
      %392 = vmatprep.subr.bf16.mxu0 0
      %393 = vmatpush1.bf16.msra.mxu0 0
      %394 = vmatprep.subr.bf16.mxu0 0
      %395 = vmatpush1.bf16.msra.mxu0 0
      %396 = vmatprep.subr.bf16.mxu0 0
      %397 = vmatpush1.bf16.msra.mxu0 0
      %398 = vmatprep.subr.bf16.mxu0 0
      %399 = vmatpush1.bf16.msra.mxu0 0
      %400 = vmatprep.subr.bf16.mxu0 0
      %401 = vmatpush1.bf16.msra.mxu0 0
      %402 = vmatprep.subr.bf16.mxu0 0
      %403 = vmatpush1.bf16.msra.mxu0 0
      %404 = vmatprep.subr.bf16.mxu0 0
      %405 = vmatpush1.bf16.msra.mxu0 0
      %406 = vmatprep.subr.bf16.mxu0 0
      %407 = vmatpush1.bf16.msra.mxu0 0
      %408 = vmatprep.subr.bf16.mxu0 0
      %409 = vmatpush1.bf16.msra.mxu0 0
      %410 = vmatprep.subr.bf16.mxu0 0
      %411 = vmatpush1.bf16.msra.mxu0 0
      %412 = vmatprep.subr.bf16.mxu0 0
      %413 = vmatpush1.bf16.msra.mxu0 0
      %414 = vmatprep.subr.bf16.mxu0 0
      %415 = vmatpush1.bf16.msra.mxu0 0
      %416 = vmatprep.subr.bf16.mxu0 0
      %417 = vmatpush1.bf16.msra.mxu0 0
      %418 = vmatprep.subr.bf16.mxu0 0
      %419 = vmatpush1.bf16.msra.mxu0 0
      %420 = vmatprep.mubr.bf16.mxu0 0
      %421 = vmatmul.mubr.bf16.gmra.mrb[0].mxu0 %v382
      %v422 = vpop.f32.mrb[0].mxu0
      %v423 = vadd.f32 0.0, %v422
      %v424 = vpop.f32.mrb[0].mxu0
      %v425 = vpop.f32.mrb[0].mxu0
      %v426 = vpop.f32.mrb[0].mxu0
      %427 = vdwg.mxu0
      %v428 = vadd.f32 %v379, %v423
      %429 = vst.msk [vmem:[#allocation2] sm:$0xff] %vm301, %v428
      %430 = vst.msk [vmem:[#allocation3] sm:$0xff] %vm371, %v353
      %432 = vrot.lane.b32.xlu0 %v294, 120
      %v433 = vpop.permute.xlu0 %432
      %435 = vrot.lane.b32.xlu0 %v297, 120
      %v436 = vpop.permute.xlu0 %435
      %v438 = vsel %vm301, %v433, 0
      %v441 = vsel %vm301, %v436, 0
      %443 = vmatprep.subr.bf16.mxu0 0
      %444 = vmatpush1.bf16.xpose.msra.mxu0 %v441
      %445 = vmatprep.subr.bf16.mxu0 0
      %446 = vmatpush1.bf16.xpose.msra.mxu0 0
      %447 = vmatprep.subr.bf16.mxu0 0
      %448 = vmatpush1.bf16.xpose.msra.mxu0 0
      %449 = vmatprep.subr.bf16.mxu0 0
      %450 = vmatpush1.bf16.xpose.msra.mxu0 0
      %451 = vmatprep.subr.bf16.mxu0 0
      %452 = vmatpush1.bf16.xpose.msra.mxu0 0
      %453 = vmatprep.subr.bf16.mxu0 0
      %454 = vmatpush1.bf16.xpose.msra.mxu0 0
      %455 = vmatprep.subr.bf16.mxu0 0
      %456 = vmatpush1.bf16.xpose.msra.mxu0 0
      %457 = vmatprep.subr.bf16.mxu0 0
      %458 = vmatpush1.bf16.xpose.msra.mxu0 0
      %459 = vmatprep.subr.bf16.mxu0 0
      %460 = vmatpush1.bf16.xpose.msra.mxu0 0
      %461 = vmatprep.subr.bf16.mxu0 0
      %462 = vmatpush1.bf16.xpose.msra.mxu0 0
      %463 = vmatprep.subr.bf16.mxu0 0
      %464 = vmatpush1.bf16.xpose.msra.mxu0 0
      %465 = vmatprep.subr.bf16.mxu0 0
      %466 = vmatpush1.bf16.xpose.msra.mxu0 0
      %467 = vmatprep.subr.bf16.mxu0 0
      %468 = vmatpush1.bf16.xpose.msra.mxu0 0
      %469 = vmatprep.subr.bf16.mxu0 0
      %470 = vmatpush1.bf16.xpose.msra.mxu0 0
      %471 = vmatprep.subr.bf16.mxu0 0
      %472 = vmatpush1.bf16.xpose.msra.mxu0 0
      %473 = vmatprep.subr.bf16.mxu0 0
      %474 = vmatpush1.bf16.xpose.msra.mxu0 0
      %475 = vmatprep.mubr.bf16.mxu0 0
      %476 = vmatmul.mubr.bf16.gmra.mrb[0].mxu0 %v438
      %v477 = vpop.f32.mrb[0].mxu0
      %v478 = vadd.f32 0.0, %v477
      %v479 = vpop.f32.mrb[0].mxu0
      %v480 = vpop.f32.mrb[0].mxu0
      %v481 = vpop.f32.mrb[0].mxu0
      %482 = vdwg.mxu0
      %s483 = scalar_lea.vmem [#allocation3], 8
      %v484 = vld [vmem:[%s483] sm:$0xff]
      %v485 = vsel %vm349, %v478, -inf
      %486 = vmax.xlane.f32.xlu0 %v485
      %v487 = vpop.xlane.xlu0 %486
      %v488 = vmax.f32 %v484, %v487
      %v489 = vsub.f32 %v484, %v488
      %v490 = vmul.f32 %v489, 1.442695
      %v491 = vpow.pop %v490
      %493 = vset.pattern.permute.xlu0 0
      %494 = vperm.xlu0 %493, %v488
      %v495 = vpop.permute.xlu0 %494
      %v497 = vsub.f32 %v478, %v495
      %v498 = vmul.f32 %v497, 1.442695
      %v499 = vpow.pop %v498
      %s500 = scalar_lea.vmem [#allocation4], 8
      %v501 = vld [vmem:[%s500] sm:$0xff]
      %v502 = vmul.f32 %v491, %v501
      %v503 = vsel %vm349, %v499, 0.0
      %504 = vadd.xlane.f32.xlu0 %v503
      %v505 = vpop.xlane.xlu0 %504
      %v506 = vadd.f32 %v502, %v505
      %507 = vst.msk [vmem:[%s500] sm:$0xff] %vm371, %v506
      %v508 = vld [vmem:[#allocation2] sm:$0xff]
      %510 = vset.pattern.permute.xlu0 0
      %511 = vperm.xlu0 %510, %v491
      %v512 = vpop.permute.xlu0 %511
      %v514 = vmul.f32 %v512, %v508
      %v515 = vpack.c.bf16 %v499, %v499
      %517 = vrot.lane.b32.xlu0 %v300, 120
      %v518 = vpop.permute.xlu0 %517
      %v520 = vsel %vm349, %v515, 0
      %v523 = vsel %vm384, %v518, 0
      %525 = vmatprep.subr.bf16.mxu0 0
      %526 = vmatpush1.bf16.msra.mxu0 %v523
      %527 = vmatprep.subr.bf16.mxu0 0
      %528 = vmatpush1.bf16.msra.mxu0 0
      %529 = vmatprep.subr.bf16.mxu0 0
      %530 = vmatpush1.bf16.msra.mxu0 0
      %531 = vmatprep.subr.bf16.mxu0 0
      %532 = vmatpush1.bf16.msra.mxu0 0
      %533 = vmatprep.subr.bf16.mxu0 0
      %534 = vmatpush1.bf16.msra.mxu0 0
      %535 = vmatprep.subr.bf16.mxu0 0
      %536 = vmatpush1.bf16.msra.mxu0 0
      %537 = vmatprep.subr.bf16.mxu0 0
      %538 = vmatpush1.bf16.msra.mxu0 0
      %539 = vmatprep.subr.bf16.mxu0 0
      %540 = vmatpush1.bf16.msra.mxu0 0
      %541 = vmatprep.subr.bf16.mxu0 0
      %542 = vmatpush1.bf16.msra.mxu0 0
      %543 = vmatprep.subr.bf16.mxu0 0
      %544 = vmatpush1.bf16.msra.mxu0 0
      %545 = vmatprep.subr.bf16.mxu0 0
      %546 = vmatpush1.bf16.msra.mxu0 0
      %547 = vmatprep.subr.bf16.mxu0 0
      %548 = vmatpush1.bf16.msra.mxu0 0
      %549 = vmatprep.subr.bf16.mxu0 0
      %550 = vmatpush1.bf16.msra.mxu0 0
      %551 = vmatprep.subr.bf16.mxu0 0
      %552 = vmatpush1.bf16.msra.mxu0 0
      %553 = vmatprep.subr.bf16.mxu0 0
      %554 = vmatpush1.bf16.msra.mxu0 0
      %555 = vmatprep.subr.bf16.mxu0 0
      %556 = vmatpush1.bf16.msra.mxu0 0
      %557 = vmatprep.mubr.bf16.mxu0 0
      %558 = vmatmul.mubr.bf16.gmra.mrb[0].mxu0 %v520
      %v559 = vpop.f32.mrb[0].mxu0
      %v560 = vadd.f32 0.0, %v559
      %v561 = vpop.f32.mrb[0].mxu0
      %v562 = vpop.f32.mrb[0].mxu0
      %v563 = vpop.f32.mrb[0].mxu0
      %564 = vdwg.mxu0
      %566 = vrot.lane.b32.xlu0 %v560, 8
      %v567 = vpop.permute.xlu0 %566
      %v569 = vadd.f32 %v514, %v567
      %vm570 = vcmask 130112
      %571 = vst.msk [vmem:[#allocation2] sm:$0xff] %vm570, %v569
      %572 = vst.msk [vmem:[%s483] sm:$0xff] %vm371, %v488
      %573 = vrot.lane.b32.xlu0 %v294, 112
      %v574 = vpop.permute.xlu0 %573
      %575 = vrot.lane.b32.xlu0 %v297, 112
      %v576 = vpop.permute.xlu0 %575
      %v578 = vsel %vm301, %v574, 0
      %v581 = vsel %vm301, %v576, 0
      %583 = vmatprep.subr.bf16.mxu0 0
      %584 = vmatpush1.bf16.xpose.msra.mxu0 %v581
      %585 = vmatprep.subr.bf16.mxu0 0
      %586 = vmatpush1.bf16.xpose.msra.mxu0 0
      %587 = vmatprep.subr.bf16.mxu0 0
      %588 = vmatpush1.bf16.xpose.msra.mxu0 0
      %589 = vmatprep.subr.bf16.mxu0 0
      %590 = vmatpush1.bf16.xpose.msra.mxu0 0
      %591 = vmatprep.subr.bf16.mxu0 0
      %592 = vmatpush1.bf16.xpose.msra.mxu0 0
      %593 = vmatprep.subr.bf16.mxu0 0
      %594 = vmatpush1.bf16.xpose.msra.mxu0 0
      %595 = vmatprep.subr.bf16.mxu0 0
      %596 = vmatpush1.bf16.xpose.msra.mxu0 0
      %597 = vmatprep.subr.bf16.mxu0 0
      %598 = vmatpush1.bf16.xpose.msra.mxu0 0
      %599 = vmatprep.subr.bf16.mxu0 0
      %600 = vmatpush1.bf16.xpose.msra.mxu0 0
      %601 = vmatprep.subr.bf16.mxu0 0
      %602 = vmatpush1.bf16.xpose.msra.mxu0 0
      %603 = vmatprep.subr.bf16.mxu0 0
      %604 = vmatpush1.bf16.xpose.msra.mxu0 0
      %605 = vmatprep.subr.bf16.mxu0 0
      %606 = vmatpush1.bf16.xpose.msra.mxu0 0
      %607 = vmatprep.subr.bf16.mxu0 0
      %608 = vmatpush1.bf16.xpose.msra.mxu0 0
      %609 = vmatprep.subr.bf16.mxu0 0
      %610 = vmatpush1.bf16.xpose.msra.mxu0 0
      %611 = vmatprep.subr.bf16.mxu0 0
      %612 = vmatpush1.bf16.xpose.msra.mxu0 0
      %613 = vmatprep.subr.bf16.mxu0 0
      %614 = vmatpush1.bf16.xpose.msra.mxu0 0
      %615 = vmatprep.mubr.bf16.mxu0 0
      %616 = vmatmul.mubr.bf16.gmra.mrb[0].mxu0 %v578
      %v617 = vpop.f32.mrb[0].mxu0
      %v618 = vadd.f32 0.0, %v617
      %v619 = vpop.f32.mrb[0].mxu0
      %v620 = vpop.f32.mrb[0].mxu0
      %v621 = vpop.f32.mrb[0].mxu0
      %622 = vdwg.mxu0
      %s623 = scalar_lea.vmem [#allocation3], 16
      %v624 = vld [vmem:[%s623] sm:$0xff]
      %v625 = vsel %vm349, %v618, -inf
      %626 = vmax.xlane.f32.xlu0 %v625
      %v627 = vpop.xlane.xlu0 %626
      %v628 = vmax.f32 %v624, %v627
      %v629 = vsub.f32 %v624, %v628
      %v630 = vmul.f32 %v629, 1.442695
      %v631 = vpow.pop %v630
      %633 = vset.pattern.permute.xlu0 0
      %634 = vperm.xlu0 %633, %v628
      %v635 = vpop.permute.xlu0 %634
      %v637 = vsub.f32 %v618, %v635
      %v638 = vmul.f32 %v637, 1.442695
      %v639 = vpow.pop %v638
      %s640 = scalar_lea.vmem [#allocation4], 16
      %v641 = vld [vmem:[%s640] sm:$0xff]
      %v642 = vmul.f32 %v631, %v641
      %v643 = vsel %vm349, %v639, 0.0
      %644 = vadd.xlane.f32.xlu0 %v643
      %v645 = vpop.xlane.xlu0 %644
      %v646 = vadd.f32 %v642, %v645
      %647 = vst.msk [vmem:[%s640] sm:$0xff] %vm371, %v646
      %v648 = vld [vmem:[#allocation2] sm:$0xff]
      %650 = vset.pattern.permute.xlu0 0
      %651 = vperm.xlu0 %650, %v631
      %v652 = vpop.permute.xlu0 %651
      %v654 = vmul.f32 %v652, %v648
      %v655 = vpack.c.bf16 %v639, %v639
      %656 = vrot.lane.b32.xlu0 %v300, 112
      %v657 = vpop.permute.xlu0 %656
      %v659 = vsel %vm349, %v655, 0
      %v662 = vsel %vm384, %v657, 0
      %664 = vmatprep.subr.bf16.mxu0 0
      %665 = vmatpush1.bf16.msra.mxu0 %v662
      %666 = vmatprep.subr.bf16.mxu0 0
      %667 = vmatpush1.bf16.msra.mxu0 0
      %668 = vmatprep.subr.bf16.mxu0 0
      %669 = vmatpush1.bf16.msra.mxu0 0
      %670 = vmatprep.subr.bf16.mxu0 0
      %671 = vmatpush1.bf16.msra.mxu0 0
      %672 = vmatprep.subr.bf16.mxu0 0
      %673 = vmatpush1.bf16.msra.mxu0 0
      %674 = vmatprep.subr.bf16.mxu0 0
      %675 = vmatpush1.bf16.msra.mxu0 0
      %676 = vmatprep.subr.bf16.mxu0 0
      %677 = vmatpush1.bf16.msra.mxu0 0
      %678 = vmatprep.subr.bf16.mxu0 0
      %679 = vmatpush1.bf16.msra.mxu0 0
      %680 = vmatprep.subr.bf16.mxu0 0
      %681 = vmatpush1.bf16.msra.mxu0 0
      %682 = vmatprep.subr.bf16.mxu0 0
      %683 = vmatpush1.bf16.msra.mxu0 0
      %684 = vmatprep.subr.bf16.mxu0 0
      %685 = vmatpush1.bf16.msra.mxu0 0
      %686 = vmatprep.subr.bf16.mxu0 0
      %687 = vmatpush1.bf16.msra.mxu0 0
      %688 = vmatprep.subr.bf16.mxu0 0
      %689 = vmatpush1.bf16.msra.mxu0 0
      %690 = vmatprep.subr.bf16.mxu0 0
      %691 = vmatpush1.bf16.msra.mxu0 0
      %692 = vmatprep.subr.bf16.mxu0 0
      %693 = vmatpush1.bf16.msra.mxu0 0
      %694 = vmatprep.subr.bf16.mxu0 0
      %695 = vmatpush1.bf16.msra.mxu0 0
      %696 = vmatprep.mubr.bf16.mxu0 0
      %697 = vmatmul.mubr.bf16.gmra.mrb[0].mxu0 %v659
      %v698 = vpop.f32.mrb[0].mxu0
      %v699 = vadd.f32 0.0, %v698
      %v700 = vpop.f32.mrb[0].mxu0
      %v701 = vpop.f32.mrb[0].mxu0
      %v702 = vpop.f32.mrb[0].mxu0
      %703 = vdwg.mxu0
      %705 = vrot.lane.b32.xlu0 %v699, 16
      %v706 = vpop.permute.xlu0 %705
      %v708 = vadd.f32 %v654, %v706
      %vm709 = vcmask 195712
      %710 = vst.msk [vmem:[#allocation2] sm:$0xff] %vm709, %v708
      %711 = vst.msk [vmem:[%s623] sm:$0xff] %vm371, %v628
      %712 = vrot.lane.b32.xlu0 %v294, 104
      %v713 = vpop.permute.xlu0 %712
      %714 = vrot.lane.b32.xlu0 %v297, 104
      %v715 = vpop.permute.xlu0 %714
      %v717 = vsel %vm301, %v713, 0
      %v720 = vsel %vm301, %v715, 0
      %722 = vmatprep.subr.bf16.mxu0 0
      %723 = vmatpush1.bf16.xpose.msra.mxu0 %v720
      %724 = vmatprep.subr.bf16.mxu0 0
      %725 = vmatpush1.bf16.xpose.msra.mxu0 0
      %726 = vmatprep.subr.bf16.mxu0 0
      %727 = vmatpush1.bf16.xpose.msra.mxu0 0
      %728 = vmatprep.subr.bf16.mxu0 0
      %729 = vmatpush1.bf16.xpose.msra.mxu0 0
      %730 = vmatprep.subr.bf16.mxu0 0
      %731 = vmatpush1.bf16.xpose.msra.mxu0 0
      %732 = vmatprep.subr.bf16.mxu0 0
      %733 = vmatpush1.bf16.xpose.msra.mxu0 0
      %734 = vmatprep.subr.bf16.mxu0 0
      %735 = vmatpush1.bf16.xpose.msra.mxu0 0
      %736 = vmatprep.subr.bf16.mxu0 0
      %737 = vmatpush1.bf16.xpose.msra.mxu0 0
      %738 = vmatprep.subr.bf16.mxu0 0
      %739 = vmatpush1.bf16.xpose.msra.mxu0 0
      %740 = vmatprep.subr.bf16.mxu0 0
      %741 = vmatpush1.bf16.xpose.msra.mxu0 0
      %742 = vmatprep.subr.bf16.mxu0 0
      %743 = vmatpush1.bf16.xpose.msra.mxu0 0
      %744 = vmatprep.subr.bf16.mxu0 0
      %745 = vmatpush1.bf16.xpose.msra.mxu0 0
      %746 = vmatprep.subr.bf16.mxu0 0
      %747 = vmatpush1.bf16.xpose.msra.mxu0 0
      %748 = vmatprep.subr.bf16.mxu0 0
      %749 = vmatpush1.bf16.xpose.msra.mxu0 0
      %750 = vmatprep.subr.bf16.mxu0 0
      %751 = vmatpush1.bf16.xpose.msra.mxu0 0
      %752 = vmatprep.subr.bf16.mxu0 0
      %753 = vmatpush1.bf16.xpose.msra.mxu0 0
      %754 = vmatprep.mubr.bf16.mxu0 0
      %755 = vmatmul.mubr.bf16.gmra.mrb[0].mxu0 %v717
      %v756 = vpop.f32.mrb[0].mxu0
      %v757 = vadd.f32 0.0, %v756
      %v758 = vpop.f32.mrb[0].mxu0
      %v759 = vpop.f32.mrb[0].mxu0
      %v760 = vpop.f32.mrb[0].mxu0
      %761 = vdwg.mxu0
      %s762 = scalar_lea.vmem [#allocation3], 24
      %v763 = vld [vmem:[%s762] sm:$0xff]
      %v764 = vsel %vm349, %v757, -inf
      %765 = vmax.xlane.f32.xlu0 %v764
      %v766 = vpop.xlane.xlu0 %765
      %v767 = vmax.f32 %v763, %v766
      %v768 = vsub.f32 %v763, %v767
      %v769 = vmul.f32 %v768, 1.442695
      %v770 = vpow.pop %v769
      %772 = vset.pattern.permute.xlu0 0
      %773 = vperm.xlu0 %772, %v767
      %v774 = vpop.permute.xlu0 %773
      %v776 = vsub.f32 %v757, %v774
      %v777 = vmul.f32 %v776, 1.442695
      %v778 = vpow.pop %v777
      %s779 = scalar_lea.vmem [#allocation4], 24
      %v780 = vld [vmem:[%s779] sm:$0xff]
      %v781 = vmul.f32 %v770, %v780
      %v782 = vsel %vm349, %v778, 0.0
      %783 = vadd.xlane.f32.xlu0 %v782
      %v784 = vpop.xlane.xlu0 %783
      %v785 = vadd.f32 %v781, %v784
      %786 = vst.msk [vmem:[%s779] sm:$0xff] %vm371, %v785
      %v787 = vld [vmem:[#allocation2] sm:$0xff]
      %789 = vset.pattern.permute.xlu0 0
      %790 = vperm.xlu0 %789, %v770
      %v791 = vpop.permute.xlu0 %790
      %v793 = vmul.f32 %v791, %v787
      %v794 = vpack.c.bf16 %v778, %v778
      %795 = vrot.lane.b32.xlu0 %v300, 104
      %v796 = vpop.permute.xlu0 %795
      %v798 = vsel %vm349, %v794, 0
      %v801 = vsel %vm384, %v796, 0
      %803 = vmatprep.subr.bf16.mxu0 0
      %804 = vmatpush1.bf16.msra.mxu0 %v801
      %805 = vmatprep.subr.bf16.mxu0 0
      %806 = vmatpush1.bf16.msra.mxu0 0
      %807 = vmatprep.subr.bf16.mxu0 0
      %808 = vmatpush1.bf16.msra.mxu0 0
      %809 = vmatprep.subr.bf16.mxu0 0
      %810 = vmatpush1.bf16.msra.mxu0 0
      %811 = vmatprep.subr.bf16.mxu0 0
      %812 = vmatpush1.bf16.msra.mxu0 0
      %813 = vmatprep.subr.bf16.mxu0 0
      %814 = vmatpush1.bf16.msra.mxu0 0
      %815 = vmatprep.subr.bf16.mxu0 0
      %816 = vmatpush1.bf16.msra.mxu0 0
      %817 = vmatprep.subr.bf16.mxu0 0
      %818 = vmatpush1.bf16.msra.mxu0 0
      %819 = vmatprep.subr.bf16.mxu0 0
      %820 = vmatpush1.bf16.msra.mxu0 0
      %821 = vmatprep.subr.bf16.mxu0 0
      %822 = vmatpush1.bf16.msra.mxu0 0
      %823 = vmatprep.subr.bf16.mxu0 0
      %824 = vmatpush1.bf16.msra.mxu0 0
      %825 = vmatprep.subr.bf16.mxu0 0
      %826 = vmatpush1.bf16.msra.mxu0 0
      %827 = vmatprep.subr.bf16.mxu0 0
      %828 = vmatpush1.bf16.msra.mxu0 0
      %829 = vmatprep.subr.bf16.mxu0 0
      %830 = vmatpush1.bf16.msra.mxu0 0
      %831 = vmatprep.subr.bf16.mxu0 0
      %832 = vmatpush1.bf16.msra.mxu0 0
      %833 = vmatprep.subr.bf16.mxu0 0
      %834 = vmatpush1.bf16.msra.mxu0 0
      %835 = vmatprep.mubr.bf16.mxu0 0
      %836 = vmatmul.mubr.bf16.gmra.mrb[0].mxu0 %v798
      %v837 = vpop.f32.mrb[0].mxu0
      %v838 = vadd.f32 0.0, %v837
      %v839 = vpop.f32.mrb[0].mxu0
      %v840 = vpop.f32.mrb[0].mxu0
      %v841 = vpop.f32.mrb[0].mxu0
      %842 = vdwg.mxu0
      %844 = vrot.lane.b32.xlu0 %v838, 24
      %v845 = vpop.permute.xlu0 %844
      %v847 = vadd.f32 %v793, %v845
      %vm848 = vcmask 261312
      %849 = vst.msk [vmem:[#allocation2] sm:$0xff] %vm848, %v847
      %850 = vst.msk [vmem:[%s762] sm:$0xff] %vm371, %v767
      // Predicated region
      $region37: #{wrapped_transformer_decoder.32} parent=31 // pred_check
        %p851 = pneg %p277
      $region38: #{wrapped_transformer_decoder.32} parent=31 // pred_check_branch
        %853 = sbr.rel (%p851) target = $region40
      $region39: #{wrapped_transformer_decoder.32} parent=31 // pred_region
        %v854 = vld [vmem:[#allocation4] sm:$0xff]
        %v855 = vrcp.pop %v854
        %v856 = vld [vmem:[#allocation2] sm:$0xff]
        %858 = vset.pattern.permute.xlu0 0
        %859 = vperm.xlu0 %858, %v855
        %v860 = vpop.permute.xlu0 %859
        %v862 = vmul.f32 %v856, %v860
        %863 = vst.msk [vmem:[%s275] sm:$0xff] %vm301, %v862
        %v864 = vld [vmem:[%s500] sm:$0xff]
        %v865 = vrcp.pop %v864
        %v866 = vld [vmem:[#allocation2] sm:$0xff]
        %868 = vset.pattern.permute.xlu0 0
        %869 = vperm.xlu0 %868, %v865
        %v870 = vpop.permute.xlu0 %869
        %v872 = vmul.f32 %v866, %v870
        %873 = vst.msk [vmem:[%s275] sm:$0xff] %vm570, %v872
        %v874 = vld [vmem:[%s640] sm:$0xff]
        %v875 = vrcp.pop %v874
        %v876 = vld [vmem:[#allocation2] sm:$0xff]
        %878 = vset.pattern.permute.xlu0 0
        %879 = vperm.xlu0 %878, %v875
        %v880 = vpop.permute.xlu0 %879
        %v882 = vmul.f32 %v876, %v880
        %883 = vst.msk [vmem:[%s275] sm:$0xff] %vm709, %v882
        %v884 = vld [vmem:[%s779] sm:$0xff]
        %v885 = vrcp.pop %v884
        %v886 = vld [vmem:[#allocation2] sm:$0xff]
        %888 = vset.pattern.permute.xlu0 0
        %889 = vperm.xlu0 %888, %v885
        %v890 = vpop.permute.xlu0 %889
        %v892 = vmul.f32 %v886, %v890
        %893 = vst.msk [vmem:[%s275] sm:$0xff] %vm848, %v892
      $region40: #{wrapped_transformer_decoder.32} parent=31 // pred_fallthru
        _
      %p894 = scmp.lt.s32.totalorder %s19, 1
      %s895 = scalar_select %p894, %s19, 1
      %p896 = scmp.lt.s32.totalorder %s20, 0
      %s897 = scalar_select %p896, %s20, 0
      %s898 = sadd.s32 %s897, %s895
      %s899 = smul.addr %s898, 8
      %s900 = scalar_lea.vmem %s3, %s899
      // Predicated region
      $region41: #{wrapped_transformer_decoder.32} parent=31 // pred_check
        %p901 = pneg %p137
      $region42: #{wrapped_transformer_decoder.32} parent=31 // pred_check_branch
        %903 = sbr.rel (%p901) target = $region44
      $region43: #{wrapped_transformer_decoder.32} parent=31 // pred_region
        _
      $region44: #{wrapped_transformer_decoder.32} parent=31 // pred_fallthru
        _
    $region32: #{wrapped_transformer_decoder.32} parent=5 // pred_fallthru
      _
    %p904 = scmp.le.s32.totalorder 2, %s9
    // Predicated region
    $region45: #{wrapped_transformer_decoder.32} parent=5 // pred_check
      %p905 = pneg %p904
    $region46: #{wrapped_transformer_decoder.32} parent=5 // pred_check_branch
      %907 = sbr.rel (%p905) target = $region48
    $region47: #{wrapped_transformer_decoder.32} parent=5 // pred_region
      %s908 = ssub.s32 %s9, 2
      // Predicated region
      $region49: #{wrapped_transformer_decoder.32} parent=47 // pred_check
        %p909 = pneg %p143
      $region50: #{wrapped_transformer_decoder.32} parent=47 // pred_check_branch
        %911 = sbr.rel (%p909) target = $region52
      $region51: #{wrapped_transformer_decoder.32} parent=47 // pred_region
        %p912 = scmp.lt.s32.totalorder %s22, 1
        %s913 = scalar_select %p912, %s22, 1
        %p914 = scmp.lt.s32.totalorder %s23, 0
        %s915 = scalar_select %p914, %s23, 0
        %s916 = sadd.s32 %s915, %s913
        %s917 = smul.addr %s916, 8
        %s918 = scalar_lea.vmem %s3, %s917
      $region52: #{wrapped_transformer_decoder.32} parent=47 // pred_fallthru
        _
    $region48: #{wrapped_transformer_decoder.32} parent=5 // pred_fallthru
      _
  $region6: #{wrapped_transformer_decoder.32} parent=0 // loop_footer
    %s13 = sadd.s32 1, %s9
  $region7: #{wrapped_transformer_decoder.32} parent=0 // loop_footer_branch
    %8 = sbr.rel target = $region3
  $region8: #{wrapped_transformer_decoder.32} parent=0 // loop_exit
    _

</llo_original>
